<compile_context>
chip_gen: v7x
topology: tpu7x:2x2x1
jax: 0.10.0
libtpu: 0.0.40
codegen_flags: <defaults>
</compile_context>

<pallas_src>
import jax
import jax.numpy as jnp
from jax.experimental import pallas as pl
from jax.experimental.pallas import tpu as pltpu

LANE = 128


def _leaky_relu(x, slope=0.01):
    return jnp.where(x > 0, x, slope * x)


def _pad_to(n, m):
    return ((n + m - 1) // m) * m


def gcn_kernel(a_ref, x_ref, w1_ref, b1_ref, w2_ref, b2_ref,
               p_ref, wl_ref, bl_ref, out_ref,
               xw1_ref, h1_ref, xw2_ref, pooled_ref):
    """grid = (phase, row_tile).

    phase 0: H1 = leaky_relu(A_hat @ (X @ W1) + b1)   row-tile -> VMEM scratch
    phase 1: H2 = leaky_relu(A_hat @ (H1 @ W2) + b2)  row-tile,
             pooled += P_tile @ H2; last tile applies the Linear head.
    """
    phase = pl.program_id(0)
    i = pl.program_id(1)
    tm = a_ref.shape[0]
    row0 = pl.multiple_of(i * tm, tm)

    # ---- phase 0 setup (once): X @ W1 in f32, stored bf16; zero pooled acc ----
    @pl.when(jnp.logical_and(phase == 0, i == 0))
    def _():
        xw1 = jnp.dot(x_ref[...], w1_ref[...], preferred_element_type=jnp.float32)
        xw1_ref[...] = xw1.astype(jnp.bfloat16)
        pooled_ref[...] = jnp.zeros_like(pooled_ref)

    # ---- phase 0: conv1 message passing for this row tile (bf16 x bf16, f32 acc) ----
    @pl.when(phase == 0)
    def _():
        h = jnp.dot(a_ref[...], xw1_ref[...], preferred_element_type=jnp.float32)
        h1_ref[pl.ds(row0, tm), :] = _leaky_relu(h + b1_ref[...])

    # ---- phase 1 setup (once): H1 @ W2 stored bf16 ----
    @pl.when(jnp.logical_and(phase == 1, i == 0))
    def _():
        xw2 = jnp.dot(h1_ref[...], w2_ref[...], preferred_element_type=jnp.float32)
        xw2_ref[...] = xw2.astype(jnp.bfloat16)

    # ---- phase 1: conv2 message passing + mean-pool accumulation ----
    @pl.when(phase == 1)
    def _():
        h2 = jnp.dot(a_ref[...], xw2_ref[...], preferred_element_type=jnp.float32)
        h2 = _leaky_relu(h2 + b2_ref[...])
        pooled_ref[...] += jnp.dot(p_ref[...], h2, preferred_element_type=jnp.float32)

    # ---- final grid step: dropout (identity at inference) + Linear head ----
    @pl.when(jnp.logical_and(phase == 1, i == pl.num_programs(1) - 1))
    def _():
        # TODO(synk): F.dropout(p=0.5) is identity in eval mode (training=False); no-op here.
        out_ref[...] = jnp.dot(pooled_ref[...], wl_ref[...],
                               preferred_element_type=jnp.float32) + bl_ref[...]


def gcn_forward(x, edge_index, batch, params, *, num_graphs, tile_rows=256):
    """x: [N, in_feat] f32, edge_index: [2, E] int32, batch: [N] int32."""
    N, in_feat = x.shape
    h_feat = params["w1"].shape[1]
    h2_feat = params["w2"].shape[1]
    num_targets = params["wl"].shape[1]

    tm = min(tile_rows, _pad_to(N, 8))
    n_pad = _pad_to(N, tm)
    f_pad = _pad_to(in_feat, LANE)
    h_pad = _pad_to(h_feat, LANE)
    h2_pad = _pad_to(h2_feat, LANE)
    t_pad = _pad_to(num_targets, LANE)
    g_pad = _pad_to(num_graphs, 8)
    num_tiles = n_pad // tm

    # ---- glue (plain JAX): dense symmetric-normalized adjacency, cast to bf16 ----
    # TODO(synk): for batched disjoint graphs A_hat is block-diagonal; a
    # scalar-prefetched per-tile mask could skip all-zero (row, col) tiles.
    src, dst = edge_index[0], edge_index[1]
    adj = jnp.zeros((n_pad, n_pad), jnp.float32).at[dst, src].add(1.0)   # scatter-add (dup edges)
    adj = adj + jnp.eye(n_pad, dtype=jnp.float32)                        # self loops
    deg = jnp.sum(adj, axis=1)
    d_inv_sqrt = jnp.where(deg > 0, jax.lax.rsqrt(deg), 0.0)
    a_hat = (d_inv_sqrt[:, None] * adj * d_inv_sqrt[None, :]).astype(jnp.bfloat16)

    # ---- glue: mean-pool matrix [g_pad, n_pad] from the batch assignment ----
    batch_pad = jnp.full((n_pad,), -1, jnp.int32).at[:N].set(batch.astype(jnp.int32))
    one_hot = (batch_pad[None, :]
               == jnp.arange(g_pad, dtype=jnp.int32)[:, None]).astype(jnp.float32)
    counts = jnp.maximum(jnp.sum(one_hot, axis=1, keepdims=True), 1.0)
    pool = one_hot / counts                                              # padded rows are zero

    # ---- zero-pad features / weights to lane-dense (multiple-of-128) shapes ----
    def pad2(a, r, c):
        return jnp.zeros((r, c), jnp.float32).at[:a.shape[0], :a.shape[1]].set(a)

    x_p = pad2(x, n_pad, f_pad)
    w1 = pad2(params["w1"], f_pad, h_pad)
    b1 = pad2(params["b1"].reshape(1, -1), 1, h_pad)
    w2 = pad2(params["w2"], h_pad, h2_pad)
    b2 = pad2(params["b2"].reshape(1, -1), 1, h2_pad)
    wl = pad2(params["wl"], h2_pad, t_pad)
    bl = pad2(params["bl"].reshape(1, -1), 1, t_pad)

    grid_spec = pltpu.PrefetchScalarGridSpec(
        num_scalar_prefetch=0,
        grid=(2, num_tiles),                                    # (phase, row tile)
        in_specs=[
            pl.BlockSpec((tm, n_pad), lambda p, i: (i, 0)),     # A_hat row tiles (bf16)
            pl.BlockSpec((n_pad, f_pad), lambda p, i: (0, 0)),  # X (resident)
            pl.BlockSpec((f_pad, h_pad), lambda p, i: (0, 0)),  # W1
            pl.BlockSpec((1, h_pad), lambda p, i: (0, 0)),      # b1
            pl.BlockSpec((h_pad, h2_pad), lambda p, i: (0, 0)), # W2
            pl.BlockSpec((1, h2_pad), lambda p, i: (0, 0)),     # b2
            pl.BlockSpec((g_pad, tm), lambda p, i: (0, i)),     # pool column tiles
            pl.BlockSpec((h2_pad, t_pad), lambda p, i: (0, 0)), # W_lin
            pl.BlockSpec((1, t_pad), lambda p, i: (0, 0)),      # b_lin
        ],
        out_specs=pl.BlockSpec((g_pad, t_pad), lambda p, i: (0, 0)),
        scratch_shapes=[
            pltpu.VMEM((n_pad, h_pad), jnp.bfloat16),   # X @ W1   (bf16 MXU operand)
            pltpu.VMEM((n_pad, h_pad), jnp.float32),    # H1 activations (resident)
            pltpu.VMEM((n_pad, h2_pad), jnp.bfloat16),  # H1 @ W2  (bf16 MXU operand)
            pltpu.VMEM((g_pad, h2_pad), jnp.float32),   # pooled accumulator
        ],
    )

    out = pl.pallas_call(
        gcn_kernel,
        out_shape=jax.ShapeDtypeStruct((g_pad, t_pad), jnp.float32),
        grid_spec=grid_spec,
        compiler_params=pltpu.CompilerParams(
            # Both axes carry cross-iteration state (VMEM scratch, pooled
            # accumulator, last-tile output write) -> keep them sequential.
            dimension_semantics=("arbitrary", "arbitrary"),
            vmem_limit_bytes=32 * 1024 * 1024,
        ),
    )(a_hat, x_p, w1, b1, w2, b2, pool, wl, bl)

    return out[:num_graphs, :num_targets]


def _reference_forward(x, edge_index, batch, params, num_graphs):
    """Pure-JAX f32 reference (same semantics, no padding/bf16)."""
    N = x.shape[0]
    src, dst = edge_index[0], edge_index[1]
    adj = jnp.zeros((N, N), jnp.float32).at[dst, src].add(1.0)
    adj = adj + jnp.eye(N, dtype=jnp.float32)
    deg = jnp.sum(adj, axis=1)
    dis = jnp.where(deg > 0, 1.0 / jnp.sqrt(deg), 0.0)
    a_hat = dis[:, None] * adj * dis[None, :]
    h = _leaky_relu(a_hat @ (x @ params["w1"]) + params["b1"])
    h = _leaky_relu(a_hat @ (h @ params["w2"]) + params["b2"])
    one_hot = (batch[None, :] == jnp.arange(num_graphs)[:, None]).astype(jnp.float32)
    pool = one_hot / jnp.maximum(one_hot.sum(1, keepdims=True), 1.0)
    pooled = pool @ h
    return pooled @ params["wl"] + params["bl"]


def init_params(key, in_feat=6, h_feat=8, num_targets=2):
    k1, k2, k3 = jax.random.split(key, 3)

    def glorot(k, shape):
        fan_in, fan_out = shape
        lim = jnp.sqrt(6.0 / (fan_in + fan_out))
        return jax.random.uniform(k, shape, jnp.float32, -lim, lim)

    return {
        "w1": glorot(k1, (in_feat, h_feat)),
        "b1": jnp.zeros((1, h_feat), jnp.float32),
        "w2": glorot(k2, (h_feat, h_feat // 2)),
        "b2": jnp.zeros((1, h_feat // 2), jnp.float32),
        "wl": glorot(k3, (h_feat // 2, num_targets)),
        "bl": jnp.zeros((1, num_targets), jnp.float32),
    }


if __name__ == "__main__":
    key = jax.random.PRNGKey(0)
    kx, kp = jax.random.split(key)

    in_feat, h_feat, num_targets = 6, 8, 2
    nodes_per_graph, G = 128, 8
    N = nodes_per_graph * G                     # 1024 nodes total (batched graphs)

    # deterministic ring graph per component, bidirectional edges
    src_l, dst_l = [], []
    for g in range(G):
        base = g * nodes_per_graph
        for i in range(nodes_per_graph):
            a, b = base + i, base + (i + 1) % nodes_per_graph
            src_l += [a, b]
            dst_l += [b, a]
    edge_index = jnp.array([src_l, dst_l], dtype=jnp.int32)            # [2, E]
    batch = jnp.repeat(jnp.arange(G, dtype=jnp.int32), nodes_per_graph)  # [N]
    x = jax.random.normal(kx, (N, in_feat), jnp.float32)

    params = init_params(kp, in_feat, h_feat, num_targets)

    out = gcn_forward(x, edge_index, batch, params, num_graphs=G)
    jax.block_until_ready(out)
    assert out.shape == (G, num_targets)

    # loose sanity check vs pure-JAX f32 reference (kernel uses bf16 A_hat / operands)
    ref = _reference_forward(x, edge_index, batch, params, G)
    max_err = float(jnp.max(jnp.abs(out - ref)))
    assert max_err < 0.1, f"max abs err {max_err}"

    print("KERNEL_OK")
</pallas_src>

<mosaic_0001>
module attributes {stable_mosaic.version = 11 : i64} {
  func.func @gcn_kernel(%arg0: i32, %arg1: i32, %arg2: memref<256x1024xbf16, #tpu.memory_space<vmem>>, %arg3: memref<1024x128xf32, #tpu.memory_space<vmem>>, %arg4: memref<128x128xf32, #tpu.memory_space<vmem>>, %arg5: memref<1x128xf32, #tpu.memory_space<vmem>>, %arg6: memref<128x128xf32, #tpu.memory_space<vmem>>, %arg7: memref<1x128xf32, #tpu.memory_space<vmem>>, %arg8: memref<8x256xf32, #tpu.memory_space<vmem>>, %arg9: memref<128x128xf32, #tpu.memory_space<vmem>>, %arg10: memref<1x128xf32, #tpu.memory_space<vmem>>, %arg11: memref<8x128xf32, #tpu.memory_space<vmem>>, %arg12: memref<1024x128xbf16, #tpu.memory_space<vmem>>, %arg13: memref<1024x128xf32, #tpu.memory_space<vmem>>, %arg14: memref<1024x128xbf16, #tpu.memory_space<vmem>>, %arg15: memref<8x128xf32, #tpu.memory_space<vmem>>) attributes {dimension_semantics = [#tpu.dimension_semantics<arbitrary>, #tpu.dimension_semantics<arbitrary>], iteration_bounds = array<i64: 2, 4>, scalar_prefetch = 0 : i64, scratch_operands = 4 : i64, tpu.core_type = #tpu.core_type<tc>, window_params = [{transform_indices = @transform_0, window_bounds = array<i64: 256, 1024>}, {pipeline_mode = #tpu.pipeline_mode<synchronous>, transform_indices = @transform_1, window_bounds = array<i64: 1024, 128>}, {pipeline_mode = #tpu.pipeline_mode<synchronous>, transform_indices = @transform_2, window_bounds = array<i64: 128, 128>}, {pipeline_mode = #tpu.pipeline_mode<synchronous>, transform_indices = @transform_3, window_bounds = array<i64: 1, 128>}, {pipeline_mode = #tpu.pipeline_mode<synchronous>, transform_indices = @transform_4, window_bounds = array<i64: 128, 128>}, {pipeline_mode = #tpu.pipeline_mode<synchronous>, transform_indices = @transform_5, window_bounds = array<i64: 1, 128>}, {transform_indices = @transform_6, window_bounds = array<i64: 8, 256>}, {pipeline_mode = #tpu.pipeline_mode<synchronous>, transform_indices = @transform_7, window_bounds = array<i64: 128, 128>}, {pipeline_mode = #tpu.pipeline_mode<synchronous>, transform_indices = @transform_8, window_bounds = array<i64: 1, 128>}, {pipeline_mode = #tpu.pipeline_mode<synchronous>, transform_indices = @transform_9, window_bounds = array<i64: 8, 128>}]} {
    %c256_i32 = arith.constant 256 : i32
    %0 = arith.muli %arg1, %c256_i32 : i32
    %1 = tpu.assume_multiple %0, 256 : i32
    %c0_i32 = arith.constant 0 : i32
    %2 = arith.cmpi eq, %arg0, %c0_i32 : i32
    %c0_i32_0 = arith.constant 0 : i32
    %3 = arith.cmpi eq, %arg1, %c0_i32_0 : i32
    %4 = arith.andi %2, %3 : i1
    %5 = arith.extui %4 : i1 to i32
    %c0_i32_1 = arith.constant 0 : i32
    %6 = arith.cmpi ne, %5, %c0_i32_1 : i32
    scf.if %6 {
      %c0 = arith.constant 0 : index
      %c0_10 = arith.constant 0 : index
      %23 = vector.load %arg3[%c0, %c0_10] : memref<1024x128xf32, #tpu.memory_space<vmem>>, vector<1024x128xf32>
      %c0_11 = arith.constant 0 : index
      %c0_12 = arith.constant 0 : index
      %24 = vector.load %arg4[%c0_11, %c0_12] : memref<128x128xf32, #tpu.memory_space<vmem>>, vector<128x128xf32>
      %cst = arith.constant dense<0.000000e+00> : vector<1024x128xf32>
      %25 = tpu.matmul %23, %24, %cst {dimension_numbers = #tpu.dot_dimension_numbers<[1], [0], [0], [1], [0, 0, 1, 1], [], []>} : vector<1024x128xf32>, vector<128x128xf32>, vector<1024x128xf32> -> vector<1024x128xf32>
      %26 = arith.truncf %25 : vector<1024x128xf32> to vector<1024x128xbf16>
      %c0_13 = arith.constant 0 : index
      %c0_14 = arith.constant 0 : index
      %27 = vector.load %arg12[%c0_13, %c0_14] : memref<1024x128xbf16, #tpu.memory_space<vmem>>, vector<1024x128xbf16>
      tpu.vector_store %arg12[%c0_13, %c0_14], %26 {strides = array<i32>} : memref<1024x128xbf16, #tpu.memory_space<vmem>>, vector<1024x128xbf16>,
      %cst_15 = arith.constant 0.000000e+00 : f32
      %28 = vector.broadcast %cst_15 : f32 to vector<8x128xf32>
      %c0_16 = arith.constant 0 : index
      %c0_17 = arith.constant 0 : index
      %29 = vector.load %arg15[%c0_16, %c0_17] : memref<8x128xf32, #tpu.memory_space<vmem>>, vector<8x128xf32>
      tpu.vector_store %arg15[%c0_16, %c0_17], %28 {strides = array<i32>} : memref<8x128xf32, #tpu.memory_space<vmem>>, vector<8x128xf32>,
    } else {
    }
    %c0_i32_2 = arith.constant 0 : i32
    %7 = arith.cmpi eq, %arg0, %c0_i32_2 : i32
    %8 = arith.extui %7 : i1 to i32
    %c0_i32_3 = arith.constant 0 : i32
    %9 = arith.cmpi ne, %8, %c0_i32_3 : i32
    scf.if %9 {
      %c0 = arith.constant 0 : index
      %c0_10 = arith.constant 0 : index
      %23 = vector.load %arg2[%c0, %c0_10] : memref<256x1024xbf16, #tpu.memory_space<vmem>>, vector<256x1024xbf16>
      %c0_11 = arith.constant 0 : index
      %c0_12 = arith.constant 0 : index
      %24 = vector.load %arg12[%c0_11, %c0_12] : memref<1024x128xbf16, #tpu.memory_space<vmem>>, vector<1024x128xbf16>
      %cst = arith.constant dense<0.000000e+00> : vector<256x128xf32>
      %25 = tpu.matmul %23, %24, %cst {dimension_numbers = #tpu.dot_dimension_numbers<[1], [0], [0], [1], [0, 0, 1, 1], [], []>} : vector<256x1024xbf16>, vector<1024x128xbf16>, vector<256x128xf32> -> vector<256x128xf32>
      %c0_13 = arith.constant 0 : index
      %c0_14 = arith.constant 0 : index
      %26 = vector.load %arg5[%c0_13, %c0_14] : memref<1x128xf32, #tpu.memory_space<vmem>>, vector<1x128xf32>
      %27 = vector.broadcast %26 : vector<1x128xf32> to vector<256x128xf32>
      %28 = arith.addf %25, %27 : vector<256x128xf32>
      %cst_15 = arith.constant 0.000000e+00 : f32
      %29 = vector.broadcast %cst_15 : f32 to vector<256x128xf32>
      %30 = arith.cmpf ogt, %28, %29 : vector<256x128xf32>
      %cst_16 = arith.constant 0.00999999977 : f32
      %31 = vector.broadcast %cst_16 : f32 to vector<256x128xf32>
      %32 = arith.mulf %31, %28 : vector<256x128xf32>
      %33 = arith.select %30, %28, %32 : vector<256x128xi1>, vector<256x128xf32>
      %34 = arith.index_cast %1 : i32 to index
      %c0_17 = arith.constant 0 : index
      %35 = vector.load %arg13[%34, %c0_17] : memref<1024x128xf32, #tpu.memory_space<vmem>>, vector<256x128xf32>
      tpu.vector_store %arg13[%34, %c0_17], %33 {strides = array<i32>} : memref<1024x128xf32, #tpu.memory_space<vmem>>, vector<256x128xf32>,
    } else {
    }
    %c1_i32 = arith.constant 1 : i32
    %10 = arith.cmpi eq, %arg0, %c1_i32 : i32
    %c0_i32_4 = arith.constant 0 : i32
    %11 = arith.cmpi eq, %arg1, %c0_i32_4 : i32
    %12 = arith.andi %10, %11 : i1
    %13 = arith.extui %12 : i1 to i32
    %c0_i32_5 = arith.constant 0 : i32
    %14 = arith.cmpi ne, %13, %c0_i32_5 : i32
    scf.if %14 {
      %c0 = arith.constant 0 : index
      %c0_10 = arith.constant 0 : index
      %23 = vector.load %arg13[%c0, %c0_10] : memref<1024x128xf32, #tpu.memory_space<vmem>>, vector<1024x128xf32>
      %c0_11 = arith.constant 0 : index
      %c0_12 = arith.constant 0 : index
      %24 = vector.load %arg6[%c0_11, %c0_12] : memref<128x128xf32, #tpu.memory_space<vmem>>, vector<128x128xf32>
      %cst = arith.constant dense<0.000000e+00> : vector<1024x128xf32>
      %25 = tpu.matmul %23, %24, %cst {dimension_numbers = #tpu.dot_dimension_numbers<[1], [0], [0], [1], [0, 0, 1, 1], [], []>} : vector<1024x128xf32>, vector<128x128xf32>, vector<1024x128xf32> -> vector<1024x128xf32>
      %26 = arith.truncf %25 : vector<1024x128xf32> to vector<1024x128xbf16>
      %c0_13 = arith.constant 0 : index
      %c0_14 = arith.constant 0 : index
      %27 = vector.load %arg14[%c0_13, %c0_14] : memref<1024x128xbf16, #tpu.memory_space<vmem>>, vector<1024x128xbf16>
      tpu.vector_store %arg14[%c0_13, %c0_14], %26 {strides = array<i32>} : memref<1024x128xbf16, #tpu.memory_space<vmem>>, vector<1024x128xbf16>,
    } else {
    }
    %c1_i32_6 = arith.constant 1 : i32
    %15 = arith.cmpi eq, %arg0, %c1_i32_6 : i32
    %16 = arith.extui %15 : i1 to i32
    %c0_i32_7 = arith.constant 0 : i32
    %17 = arith.cmpi ne, %16, %c0_i32_7 : i32
    scf.if %17 {
      %c0 = arith.constant 0 : index
      %c0_10 = arith.constant 0 : index
      %23 = vector.load %arg2[%c0, %c0_10] : memref<256x1024xbf16, #tpu.memory_space<vmem>>, vector<256x1024xbf16>
      %c0_11 = arith.constant 0 : index
      %c0_12 = arith.constant 0 : index
      %24 = vector.load %arg14[%c0_11, %c0_12] : memref<1024x128xbf16, #tpu.memory_space<vmem>>, vector<1024x128xbf16>
      %cst = arith.constant dense<0.000000e+00> : vector<256x128xf32>
      %25 = tpu.matmul %23, %24, %cst {dimension_numbers = #tpu.dot_dimension_numbers<[1], [0], [0], [1], [0, 0, 1, 1], [], []>} : vector<256x1024xbf16>, vector<1024x128xbf16>, vector<256x128xf32> -> vector<256x128xf32>
      %c0_13 = arith.constant 0 : index
      %c0_14 = arith.constant 0 : index
      %26 = vector.load %arg7[%c0_13, %c0_14] : memref<1x128xf32, #tpu.memory_space<vmem>>, vector<1x128xf32>
      %27 = vector.broadcast %26 : vector<1x128xf32> to vector<256x128xf32>
      %28 = arith.addf %25, %27 : vector<256x128xf32>
      %cst_15 = arith.constant 0.000000e+00 : f32
      %29 = vector.broadcast %cst_15 : f32 to vector<256x128xf32>
      %30 = arith.cmpf ogt, %28, %29 : vector<256x128xf32>
      %cst_16 = arith.constant 0.00999999977 : f32
      %31 = vector.broadcast %cst_16 : f32 to vector<256x128xf32>
      %32 = arith.mulf %31, %28 : vector<256x128xf32>
      %33 = arith.select %30, %28, %32 : vector<256x128xi1>, vector<256x128xf32>
      %c0_17 = arith.constant 0 : index
      %c0_18 = arith.constant 0 : index
      %34 = vector.load %arg15[%c0_17, %c0_18] : memref<8x128xf32, #tpu.memory_space<vmem>>, vector<8x128xf32>
      %c0_19 = arith.constant 0 : index
      %c0_20 = arith.constant 0 : index
      %35 = vector.load %arg8[%c0_19, %c0_20] : memref<8x256xf32, #tpu.memory_space<vmem>>, vector<8x256xf32>
      %cst_21 = arith.constant dense<0.000000e+00> : vector<8x128xf32>
      %36 = tpu.matmul %35, %33, %cst_21 {dimension_numbers = #tpu.dot_dimension_numbers<[1], [0], [0], [1], [0, 0, 1, 1], [], []>} : vector<8x256xf32>, vector<256x128xf32>, vector<8x128xf32> -> vector<8x128xf32>
      %37 = arith.addf %34, %36 : vector<8x128xf32>
      %c0_22 = arith.constant 0 : index
      %c0_23 = arith.constant 0 : index
      %38 = vector.load %arg15[%c0_22, %c0_23] : memref<8x128xf32, #tpu.memory_space<vmem>>, vector<8x128xf32>
      tpu.vector_store %arg15[%c0_22, %c0_23], %37 {strides = array<i32>} : memref<8x128xf32, #tpu.memory_space<vmem>>, vector<8x128xf32>,
    } else {
    }
    %c1_i32_8 = arith.constant 1 : i32
    %18 = arith.cmpi eq, %arg0, %c1_i32_8 : i32
    %c3_i32 = arith.constant 3 : i32
    %19 = arith.cmpi eq, %arg1, %c3_i32 : i32
    %20 = arith.andi %18, %19 : i1
    %21 = arith.extui %20 : i1 to i32
    %c0_i32_9 = arith.constant 0 : i32
    %22 = arith.cmpi ne, %21, %c0_i32_9 : i32
    scf.if %22 {
      %c0 = arith.constant 0 : index
      %c0_10 = arith.constant 0 : index
      %23 = vector.load %arg15[%c0, %c0_10] : memref<8x128xf32, #tpu.memory_space<vmem>>, vector<8x128xf32>
      %c0_11 = arith.constant 0 : index
      %c0_12 = arith.constant 0 : index
      %24 = vector.load %arg9[%c0_11, %c0_12] : memref<128x128xf32, #tpu.memory_space<vmem>>, vector<128x128xf32>
      %cst = arith.constant dense<0.000000e+00> : vector<8x128xf32>
      %25 = tpu.matmul %23, %24, %cst {dimension_numbers = #tpu.dot_dimension_numbers<[1], [0], [0], [1], [0, 0, 1, 1], [], []>} : vector<8x128xf32>, vector<128x128xf32>, vector<8x128xf32> -> vector<8x128xf32>
      %c0_13 = arith.constant 0 : index
      %c0_14 = arith.constant 0 : index
      %26 = vector.load %arg10[%c0_13, %c0_14] : memref<1x128xf32, #tpu.memory_space<vmem>>, vector<1x128xf32>
      %27 = vector.broadcast %26 : vector<1x128xf32> to vector<8x128xf32>
      %28 = arith.addf %25, %27 : vector<8x128xf32>
      %c0_15 = arith.constant 0 : index
      %c0_16 = arith.constant 0 : index
      %29 = vector.load %arg11[%c0_15, %c0_16] : memref<8x128xf32, #tpu.memory_space<vmem>>, vector<8x128xf32>
      tpu.vector_store %arg11[%c0_15, %c0_16], %28 {strides = array<i32>} : memref<8x128xf32, #tpu.memory_space<vmem>>, vector<8x128xf32>,
    } else {
    }
    return
  }
  func.func @transform_0(%arg0: i32, %arg1: i32) -> (i32, i32) {
    %c0_i32 = arith.constant 0 : i32
    %c0_i32_0 = arith.constant 0 : i32
    return %arg1, %c0_i32 : i32, i32
  }
  func.func @transform_1(%arg0: i32, %arg1: i32) -> (i32, i32) {
    %c0_i32 = arith.constant 0 : i32
    %c0_i32_0 = arith.constant 0 : i32
    %c0_i32_1 = arith.constant 0 : i32
    return %c0_i32, %c0_i32_0 : i32, i32
  }
  func.func @transform_2(%arg0: i32, %arg1: i32) -> (i32, i32) {
    %c0_i32 = arith.constant 0 : i32
    %c0_i32_0 = arith.constant 0 : i32
    %c0_i32_1 = arith.constant 0 : i32
    return %c0_i32, %c0_i32_0 : i32, i32
  }
  func.func @transform_3(%arg0: i32, %arg1: i32) -> (i32, i32) {
    %c0_i32 = arith.constant 0 : i32
    %c0_i32_0 = arith.constant 0 : i32
    %c0_i32_1 = arith.constant 0 : i32
    return %c0_i32, %c0_i32_0 : i32, i32
  }
  func.func @transform_4(%arg0: i32, %arg1: i32) -> (i32, i32) {
    %c0_i32 = arith.constant 0 : i32
    %c0_i32_0 = arith.constant 0 : i32
    %c0_i32_1 = arith.constant 0 : i32
    return %c0_i32, %c0_i32_0 : i32, i32
  }
  func.func @transform_5(%arg0: i32, %arg1: i32) -> (i32, i32) {
    %c0_i32 = arith.constant 0 : i32
    %c0_i32_0 = arith.constant 0 : i32
    %c0_i32_1 = arith.constant 0 : i32
    return %c0_i32, %c0_i32_0 : i32, i32
  }
  func.func @transform_6(%arg0: i32, %arg1: i32) -> (i32, i32) {
    %c0_i32 = arith.constant 0 : i32
    %c0_i32_0 = arith.constant 0 : i32
    return %c0_i32, %arg1 : i32, i32
  }
  func.func @transform_7(%arg0: i32, %arg1: i32) -> (i32, i32) {
    %c0_i32 = arith.constant 0 : i32
    %c0_i32_0 = arith.constant 0 : i32
    %c0_i32_1 = arith.constant 0 : i32
    return %c0_i32, %c0_i32_0 : i32, i32
  }
  func.func @transform_8(%arg0: i32, %arg1: i32) -> (i32, i32) {
    %c0_i32 = arith.constant 0 : i32
    %c0_i32_0 = arith.constant 0 : i32
    %c0_i32_1 = arith.constant 0 : i32
    return %c0_i32, %c0_i32_0 : i32, i32
  }
  func.func @transform_9(%arg0: i32, %arg1: i32) -> (i32, i32) {
    %c0_i32 = arith.constant 0 : i32
    %c0_i32_0 = arith.constant 0 : i32
    %c0_i32_1 = arith.constant 0 : i32
    return %c0_i32, %c0_i32_0 : i32, i32
  }
}

</mosaic_0001>

<llo_original>
// kernel: tpu_custom_call.1
$region0: #{tpu_custom_call.1}
  #allocation0 [shape = 'u32[]', space=smem, size = 0x4, offset = 0x4, fixed_abs, tag = 'smem constant byte address 0x4 - core index']
  #allocation1 [shape = 'u32[144,128]{1,0:T(1,128)}', space=vmem, size = 0x12000, scoped, tag = 'internal scratch']
  #allocation2 [shape = 'bf16[1024,128]{1,0:T(16,128)(2,1)}', space=vmem, size = 0x40000, scoped, tag = 'scratch operand']
  #allocation3 [shape = 'f32[1024,128]{1,0:T(8,128)}', space=vmem, size = 0x80000, scoped, tag = 'scratch operand']
  #allocation4 [shape = 'bf16[1024,128]{1,0:T(16,128)(2,1)}', space=vmem, size = 0x40000, scoped, tag = 'scratch operand']
  #allocation5 [shape = 'f32[8,128]{1,0:T(8,128)}', space=vmem, size = 0x1000, scoped, tag = 'scratch operand']
  %s0 = inlined_call_operand.hbm [shape: bf16[1024,1024], index: 0, kind: input, shape index: {}]
  %s1 = inlined_call_operand.hbm [shape: f32[1024,128], index: 1, kind: input, shape index: {}]
  %s2 = inlined_call_operand.hbm [shape: f32[128,128], index: 2, kind: input, shape index: {}]
  %s3 = inlined_call_operand.hbm [shape: f32[1,128], index: 3, kind: input, shape index: {}]
  %s4 = inlined_call_operand.hbm [shape: f32[128,128], index: 4, kind: input, shape index: {}]
  %s5 = inlined_call_operand.hbm [shape: f32[1,128], index: 5, kind: input, shape index: {}]
  %s6 = inlined_call_operand.hbm [shape: f32[8,1024], index: 6, kind: input, shape index: {}]
  %s7 = inlined_call_operand.hbm [shape: f32[128,128], index: 7, kind: input, shape index: {}]
  %s8 = inlined_call_operand.hbm [shape: f32[1,128], index: 8, kind: input, shape index: {}]
  %s9 = inlined_call_operand.hbm [shape: f32[8,128], index: 9, kind: output, shape index: {}]
  %s10 = sld [smem:[#allocation0]]
  $region125: #{tpu_custom_call.1} parent=0
    _
  %s12 = ssub.s32 1, %s10
  %s13 = scalar_select 0, %s12, %s10
  $region1: #{tpu_custom_call.1} parent=0
    #allocation6 [shape = 'u8[1048576]{0}', space=vmem, size = 0x100000, scoped, tag = 'input window, operand 0']
    #allocation7 [shape = 's32[2]{0}', space=sflag, size = 0x8, scoped, tag = 'scoped memory for tpu_custom_call.1']
    #allocation8 [shape = 's32[2]{0}', space=sflag, size = 0x8, scoped, tag = 'scoped memory for tpu_custom_call.1']
    #allocation9 [shape = 'u8[524288]{0}', space=vmem, size = 0x80000, scoped, tag = 'input window, operand 1, single buffered']
    #allocation10 [shape = 's32[1]{0}', space=sflag, size = 0x4, scoped, tag = 'scoped memory for tpu_custom_call.1']
    #allocation11 [shape = 'u8[65536]{0}', space=vmem, size = 0x10000, scoped, tag = 'input window, operand 2, single buffered']
    #allocation12 [shape = 'u8[512]{0}', space=vmem, size = 0x400, scoped, tag = 'input window, operand 3, single buffered']
    #allocation13 [shape = 's32[1]{0}', space=sflag, size = 0x4, scoped, tag = 'scoped memory for tpu_custom_call.1']
    #allocation14 [shape = 'u8[65536]{0}', space=vmem, size = 0x10000, scoped, tag = 'input window, operand 4, single buffered']
    #allocation15 [shape = 'u8[512]{0}', space=vmem, size = 0x400, scoped, tag = 'input window, operand 5, single buffered']
    #allocation16 [shape = 's32[1]{0}', space=sflag, size = 0x4, scoped, tag = 'scoped memory for tpu_custom_call.1']
    #allocation17 [shape = 'u8[16384]{0}', space=vmem, size = 0x4000, scoped, tag = 'input window, operand 6']
    #allocation18 [shape = 'u8[65536]{0}', space=vmem, size = 0x10000, scoped, tag = 'input window, operand 7, single buffered']
    #allocation19 [shape = 'u8[512]{0}', space=vmem, size = 0x400, scoped, tag = 'input window, operand 8, single buffered']
    #allocation20 [shape = 'u8[4096]{0}', space=vmem, size = 0x1000, scoped, tag = 'output window, operand 0, single buffered']
    %14 = vsyncpa [#allocation7], 0
    %s15 = scalar_lea.sflag [#allocation7], 1
    %16 = vsyncpa %s15, 0
    %17 = vsyncpa [#allocation10], 0
    %18 = vsyncpa [#allocation13], 0
    %19 = vsyncpa [#allocation16], 0
    %20 = vsyncpa [#allocation8], 0
    loop: start=0, step=1, limit=10
    $region2: #{tpu_custom_call.1} parent=1 // loop_pre_header
      _
    $region3: #{tpu_custom_call.1} parent=1 // loop_header
      %s22 = sphi 0, %s26
      %p23 = scmp.ge.s32.totalorder %s22, 10
      %s29 = sphi 0, %s41
      %s30 = sphi 0, %s37
      %s31 = sphi 0, %s29
      %s32 = sphi 0, %s30
      %s33 = sphi 0, %s31
      %s34 = sphi 0, %s32
      %s44 = sphi 0, %s46
      %s47 = sphi 0, %s44
      %s48 = sphi 0, %s47
      %s64 = sphi 0, %s48
      %s68 = sphi 0, %s68
      %s70 = sphi 0, %s68
      %s71 = sphi 0, %s70
      %s85 = sphi 0, %s71
      %s89 = sphi 0, %s89
      %s91 = sphi 0, %s89
      %s92 = sphi 0, %s91
      %s106 = sphi 0, %s92
      %s110 = sphi 0, %s110
      %s112 = sphi 0, %s110
      %s113 = sphi 0, %s112
      %s127 = sphi 0, %s113
      %s131 = sphi 0, %s131
      %s133 = sphi 0, %s131
      %s134 = sphi 0, %s133
      %s148 = sphi 0, %s134
      %s152 = sphi 0, %s152
      %s154 = sphi 0, %s152
      %s155 = sphi 0, %s154
      %s169 = sphi 0, %s155
      %s175 = sphi 0, %s177
      %s178 = sphi 0, %s175
      %s179 = sphi 0, %s178
      %s195 = sphi 0, %s179
      %s199 = sphi 0, %s199
      %s201 = sphi 0, %s199
      %s202 = sphi 0, %s201
      %s216 = sphi 0, %s202
      %s220 = sphi 0, %s220
      %s222 = sphi 0, %s220
      %s223 = sphi 0, %s222
      %s237 = sphi 0, %s223
      %s241 = sphi 0, %s241
      %s243 = sphi 0, %s241
      %s244 = sphi 0, %s243
      %s258 = sphi 0, %s244
    $region4: #{tpu_custom_call.1} parent=1 // loop_header_branch
      %25 = sbr.rel (%p23) target = $region8
    $region5: #{tpu_custom_call.1} parent=1 // loop_body
      %s27 = ssub.s32 %s22, 1
      %s28 = ssub.s32 %s22, 2
      %s35 = sadd.s32 1, %s30
      %p36 = scmp.ge.s32.totalorder %s35, 4
      %s37 = scalar_select %p36, 0, %s35
      %s38 = sadd.s32 1, %s29
      %s39 = scalar_select %p36, %s38, %s29
      %p40 = scmp.ge.s32.totalorder %s39, 2
      %s41 = scalar_select %p40, 0, %s39
      %s42 = ssub.s32 %s30, %s37
      %p43 = scmp.eq.s32.totalorder %s42, 0
      %s45 = sadd.s32 %s44, 1
      %s46 = scalar_select %p43, %s44, %s45
      %p49 = pneg %p43
      %p50 = scmp.eq.s32.totalorder %s22, 7
      %p51 = por %p49, %p50
      %p52 = scmp.ne.s32.totalorder %s44, %s47
      %p53 = scmp.eq.s32.totalorder %s22, 0
      %p54 = por %p52, %p53
      %p55 = scmp.ne.s32.totalorder %s44, %s47
      %p56 = scmp.eq.s32.totalorder %s27, 7
      %p57 = por %p55, %p56
      %p58 = scmp.ne.s32.totalorder %s47, %s48
      %p59 = scmp.eq.s32.totalorder %s27, 0
      %p60 = por %p58, %p59
      %p61 = scmp.ne.s32.totalorder %s47, %s48
      %p62 = scmp.eq.s32.totalorder %s28, 7
      %p63 = por %p61, %p62
      %p65 = scmp.ne.s32.totalorder %s48, %s64
      %p66 = scmp.eq.s32.totalorder %s28, 0
      %p67 = por %p65, %p66
      %s69 = sadd.s32 %s68, 1
      %p72 = scmp.eq.s32.totalorder %s22, 7
      %p73 = scmp.ne.s32.totalorder %s68, %s70
      %p74 = scmp.eq.s32.totalorder %s22, 0
      %p75 = por %p73, %p74
      %p76 = scmp.ne.s32.totalorder %s68, %s70
      %p77 = scmp.eq.s32.totalorder %s27, 7
      %p78 = por %p76, %p77
      %p79 = scmp.ne.s32.totalorder %s70, %s71
      %p80 = scmp.eq.s32.totalorder %s27, 0
      %p81 = por %p79, %p80
      %p82 = scmp.ne.s32.totalorder %s70, %s71
      %p83 = scmp.eq.s32.totalorder %s28, 7
      %p84 = por %p82, %p83
      %p86 = scmp.ne.s32.totalorder %s71, %s85
      %p87 = scmp.eq.s32.totalorder %s28, 0
      %p88 = por %p86, %p87
      %s90 = sadd.s32 %s89, 1
      %p93 = scmp.eq.s32.totalorder %s22, 7
      %p94 = scmp.ne.s32.totalorder %s89, %s91
      %p95 = scmp.eq.s32.totalorder %s22, 0
      %p96 = por %p94, %p95
      %p97 = scmp.ne.s32.totalorder %s89, %s91
      %p98 = scmp.eq.s32.totalorder %s27, 7
      %p99 = por %p97, %p98
      %p100 = scmp.ne.s32.totalorder %s91, %s92
      %p101 = scmp.eq.s32.totalorder %s27, 0
      %p102 = por %p100, %p101
      %p103 = scmp.ne.s32.totalorder %s91, %s92
      %p104 = scmp.eq.s32.totalorder %s28, 7
      %p105 = por %p103, %p104
      %p107 = scmp.ne.s32.totalorder %s92, %s106
      %p108 = scmp.eq.s32.totalorder %s28, 0
      %p109 = por %p107, %p108
      %s111 = sadd.s32 %s110, 1
      %p114 = scmp.eq.s32.totalorder %s22, 7
      %p115 = scmp.ne.s32.totalorder %s110, %s112
      %p116 = scmp.eq.s32.totalorder %s22, 0
      %p117 = por %p115, %p116
      %p118 = scmp.ne.s32.totalorder %s110, %s112
      %p119 = scmp.eq.s32.totalorder %s27, 7
      %p120 = por %p118, %p119
      %p121 = scmp.ne.s32.totalorder %s112, %s113
      %p122 = scmp.eq.s32.totalorder %s27, 0
      %p123 = por %p121, %p122
      %p124 = scmp.ne.s32.totalorder %s112, %s113
      %p125 = scmp.eq.s32.totalorder %s28, 7
      %p126 = por %p124, %p125
      %p128 = scmp.ne.s32.totalorder %s113, %s127
      %p129 = scmp.eq.s32.totalorder %s28, 0
      %p130 = por %p128, %p129
      %s132 = sadd.s32 %s131, 1
      %p135 = scmp.eq.s32.totalorder %s22, 7
      %p136 = scmp.ne.s32.totalorder %s131, %s133
      %p137 = scmp.eq.s32.totalorder %s22, 0
      %p138 = por %p136, %p137
      %p139 = scmp.ne.s32.totalorder %s131, %s133
      %p140 = scmp.eq.s32.totalorder %s27, 7
      %p141 = por %p139, %p140
      %p142 = scmp.ne.s32.totalorder %s133, %s134
      %p143 = scmp.eq.s32.totalorder %s27, 0
      %p144 = por %p142, %p143
      %p145 = scmp.ne.s32.totalorder %s133, %s134
      %p146 = scmp.eq.s32.totalorder %s28, 7
      %p147 = por %p145, %p146
      %p149 = scmp.ne.s32.totalorder %s134, %s148
      %p150 = scmp.eq.s32.totalorder %s28, 0
      %p151 = por %p149, %p150
      %s153 = sadd.s32 %s152, 1
      %p156 = scmp.eq.s32.totalorder %s22, 7
      %p157 = scmp.ne.s32.totalorder %s152, %s154
      %p158 = scmp.eq.s32.totalorder %s22, 0
      %p159 = por %p157, %p158
      %p160 = scmp.ne.s32.totalorder %s152, %s154
      %p161 = scmp.eq.s32.totalorder %s27, 7
      %p162 = por %p160, %p161
      %p163 = scmp.ne.s32.totalorder %s154, %s155
      %p164 = scmp.eq.s32.totalorder %s27, 0
      %p165 = por %p163, %p164
      %p166 = scmp.ne.s32.totalorder %s154, %s155
      %p167 = scmp.eq.s32.totalorder %s28, 7
      %p168 = por %p166, %p167
      %p170 = scmp.ne.s32.totalorder %s155, %s169
      %p171 = scmp.eq.s32.totalorder %s28, 0
      %p172 = por %p170, %p171
      %s173 = ssub.s32 %s30, %s37
      %p174 = scmp.eq.s32.totalorder %s173, 0
      %s176 = sadd.s32 %s175, 1
      %s177 = scalar_select %p174, %s175, %s176
      %p180 = pneg %p174
      %p181 = scmp.eq.s32.totalorder %s22, 7
      %p182 = por %p180, %p181
      %p183 = scmp.ne.s32.totalorder %s175, %s178
      %p184 = scmp.eq.s32.totalorder %s22, 0
      %p185 = por %p183, %p184
      %p186 = scmp.ne.s32.totalorder %s175, %s178
      %p187 = scmp.eq.s32.totalorder %s27, 7
      %p188 = por %p186, %p187
      %p189 = scmp.ne.s32.totalorder %s178, %s179
      %p190 = scmp.eq.s32.totalorder %s27, 0
      %p191 = por %p189, %p190
      %p192 = scmp.ne.s32.totalorder %s178, %s179
      %p193 = scmp.eq.s32.totalorder %s28, 7
      %p194 = por %p192, %p193
      %p196 = scmp.ne.s32.totalorder %s179, %s195
      %p197 = scmp.eq.s32.totalorder %s28, 0
      %p198 = por %p196, %p197
      %s200 = sadd.s32 %s199, 1
      %p203 = scmp.eq.s32.totalorder %s22, 7
      %p204 = scmp.ne.s32.totalorder %s199, %s201
      %p205 = scmp.eq.s32.totalorder %s22, 0
      %p206 = por %p204, %p205
      %p207 = scmp.ne.s32.totalorder %s199, %s201
      %p208 = scmp.eq.s32.totalorder %s27, 7
      %p209 = por %p207, %p208
      %p210 = scmp.ne.s32.totalorder %s201, %s202
      %p211 = scmp.eq.s32.totalorder %s27, 0
      %p212 = por %p210, %p211
      %p213 = scmp.ne.s32.totalorder %s201, %s202
      %p214 = scmp.eq.s32.totalorder %s28, 7
      %p215 = por %p213, %p214
      %p217 = scmp.ne.s32.totalorder %s202, %s216
      %p218 = scmp.eq.s32.totalorder %s28, 0
      %p219 = por %p217, %p218
      %s221 = sadd.s32 %s220, 1
      %p224 = scmp.eq.s32.totalorder %s22, 7
      %p225 = scmp.ne.s32.totalorder %s220, %s222
      %p226 = scmp.eq.s32.totalorder %s22, 0
      %p227 = por %p225, %p226
      %p228 = scmp.ne.s32.totalorder %s220, %s222
      %p229 = scmp.eq.s32.totalorder %s27, 7
      %p230 = por %p228, %p229
      %p231 = scmp.ne.s32.totalorder %s222, %s223
      %p232 = scmp.eq.s32.totalorder %s27, 0
      %p233 = por %p231, %p232
      %p234 = scmp.ne.s32.totalorder %s222, %s223
      %p235 = scmp.eq.s32.totalorder %s28, 7
      %p236 = por %p234, %p235
      %p238 = scmp.ne.s32.totalorder %s223, %s237
      %p239 = scmp.eq.s32.totalorder %s28, 0
      %p240 = por %p238, %p239
      %s242 = sadd.s32 %s241, 1
      %p245 = scmp.eq.s32.totalorder %s22, 7
      %p246 = scmp.ne.s32.totalorder %s241, %s243
      %p247 = scmp.eq.s32.totalorder %s22, 0
      %p248 = por %p246, %p247
      %p249 = scmp.ne.s32.totalorder %s241, %s243
      %p250 = scmp.eq.s32.totalorder %s27, 7
      %p251 = por %p249, %p250
      %p252 = scmp.ne.s32.totalorder %s243, %s244
      %p253 = scmp.eq.s32.totalorder %s27, 0
      %p254 = por %p252, %p253
      %p255 = scmp.ne.s32.totalorder %s243, %s244
      %p256 = scmp.eq.s32.totalorder %s28, 7
      %p257 = por %p255, %p256
      %p259 = scmp.ne.s32.totalorder %s244, %s258
      %p260 = scmp.eq.s32.totalorder %s28, 0
      %p261 = por %p259, %p260
      %p262 = scmp.le.s32.totalorder 1, %s22
      %p263 = scmp.lt.s32.totalorder %s22, 9
      %p264 = pnand %p262, %p263
      %p265 = pneg %p264
      // Predicated region
      $region9: #{tpu_custom_call.1} parent=5 // pred_check
        _
      $region10: #{tpu_custom_call.1} parent=5 // pred_check_branch
        %267 = sbr.rel (%p264) target = $region12
      $region11: #{tpu_custom_call.1} parent=5 // pred_region
        %s268 = ssub.s32 %s22, 1
        // Predicated region
        $region13: #{tpu_custom_call.1} parent=11 // pred_check
          %p269 = pneg %p81
        $region14: #{tpu_custom_call.1} parent=11 // pred_check_branch
          %271 = sbr.rel (%p269) target = $region16
        $region15: #{tpu_custom_call.1} parent=11 // pred_region
          %s273 = ssub.s32 16384, 16384
          %274 = vsyncadd [#allocation10], %s273
          %s275 = sshll.u32 [#allocation9], 4
          %s276 = int_to_ptr.vmem [resolvable:$true] %s275
          %281 = dma.hbm_to_vmem [thread:$0]  %s1, 16384, %s276, [#allocation10], 128, 128, 8
        $region16: #{tpu_custom_call.1} parent=11 // pred_fallthru
          _
        // Predicated region
        $region17: #{tpu_custom_call.1} parent=11 // pred_check
          %p282 = pneg %p102
        $region18: #{tpu_custom_call.1} parent=11 // pred_check_branch
          %284 = sbr.rel (%p282) target = $region20
        $region19: #{tpu_custom_call.1} parent=11 // pred_region
          %s286 = ssub.s32 2048, 2048
          %287 = vsyncadd [#allocation10], %s286
          %s288 = sshll.u32 [#allocation11], 4
          %s289 = int_to_ptr.vmem [resolvable:$true] %s288
          %294 = dma.hbm_to_vmem [thread:$0]  %s2, 2048, %s289, [#allocation10], 128, 128, 8
        $region20: #{tpu_custom_call.1} parent=11 // pred_fallthru
          _
        // Predicated region
        $region21: #{tpu_custom_call.1} parent=11 // pred_check
          %p295 = pneg %p123
        $region22: #{tpu_custom_call.1} parent=11 // pred_check_branch
          %297 = sbr.rel (%p295) target = $region24
        $region23: #{tpu_custom_call.1} parent=11 // pred_region
          %s299 = ssub.s32 16, 16
          %300 = vsyncadd [#allocation13], %s299
          %s302 = sshll.u32 [#allocation12], 4
          %s303 = int_to_ptr.vmem [resolvable:$true] %s302
          %305 = dma.hbm_to_vmem [thread:$0]  %s3, 16, %s303, [#allocation13]
        $region24: #{tpu_custom_call.1} parent=11 // pred_fallthru
          _
        // Predicated region
        $region25: #{tpu_custom_call.1} parent=11 // pred_check
          %p306 = pneg %p144
        $region26: #{tpu_custom_call.1} parent=11 // pred_check_branch
          %308 = sbr.rel (%p306) target = $region28
        $region27: #{tpu_custom_call.1} parent=11 // pred_region
          %s310 = ssub.s32 2048, 2048
          %311 = vsyncadd [#allocation13], %s310
          %s312 = sshll.u32 [#allocation14], 4
          %s313 = int_to_ptr.vmem [resolvable:$true] %s312
          %318 = dma.hbm_to_vmem [thread:$0]  %s4, 2048, %s313, [#allocation13], 128, 128, 8
        $region28: #{tpu_custom_call.1} parent=11 // pred_fallthru
          _
        // Predicated region
        $region29: #{tpu_custom_call.1} parent=11 // pred_check
          %p319 = pneg %p165
        $region30: #{tpu_custom_call.1} parent=11 // pred_check_branch
          %321 = sbr.rel (%p319) target = $region32
        $region31: #{tpu_custom_call.1} parent=11 // pred_region
          %s323 = ssub.s32 16, 16
          %324 = vsyncadd [#allocation16], %s323
          %s326 = sshll.u32 [#allocation15], 4
          %s327 = int_to_ptr.vmem [resolvable:$true] %s326
          %329 = dma.hbm_to_vmem [thread:$0]  %s5, 16, %s327, [#allocation16]
        $region32: #{tpu_custom_call.1} parent=11 // pred_fallthru
          _
        // Predicated region
        $region33: #{tpu_custom_call.1} parent=11 // pred_check
          %p330 = pneg %p212
        $region34: #{tpu_custom_call.1} parent=11 // pred_check_branch
          %332 = sbr.rel (%p330) target = $region36
        $region35: #{tpu_custom_call.1} parent=11 // pred_region
          %s334 = ssub.s32 2048, 2048
          %335 = vsyncadd [#allocation10], %s334
          %s336 = sshll.u32 [#allocation18], 4
          %s337 = int_to_ptr.vmem [resolvable:$true] %s336
          %342 = dma.hbm_to_vmem [thread:$0]  %s7, 2048, %s337, [#allocation10], 128, 128, 8
        $region36: #{tpu_custom_call.1} parent=11 // pred_fallthru
          _
        // Predicated region
        $region37: #{tpu_custom_call.1} parent=11 // pred_check
          %p343 = pneg %p233
        $region38: #{tpu_custom_call.1} parent=11 // pred_check_branch
          %345 = sbr.rel (%p343) target = $region40
        $region39: #{tpu_custom_call.1} parent=11 // pred_region
          %s347 = ssub.s32 16, 16
          %348 = vsyncadd [#allocation13], %s347
          %s350 = sshll.u32 [#allocation19], 4
          %s351 = int_to_ptr.vmem [resolvable:$true] %s350
          %353 = dma.hbm_to_vmem [thread:$0]  %s8, 16, %s351, [#allocation13]
        $region40: #{tpu_custom_call.1} parent=11 // pred_fallthru
          _
      $region12: #{tpu_custom_call.1} parent=5 // pred_fallthru
        _
      %p354 = scmp.lt.s32.totalorder %s22, 8
      // Predicated region
      $region41: #{tpu_custom_call.1} parent=5 // pred_check
        %p355 = pneg %p354
      $region42: #{tpu_custom_call.1} parent=5 // pred_check_branch
        %357 = sbr.rel (%p355) target = $region44
      $region43: #{tpu_custom_call.1} parent=5 // pred_region
        // Predicated region
        $region45: #{tpu_custom_call.1} parent=43 // pred_check
          %p358 = pneg %p54
        $region46: #{tpu_custom_call.1} parent=43 // pred_check_branch
          %360 = sbr.rel (%p358) target = $region48
        $region47: #{tpu_custom_call.1} parent=43 // pred_region
          %s361 = sand.u32 %s22, 1
          %s362 = scalar_lea.sflag [#allocation7], %s361
          %s363 = sand.u32 %s44, 1
          %s364 = smul.addr %s363, 1024
          %s365 = scalar_lea.vmem [#allocation6], %s364
          %s366 = smul.u32 32, %s30
          %s368 = ssub.s32 16384, 16384
          %369 = vsyncadd %s362, %s368
          %s370 = smul.addr %s366, 8
          %s371 = smul.addr %s370, 64
          %s372 = scalar_lea.hbm %s0, %s371
          %s373 = sshll.u32 %s365, 4
          %s374 = int_to_ptr.vmem [resolvable:$true] %s373
          %379 = dma.hbm_to_vmem [thread:$0]  %s372, 16384, %s374, %s362, 512, 512, 32
        $region48: #{tpu_custom_call.1} parent=43 // pred_fallthru
          _
        // Predicated region
        $region49: #{tpu_custom_call.1} parent=43 // pred_check
          %p380 = pneg %p185
        $region50: #{tpu_custom_call.1} parent=43 // pred_check_branch
          %382 = sbr.rel (%p380) target = $region52
        $region51: #{tpu_custom_call.1} parent=43 // pred_region
          %s383 = sand.u32 %s22, 1
          %s384 = scalar_lea.sflag [#allocation7], %s383
          %s385 = sand.u32 %s175, 1
          %s386 = smul.addr %s385, 16
          %s387 = scalar_lea.vmem [#allocation17], %s386
          %s388 = smul.u32 2, %s30
          %s390 = ssub.s32 256, 256
          %391 = vsyncadd %s384, %s390
          %s392 = smul.addr %s388, 128
          %s393 = scalar_lea.hbm %s6, %s392
          %s395 = sshll.u32 %s387, 4
          %s396 = int_to_ptr.vmem [resolvable:$true] %s395
          %398 = dma.hbm_to_vmem [thread:$0]  %s393, 256, %s396, %s384
        $region52: #{tpu_custom_call.1} parent=43 // pred_fallthru
          _
      $region44: #{tpu_custom_call.1} parent=5 // pred_fallthru
        _
      %p399 = scmp.le.s32.totalorder 1, %s22
      %p400 = scmp.lt.s32.totalorder %s22, 9
      %p401 = pnand %p399, %p400
      %p402 = pneg %p401
      // Predicated region
      $region53: #{tpu_custom_call.1} parent=5 // pred_check
        _
      $region54: #{tpu_custom_call.1} parent=5 // pred_check_branch
        %404 = sbr.rel (%p401) target = $region56
      $region55: #{tpu_custom_call.1} parent=5 // pred_region
        %s405 = ssub.s32 %s22, 1
        %s406 = sand.u32 %s27, 1
        %s407 = scalar_lea.sflag [#allocation7], %s406
        %s408 = sand.u32 %s47, 1
        %s409 = smul.addr %s408, 1024
        %s410 = scalar_lea.vmem [#allocation6], %s409
        // Predicated region
        $region57: #{tpu_custom_call.1} parent=55 // pred_check
          %p411 = pneg %p60
        $region58: #{tpu_custom_call.1} parent=55 // pred_check_branch
          %413 = sbr.rel (%p411) target = $region60
        $region59: #{tpu_custom_call.1} parent=55 // pred_region
          %414 = dma.done %s407, 16384
        $region60: #{tpu_custom_call.1} parent=55 // pred_fallthru
          _
        // Predicated region
        $region61: #{tpu_custom_call.1} parent=55 // pred_check
          %p415 = pneg %p81
        $region62: #{tpu_custom_call.1} parent=55 // pred_check_branch
          %417 = sbr.rel (%p415) target = $region64
        $region63: #{tpu_custom_call.1} parent=55 // pred_region
          %418 = dma.done [#allocation10], 16384
        $region64: #{tpu_custom_call.1} parent=55 // pred_fallthru
          _
        // Predicated region
        $region65: #{tpu_custom_call.1} parent=55 // pred_check
          %p419 = pneg %p102
        $region66: #{tpu_custom_call.1} parent=55 // pred_check_branch
          %421 = sbr.rel (%p419) target = $region68
        $region67: #{tpu_custom_call.1} parent=55 // pred_region
          %422 = dma.done [#allocation10], 2048
        $region68: #{tpu_custom_call.1} parent=55 // pred_fallthru
          _
        // Predicated region
        $region69: #{tpu_custom_call.1} parent=55 // pred_check
          %p423 = pneg %p123
        $region70: #{tpu_custom_call.1} parent=55 // pred_check_branch
          %425 = sbr.rel (%p423) target = $region72
        $region71: #{tpu_custom_call.1} parent=55 // pred_region
          %426 = dma.done [#allocation13], 16
        $region72: #{tpu_custom_call.1} parent=55 // pred_fallthru
          _
        // Predicated region
        $region73: #{tpu_custom_call.1} parent=55 // pred_check
          %p427 = pneg %p144
        $region74: #{tpu_custom_call.1} parent=55 // pred_check_branch
          %429 = sbr.rel (%p427) target = $region76
        $region75: #{tpu_custom_call.1} parent=55 // pred_region
          %430 = dma.done [#allocation13], 2048
        $region76: #{tpu_custom_call.1} parent=55 // pred_fallthru
          _
        // Predicated region
        $region77: #{tpu_custom_call.1} parent=55 // pred_check
          %p431 = pneg %p165
        $region78: #{tpu_custom_call.1} parent=55 // pred_check_branch
          %433 = sbr.rel (%p431) target = $region80
        $region79: #{tpu_custom_call.1} parent=55 // pred_region
          %434 = dma.done [#allocation16], 16
        $region80: #{tpu_custom_call.1} parent=55 // pred_fallthru
          _
        %s435 = sand.u32 %s27, 1
        %s436 = scalar_lea.sflag [#allocation7], %s435
        %s437 = sand.u32 %s178, 1
        %s438 = smul.addr %s437, 16
        %s439 = scalar_lea.vmem [#allocation17], %s438
        // Predicated region
        $region81: #{tpu_custom_call.1} parent=55 // pred_check
          %p440 = pneg %p191
        $region82: #{tpu_custom_call.1} parent=55 // pred_check_branch
          %442 = sbr.rel (%p440) target = $region84
        $region83: #{tpu_custom_call.1} parent=55 // pred_region
          %443 = dma.done %s436, 256
        $region84: #{tpu_custom_call.1} parent=55 // pred_fallthru
          _
        // Predicated region
        $region85: #{tpu_custom_call.1} parent=55 // pred_check
          %p444 = pneg %p212
        $region86: #{tpu_custom_call.1} parent=55 // pred_check_branch
          %446 = sbr.rel (%p444) target = $region88
        $region87: #{tpu_custom_call.1} parent=55 // pred_region
          %447 = dma.done [#allocation10], 2048
        $region88: #{tpu_custom_call.1} parent=55 // pred_fallthru
          _
        // Predicated region
        $region89: #{tpu_custom_call.1} parent=55 // pred_check
          %p448 = pneg %p233
        $region90: #{tpu_custom_call.1} parent=55 // pred_check_branch
          %450 = sbr.rel (%p448) target = $region92
        $region91: #{tpu_custom_call.1} parent=55 // pred_region
          %451 = dma.done [#allocation13], 16
        $region92: #{tpu_custom_call.1} parent=55 // pred_fallthru
          _
        %s452 = sand.u32 %s27, 1
        %s453 = scalar_lea.sflag [#allocation7], %s452
        %s454 = sand.u32 %s47, 1
        %s455 = smul.addr %s454, 1024
        %s456 = scalar_lea.vmem [#allocation6], %s455
        %p457 = pneg %p60
        %p458 = pneg %p57
        %p459 = pneg %p81
        %p460 = pneg %p78
        %p461 = pneg %p102
        %p462 = pneg %p99
        %p463 = pneg %p123
        %p464 = pneg %p120
        %p465 = pneg %p144
        %p466 = pneg %p141
        %p467 = pneg %p165
        %p468 = pneg %p162
        %s469 = sand.u32 %s27, 1
        %s470 = scalar_lea.sflag [#allocation7], %s469
        %s471 = sand.u32 %s178, 1
        %s472 = smul.addr %s471, 16
        %s473 = scalar_lea.vmem [#allocation17], %s472
        %p474 = pneg %p191
        %p475 = pneg %p188
        %p476 = pneg %p212
        %p477 = pneg %p209
        %p478 = pneg %p233
        %p479 = pneg %p230
        %p480 = pneg %p254
        %p481 = pneg %p251
        %s482 = smul.u32 32, %s32
        %s483 = smul.u32 2, %s32
        %s485 = smul.u32 %s32, 256
        %p486 = scmp.eq.s32.totalorder %s31, 0
        %p487 = scmp.eq.s32.totalorder %s32, 0
        %p488 = pnand %p486, %p487
        %p489 = pneg %p488
        // Predicated region
        $region93: #{tpu_custom_call.1} parent=55 // pred_check
          _
        $region94: #{tpu_custom_call.1} parent=55 // pred_check_branch
          %491 = sbr.rel (%p488) target = $region96
        $region95: #{tpu_custom_call.1} parent=55 // pred_region
          %v492 = vld [vmem:[#allocation9] sm:$0xff]
          %v493 = vld [vmem:[#allocation9 + $0x8] sm:$0xff]
          %v494 = vld [vmem:[#allocation9 + $0x10] sm:$0xff]
          %v495 = vld [vmem:[#allocation9 + $0x18] sm:$0xff]
          %v496 = vld [vmem:[#allocation9 + $0x20] sm:$0xff]
          %v497 = vld [vmem:[#allocation9 + $0x28] sm:$0xff]
          %v498 = vld [vmem:[#allocation9 + $0x30] sm:$0xff]
          %v499 = vld [vmem:[#allocation9 + $0x38] sm:$0xff]
          %v500 = vld [vmem:[#allocation9 + $0x40] sm:$0xff]
          %v501 = vld [vmem:[#allocation9 + $0x48] sm:$0xff]
          %v502 = vld [vmem:[#allocation9 + $0x50] sm:$0xff]
          %v503 = vld [vmem:[#allocation9 + $0x58] sm:$0xff]
          %v504 = vld [vmem:[#allocation9 + $0x60] sm:$0xff]
          %v505 = vld [vmem:[#allocation9 + $0x68] sm:$0xff]
          %v506 = vld [vmem:[#allocation9 + $0x70] sm:$0xff]
          %v507 = vld [vmem:[#allocation9 + $0x78] sm:$0xff]
          %v508 = vld [vmem:[#allocation9 + $0x80] sm:$0xff]
          %v509 = vld [vmem:[#allocation9 + $0x88] sm:$0xff]
          %v510 = vld [vmem:[#allocation9 + $0x90] sm:$0xff]
          %v511 = vld [vmem:[#allocation9 + $0x98] sm:$0xff]
          %v512 = vld [vmem:[#allocation9 + $0xa0] sm:$0xff]
          %v513 = vld [vmem:[#allocation9 + $0xa8] sm:$0xff]
          %v514 = vld [vmem:[#allocation9 + $0xb0] sm:$0xff]
          %v515 = vld [vmem:[#allocation9 + $0xb8] sm:$0xff]
          %v516 = vld [vmem:[#allocation9 + $0xc0] sm:$0xff]
          %v517 = vld [vmem:[#allocation9 + $0xc8] sm:$0xff]
          %v518 = vld [vmem:[#allocation9 + $0xd0] sm:$0xff]
          %v519 = vld [vmem:[#allocation9 + $0xd8] sm:$0xff]
          %v520 = vld [vmem:[#allocation9 + $0xe0] sm:$0xff]
          %v521 = vld [vmem:[#allocation9 + $0xe8] sm:$0xff]
          %v522 = vld [vmem:[#allocation9 + $0xf0] sm:$0xff]
          %v523 = vld [vmem:[#allocation9 + $0xf8] sm:$0xff]
          %v524 = vld [vmem:[#allocation9 + $0x100] sm:$0xff]
          %v525 = vld [vmem:[#allocation9 + $0x108] sm:$0xff]
          %v526 = vld [vmem:[#allocation9 + $0x110] sm:$0xff]
          %v527 = vld [vmem:[#allocation9 + $0x118] sm:$0xff]
          %v528 = vld [vmem:[#allocation9 + $0x120] sm:$0xff]
          %v529 = vld [vmem:[#allocation9 + $0x128] sm:$0xff]
          %v530 = vld [vmem:[#allocation9 + $0x130] sm:$0xff]
          %v531 = vld [vmem:[#allocation9 + $0x138] sm:$0xff]
          %v532 = vld [vmem:[#allocation9 + $0x140] sm:$0xff]
          %v533 = vld [vmem:[#allocation9 + $0x148] sm:$0xff]
          %v534 = vld [vmem:[#allocation9 + $0x150] sm:$0xff]
          %v535 = vld [vmem:[#allocation9 + $0x158] sm:$0xff]
          %v536 = vld [vmem:[#allocation9 + $0x160] sm:$0xff]
          %v537 = vld [vmem:[#allocation9 + $0x168] sm:$0xff]
          %v538 = vld [vmem:[#allocation9 + $0x170] sm:$0xff]
          %v539 = vld [vmem:[#allocation9 + $0x178] sm:$0xff]
          %v540 = vld [vmem:[#allocation9 + $0x180] sm:$0xff]
          %v541 = vld [vmem:[#allocation9 + $0x188] sm:$0xff]
          %v542 = vld [vmem:[#allocation9 + $0x190] sm:$0xff]
          %v543 = vld [vmem:[#allocation9 + $0x198] sm:$0xff]
          %v544 = vld [vmem:[#allocation9 + $0x1a0] sm:$0xff]
          %v545 = vld [vmem:[#allocation9 + $0x1a8] sm:$0xff]
          %v546 = vld [vmem:[#allocation9 + $0x1b0] sm:$0xff]
          %v547 = vld [vmem:[#allocation9 + $0x1b8] sm:$0xff]
          %v548 = vld [vmem:[#allocation9 + $0x1c0] sm:$0xff]
          %v549 = vld [vmem:[#allocation9 + $0x1c8] sm:$0xff]
          %v550 = vld [vmem:[#allocation9 + $0x1d0] sm:$0xff]
          %v551 = vld [vmem:[#allocation9 + $0x1d8] sm:$0xff]
          %v552 = vld [vmem:[#allocation9 + $0x1e0] sm:$0xff]
          %v553 = vld [vmem:[#allocation9 + $0x1e8] sm:$0xff]
          %v554 = vld [vmem:[#allocation9 + $0x1f0] sm:$0xff]
          %v555 = vld [vmem:[#allocation9 + $0x1f8] sm:$0xff]
          %v556 = vld [vmem:[#allocation9 + $0x200] sm:$0xff]
          %v557 = vld [vmem:[#allocation9 + $0x208] sm:$0xff]
          %v558 = vld [vmem:[#allocation9 + $0x210] sm:$0xff]
          %v559 = vld [vmem:[#allocation9 + $0x218] sm:$0xff]
          %v560 = vld [vmem:[#allocation9 + $0x220] sm:$0xff]
          %v561 = vld [vmem:[#allocation9 + $0x228] sm:$0xff]
          %v562 = vld [vmem:[#allocation9 + $0x230] sm:$0xff]
          %v563 = vld [vmem:[#allocation9 + $0x238] sm:$0xff]
          %v564 = vld [vmem:[#allocation9 + $0x240] sm:$0xff]
          %v565 = vld [vmem:[#allocation9 + $0x248] sm:$0xff]
          %v566 = vld [vmem:[#allocation9 + $0x250] sm:$0xff]
          %v567 = vld [vmem:[#allocation9 + $0x258] sm:$0xff]
          %v568 = vld [vmem:[#allocation9 + $0x260] sm:$0xff]
          %v569 = vld [vmem:[#allocation9 + $0x268] sm:$0xff]
          %v570 = vld [vmem:[#allocation9 + $0x270] sm:$0xff]
          %v571 = vld [vmem:[#allocation9 + $0x278] sm:$0xff]
          %v572 = vld [vmem:[#allocation9 + $0x280] sm:$0xff]
          %v573 = vld [vmem:[#allocation9 + $0x288] sm:$0xff]
          %v574 = vld [vmem:[#allocation9 + $0x290] sm:$0xff]
          %v575 = vld [vmem:[#allocation9 + $0x298] sm:$0xff]
          %v576 = vld [vmem:[#allocation9 + $0x2a0] sm:$0xff]
          %v577 = vld [vmem:[#allocation9 + $0x2a8] sm:$0xff]
          %v578 = vld [vmem:[#allocation9 + $0x2b0] sm:$0xff]
          %v579 = vld [vmem:[#allocation9 + $0x2b8] sm:$0xff]
          %v580 = vld [vmem:[#allocation9 + $0x2c0] sm:$0xff]
          %v581 = vld [vmem:[#allocation9 + $0x2c8] sm:$0xff]
          %v582 = vld [vmem:[#allocation9 + $0x2d0] sm:$0xff]
          %v583 = vld [vmem:[#allocation9 + $0x2d8] sm:$0xff]
          %v584 = vld [vmem:[#allocation9 + $0x2e0] sm:$0xff]
          %v585 = vld [vmem:[#allocation9 + $0x2e8] sm:$0xff]
          %v586 = vld [vmem:[#allocation9 + $0x2f0] sm:$0xff]
          %v587 = vld [vmem:[#allocation9 + $0x2f8] sm:$0xff]
          %v588 = vld [vmem:[#allocation9 + $0x300] sm:$0xff]
          %v589 = vld [vmem:[#allocation9 + $0x308] sm:$0xff]
          %v590 = vld [vmem:[#allocation9 + $0x310] sm:$0xff]
          %v591 = vld [vmem:[#allocation9 + $0x318] sm:$0xff]
          %v592 = vld [vmem:[#allocation9 + $0x320] sm:$0xff]
          %v593 = vld [vmem:[#allocation9 + $0x328] sm:$0xff]
          %v594 = vld [vmem:[#allocation9 + $0x330] sm:$0xff]
          %v595 = vld [vmem:[#allocation9 + $0x338] sm:$0xff]
          %v596 = vld [vmem:[#allocation9 + $0x340] sm:$0xff]
          %v597 = vld [vmem:[#allocation9 + $0x348] sm:$0xff]
          %v598 = vld [vmem:[#allocation9 + $0x350] sm:$0xff]
          %v599 = vld [vmem:[#allocation9 + $0x358] sm:$0xff]
          %v600 = vld [vmem:[#allocation9 + $0x360] sm:$0xff]
          %v601 = vld [vmem:[#allocation9 + $0x368] sm:$0xff]
          %v602 = vld [vmem:[#allocation9 + $0x370] sm:$0xff]
          %v603 = vld [vmem:[#allocation9 + $0x378] sm:$0xff]
          %v604 = vld [vmem:[#allocation9 + $0x380] sm:$0xff]
          %v605 = vld [vmem:[#allocation9 + $0x388] sm:$0xff]
          %v606 = vld [vmem:[#allocation9 + $0x390] sm:$0xff]
          %v607 = vld [vmem:[#allocation9 + $0x398] sm:$0xff]
          %v608 = vld [vmem:[#allocation9 + $0x3a0] sm:$0xff]
          %v609 = vld [vmem:[#allocation9 + $0x3a8] sm:$0xff]
          %v610 = vld [vmem:[#allocation9 + $0x3b0] sm:$0xff]
          %v611 = vld [vmem:[#allocation9 + $0x3b8] sm:$0xff]
          %v612 = vld [vmem:[#allocation9 + $0x3c0] sm:$0xff]
          %v613 = vld [vmem:[#allocation9 + $0x3c8] sm:$0xff]
          %v614 = vld [vmem:[#allocation9 + $0x3d0] sm:$0xff]
          %v615 = vld [vmem:[#allocation9 + $0x3d8] sm:$0xff]
          %v616 = vld [vmem:[#allocation9 + $0x3e0] sm:$0xff]
          %v617 = vld [vmem:[#allocation9 + $0x3e8] sm:$0xff]
          %v618 = vld [vmem:[#allocation9 + $0x3f0] sm:$0xff]
          %v619 = vld [vmem:[#allocation9 + $0x3f8] sm:$0xff]
          %v620 = vld [vmem:[#allocation11] sm:$0xff]
          %v621 = vld [vmem:[#allocation11 + $0x8] sm:$0xff]
          %v622 = vld [vmem:[#allocation11 + $0x10] sm:$0xff]
          %v623 = vld [vmem:[#allocation11 + $0x18] sm:$0xff]
          %v624 = vld [vmem:[#allocation11 + $0x20] sm:$0xff]
          %v625 = vld [vmem:[#allocation11 + $0x28] sm:$0xff]
          %v626 = vld [vmem:[#allocation11 + $0x30] sm:$0xff]
          %v627 = vld [vmem:[#allocation11 + $0x38] sm:$0xff]
          %v628 = vld [vmem:[#allocation11 + $0x40] sm:$0xff]
          %v629 = vld [vmem:[#allocation11 + $0x48] sm:$0xff]
          %v630 = vld [vmem:[#allocation11 + $0x50] sm:$0xff]
          %v631 = vld [vmem:[#allocation11 + $0x58] sm:$0xff]
          %v632 = vld [vmem:[#allocation11 + $0x60] sm:$0xff]
          %v633 = vld [vmem:[#allocation11 + $0x68] sm:$0xff]
          %v634 = vld [vmem:[#allocation11 + $0x70] sm:$0xff]
          %v635 = vld [vmem:[#allocation11 + $0x78] sm:$0xff]
          %636 = vmatprep.subr.mxu0 0.0
          %637 = vmatpush1.msra.mxu0 %v620
          %638 = vmatprep.subr.mxu0 0.0
          %639 = vmatpush1.msra.mxu0 %v621
          %640 = vmatprep.subr.mxu0 0.0
          %641 = vmatpush1.msra.mxu0 %v622
          %642 = vmatprep.subr.mxu0 0.0
          %643 = vmatpush1.msra.mxu0 %v623
          %644 = vmatprep.subr.mxu0 0.0
          %645 = vmatpush1.msra.mxu0 %v624
          %646 = vmatprep.subr.mxu0 0.0
          %647 = vmatpush1.msra.mxu0 %v625
          %648 = vmatprep.subr.mxu0 0.0
          %649 = vmatpush1.msra.mxu0 %v626
          %650 = vmatprep.subr.mxu0 0.0
          %651 = vmatpush1.msra.mxu0 %v627
          %652 = vmatprep.subr.mxu0 0.0
          %653 = vmatpush1.msra.mxu0 %v628
          %654 = vmatprep.subr.mxu0 0.0
          %655 = vmatpush1.msra.mxu0 %v629
          %656 = vmatprep.subr.mxu0 0.0
          %657 = vmatpush1.msra.mxu0 %v630
          %658 = vmatprep.subr.mxu0 0.0
          %659 = vmatpush1.msra.mxu0 %v631
          %660 = vmatprep.subr.mxu0 0.0
          %661 = vmatpush1.msra.mxu0 %v632
          %662 = vmatprep.subr.mxu0 0.0
          %663 = vmatpush1.msra.mxu0 %v633
          %664 = vmatprep.subr.mxu0 0.0
          %665 = vmatpush1.msra.mxu0 %v634
          %666 = vmatprep.subr.mxu0 0.0
          %667 = vmatpush1.msra.mxu0 %v635
          %668 = vmatprep.subr.mxu0 0.0
          %669 = vmatpush1.msra.mxu0 0.0
          %670 = vmatprep.subr.mxu0 0.0
          %671 = vmatpush1.msra.mxu0 0.0
          %672 = vmatprep.subr.mxu0 0.0
          %673 = vmatpush1.msra.mxu0 0.0
          %674 = vmatprep.subr.mxu0 0.0
          %675 = vmatpush1.msra.mxu0 0.0
          %676 = vmatprep.subr.mxu0 0.0
          %677 = vmatpush1.msra.mxu0 0.0
          %678 = vmatprep.subr.mxu0 0.0
          %679 = vmatpush1.msra.mxu0 0.0
          %680 = vmatprep.subr.mxu0 0.0
          %681 = vmatpush1.msra.mxu0 0.0
          %682 = vmatprep.subr.mxu0 0.0
          %683 = vmatpush1.msra.mxu0 0.0
          %684 = vmatprep.subr.mxu0 0.0
          %685 = vmatpush1.msra.mxu0 0.0
          %686 = vmatprep.subr.mxu0 0.0
          %687 = vmatpush1.msra.mxu0 0.0
          %688 = vmatprep.subr.mxu0 0.0
          %689 = vmatpush1.msra.mxu0 0.0
          %690 = vmatprep.subr.mxu0 0.0
          %691 = vmatpush1.msra.mxu0 0.0
          %692 = vmatprep.subr.mxu0 0.0
          %693 = vmatpush1.msra.mxu0 0.0
          %694 = vmatprep.subr.mxu0 0.0
          %695 = vmatpush1.msra.mxu0 0.0
          %696 = vmatprep.subr.mxu0 0.0
          %697 = vmatpush1.msra.mxu0 0.0
          %698 = vmatprep.subr.mxu0 0.0
          %699 = vmatpush1.msra.mxu0 0.0
          %700 = vmatprep.mubr.f32.mxu0 0.0
          %701 = vmatmul.mubr.f32.gmra.mrb[0].mxu0 %v492
          %v702 = vpop.f32.mrb[0].mxu0
          %v703 = vadd.f32 0.0, %v702
          %v704 = vpop.f32.mrb[0].mxu0
          %705 = vmatprep.mubr.f32.mxu0 0.0
          %706 = vmatmul.mubr.f32.gmra.mrb[0].mxu0 %v493
          %v707 = vpop.f32.mrb[0].mxu0
          %v708 = vadd.f32 0.0, %v707
          %v709 = vpop.f32.mrb[0].mxu0
          %710 = vmatprep.mubr.f32.mxu0 0.0
          %711 = vmatmul.mubr.f32.gmra.mrb[0].mxu0 %v494
          %v712 = vpop.f32.mrb[0].mxu0
          %v713 = vadd.f32 0.0, %v712
          %v714 = vpop.f32.mrb[0].mxu0
          %715 = vmatprep.mubr.f32.mxu0 0.0
          %716 = vmatmul.mubr.f32.gmra.mrb[0].mxu0 %v495
          %v717 = vpop.f32.mrb[0].mxu0
          %v718 = vadd.f32 0.0, %v717
          %v719 = vpop.f32.mrb[0].mxu0
          %720 = vmatprep.mubr.f32.mxu0 0.0
          %721 = vmatmul.mubr.f32.gmra.mrb[0].mxu0 %v496
          %v722 = vpop.f32.mrb[0].mxu0
          %v723 = vadd.f32 0.0, %v722
          %v724 = vpop.f32.mrb[0].mxu0
          %725 = vmatprep.mubr.f32.mxu0 0.0
          %726 = vmatmul.mubr.f32.gmra.mrb[0].mxu0 %v497
          %v727 = vpop.f32.mrb[0].mxu0
          %v728 = vadd.f32 0.0, %v727
          %v729 = vpop.f32.mrb[0].mxu0
          %730 = vmatprep.mubr.f32.mxu0 0.0
          %731 = vmatmul.mubr.f32.gmra.mrb[0].mxu0 %v498
          %v732 = vpop.f32.mrb[0].mxu0
          %v733 = vadd.f32 0.0, %v732
          %v734 = vpop.f32.mrb[0].mxu0
          %735 = vmatprep.mubr.f32.mxu0 0.0
          %736 = vmatmul.mubr.f32.gmra.mrb[0].mxu0 %v499
          %v737 = vpop.f32.mrb[0].mxu0
          %v738 = vadd.f32 0.0, %v737
          %v739 = vpop.f32.mrb[0].mxu0
          %740 = vmatprep.mubr.f32.mxu0 0.0
          %741 = vmatmul.mubr.f32.gmra.mrb[0].mxu0 %v500
          %v742 = vpop.f32.mrb[0].mxu0
          %v743 = vadd.f32 0.0, %v742
          %v744 = vpop.f32.mrb[0].mxu0
          %745 = vmatprep.mubr.f32.mxu0 0.0
          %746 = vmatmul.mubr.f32.gmra.mrb[0].mxu0 %v501
          %v747 = vpop.f32.mrb[0].mxu0
          %v748 = vadd.f32 0.0, %v747
          %v749 = vpop.f32.mrb[0].mxu0
          %750 = vmatprep.mubr.f32.mxu0 0.0
          %751 = vmatmul.mubr.f32.gmra.mrb[0].mxu0 %v502
          %v752 = vpop.f32.mrb[0].mxu0
          %v753 = vadd.f32 0.0, %v752
          %v754 = vpop.f32.mrb[0].mxu0
          %755 = vmatprep.mubr.f32.mxu0 0.0
          %756 = vmatmul.mubr.f32.gmra.mrb[0].mxu0 %v503
          %v757 = vpop.f32.mrb[0].mxu0
          %v758 = vadd.f32 0.0, %v757
          %v759 = vpop.f32.mrb[0].mxu0
          %760 = vmatprep.mubr.f32.mxu0 0.0
          %761 = vmatmul.mubr.f32.gmra.mrb[0].mxu0 %v504
          %v762 = vpop.f32.mrb[0].mxu0
          %v763 = vadd.f32 0.0, %v762
          %v764 = vpop.f32.mrb[0].mxu0
          %765 = vmatprep.mubr.f32.mxu0 0.0
          %766 = vmatmul.mubr.f32.gmra.mrb[0].mxu0 %v505
          %v767 = vpop.f32.mrb[0].mxu0
          %v768 = vadd.f32 0.0, %v767
          %v769 = vpop.f32.mrb[0].mxu0
          %770 = vmatprep.mubr.f32.mxu0 0.0
          %771 = vmatmul.mubr.f32.gmra.mrb[0].mxu0 %v506
          %v772 = vpop.f32.mrb[0].mxu0
          %v773 = vadd.f32 0.0, %v772
          %v774 = vpop.f32.mrb[0].mxu0
          %775 = vmatprep.mubr.f32.mxu0 0.0
          %776 = vmatmul.mubr.f32.gmra.mrb[0].mxu0 %v507
          %v777 = vpop.f32.mrb[0].mxu0
          %v778 = vadd.f32 0.0, %v777
          %v779 = vpop.f32.mrb[0].mxu0
          %780 = vmatprep.mubr.f32.mxu0 0.0
          %781 = vmatmul.mubr.f32.gmra.mrb[0].mxu0 %v508
          %v782 = vpop.f32.mrb[0].mxu0
          %v783 = vadd.f32 0.0, %v782
          %v784 = vpop.f32.mrb[0].mxu0
          %785 = vmatprep.mubr.f32.mxu0 0.0
          %786 = vmatmul.mubr.f32.gmra.mrb[0].mxu0 %v509
          %v787 = vpop.f32.mrb[0].mxu0
          %v788 = vadd.f32 0.0, %v787
          %v789 = vpop.f32.mrb[0].mxu0
          %790 = vmatprep.mubr.f32.mxu0 0.0
          %791 = vmatmul.mubr.f32.gmra.mrb[0].mxu0 %v510
          %v792 = vpop.f32.mrb[0].mxu0
          %v793 = vadd.f32 0.0, %v792
          %v794 = vpop.f32.mrb[0].mxu0
          %795 = vmatprep.mubr.f32.mxu0 0.0
          %796 = vmatmul.mubr.f32.gmra.mrb[0].mxu0 %v511
          %v797 = vpop.f32.mrb[0].mxu0
          %v798 = vadd.f32 0.0, %v797
          %v799 = vpop.f32.mrb[0].mxu0
          %800 = vmatprep.mubr.f32.mxu0 0.0
          %801 = vmatmul.mubr.f32.gmra.mrb[0].mxu0 %v512
          %v802 = vpop.f32.mrb[0].mxu0
          %v803 = vadd.f32 0.0, %v802
          %v804 = vpop.f32.mrb[0].mxu0
          %805 = vmatprep.mubr.f32.mxu0 0.0
          %806 = vmatmul.mubr.f32.gmra.mrb[0].mxu0 %v513
          %v807 = vpop.f32.mrb[0].mxu0
          %v808 = vadd.f32 0.0, %v807
          %v809 = vpop.f32.mrb[0].mxu0
          %810 = vmatprep.mubr.f32.mxu0 0.0
          %811 = vmatmul.mubr.f32.gmra.mrb[0].mxu0 %v514
          %v812 = vpop.f32.mrb[0].mxu0
          %v813 = vadd.f32 0.0, %v812
          %v814 = vpop.f32.mrb[0].mxu0
          %815 = vmatprep.mubr.f32.mxu0 0.0
          %816 = vmatmul.mubr.f32.gmra.mrb[0].mxu0 %v515
          %v817 = vpop.f32.mrb[0].mxu0
          %v818 = vadd.f32 0.0, %v817
          %v819 = vpop.f32.mrb[0].mxu0
          %820 = vmatprep.mubr.f32.mxu0 0.0
          %821 = vmatmul.mubr.f32.gmra.mrb[0].mxu0 %v516
          %v822 = vpop.f32.mrb[0].mxu0
          %v823 = vadd.f32 0.0, %v822
          %v824 = vpop.f32.mrb[0].mxu0
          %825 = vmatprep.mubr.f32.mxu0 0.0
          %826 = vmatmul.mubr.f32.gmra.mrb[0].mxu0 %v517
          %v827 = vpop.f32.mrb[0].mxu0
          %v828 = vadd.f32 0.0, %v827
          %v829 = vpop.f32.mrb[0].mxu0
          %830 = vmatprep.mubr.f32.mxu0 0.0
          %831 = vmatmul.mubr.f32.gmra.mrb[0].mxu0 %v518
          %v832 = vpop.f32.mrb[0].mxu0
          %v833 = vadd.f32 0.0, %v832
          %v834 = vpop.f32.mrb[0].mxu0
          %835 = vmatprep.mubr.f32.mxu0 0.0
          %836 = vmatmul.mubr.f32.gmra.mrb[0].mxu0 %v519
          %v837 = vpop.f32.mrb[0].mxu0
          %v838 = vadd.f32 0.0, %v837
          %v839 = vpop.f32.mrb[0].mxu0
          %840 = vmatprep.mubr.f32.mxu0 0.0
          %841 = vmatmul.mubr.f32.gmra.mrb[0].mxu0 %v520
          %v842 = vpop.f32.mrb[0].mxu0
          %v843 = vadd.f32 0.0, %v842
          %v844 = vpop.f32.mrb[0].mxu0
          %845 = vmatprep.mubr.f32.mxu0 0.0
          %846 = vmatmul.mubr.f32.gmra.mrb[0].mxu0 %v521
          %v847 = vpop.f32.mrb[0].mxu0
          %v848 = vadd.f32 0.0, %v847
          %v849 = vpop.f32.mrb[0].mxu0
          %850 = vmatprep.mubr.f32.mxu0 0.0
          %851 = vmatmul.mubr.f32.gmra.mrb[0].mxu0 %v522
          %v852 = vpop.f32.mrb[0].mxu0
          %v853 = vadd.f32 0.0, %v852
          %v854 = vpop.f32.mrb[0].mxu0
          %855 = vmatprep.mubr.f32.mxu0 0.0
          %856 = vmatmul.mubr.f32.gmra.mrb[0].mxu0 %v523
          %v857 = vpop.f32.mrb[0].mxu0
          %v858 = vadd.f32 0.0, %v857
          %v859 = vpop.f32.mrb[0].mxu0
          %860 = vmatprep.mubr.f32.mxu0 0.0
          %861 = vmatmul.mubr.f32.gmra.mrb[0].mxu0 %v524
          %v862 = vpop.f32.mrb[0].mxu0
          %v863 = vadd.f32 0.0, %v862
          %v864 = vpop.f32.mrb[0].mxu0
          %865 = vmatprep.mubr.f32.mxu0 0.0
          %866 = vmatmul.mubr.f32.gmra.mrb[0].mxu0 %v525
          %v867 = vpop.f32.mrb[0].mxu0
          %v868 = vadd.f32 0.0, %v867
          %v869 = vpop.f32.mrb[0].mxu0
          %870 = vmatprep.mubr.f32.mxu0 0.0
          %871 = vmatmul.mubr.f32.gmra.mrb[0].mxu0 %v526
          %v872 = vpop.f32.mrb[0].mxu0
          %v873 = vadd.f32 0.0, %v872
          %v874 = vpop.f32.mrb[0].mxu0
          %875 = vmatprep.mubr.f32.mxu0 0.0
          %876 = vmatmul.mubr.f32.gmra.mrb[0].mxu0 %v527
          %v877 = vpop.f32.mrb[0].mxu0
          %v878 = vadd.f32 0.0, %v877
          %v879 = vpop.f32.mrb[0].mxu0
          %880 = vmatprep.mubr.f32.mxu0 0.0
          %881 = vmatmul.mubr.f32.gmra.mrb[0].mxu0 %v528
          %v882 = vpop.f32.mrb[0].mxu0
          %v883 = vadd.f32 0.0, %v882
          %v884 = vpop.f32.mrb[0].mxu0
          %885 = vmatprep.mubr.f32.mxu0 0.0
          %886 = vmatmul.mubr.f32.gmra.mrb[0].mxu0 %v529
          %v887 = vpop.f32.mrb[0].mxu0
          %v888 = vadd.f32 0.0, %v887
          %v889 = vpop.f32.mrb[0].mxu0
          %890 = vmatprep.mubr.f32.mxu0 0.0
          %891 = vmatmul.mubr.f32.gmra.mrb[0].mxu0 %v530
          %v892 = vpop.f32.mrb[0].mxu0
          %v893 = vadd.f32 0.0, %v892
          %v894 = vpop.f32.mrb[0].mxu0
          %895 = vmatprep.mubr.f32.mxu0 0.0
          %896 = vmatmul.mubr.f32.gmra.mrb[0].mxu0 %v531
          %v897 = vpop.f32.mrb[0].mxu0
          %v898 = vadd.f32 0.0, %v897
          %v899 = vpop.f32.mrb[0].mxu0
          %900 = vmatprep.mubr.f32.mxu0 0.0
          %901 = vmatmul.mubr.f32.gmra.mrb[0].mxu0 %v532
          %v902 = vpop.f32.mrb[0].mxu0
          %v903 = vadd.f32 0.0, %v902
          %v904 = vpop.f32.mrb[0].mxu0
          %905 = vmatprep.mubr.f32.mxu0 0.0
          %906 = vmatmul.mubr.f32.gmra.mrb[0].mxu0 %v533
          %v907 = vpop.f32.mrb[0].mxu0
          %v908 = vadd.f32 0.0, %v907
          %v909 = vpop.f32.mrb[0].mxu0
          %910 = vmatprep.mubr.f32.mxu0 0.0
          %911 = vmatmul.mubr.f32.gmra.mrb[0].mxu0 %v534
          %v912 = vpop.f32.mrb[0].mxu0
          %v913 = vadd.f32 0.0, %v912
          %v914 = vpop.f32.mrb[0].mxu0
          %915 = vmatprep.mubr.f32.mxu0 0.0
          %916 = vmatmul.mubr.f32.gmra.mrb[0].mxu0 %v535
          %v917 = vpop.f32.mrb[0].mxu0
          %v918 = vadd.f32 0.0, %v917
          %v919 = vpop.f32.mrb[0].mxu0
          %920 = vmatprep.mubr.f32.mxu0 0.0
          %921 = vmatmul.mubr.f32.gmra.mrb[0].mxu0 %v536
          %v922 = vpop.f32.mrb[0].mxu0
          %v923 = vadd.f32 0.0, %v922
          %v924 = vpop.f32.mrb[0].mxu0
          %925 = vmatprep.mubr.f32.mxu0 0.0
          %926 = vmatmul.mubr.f32.gmra.mrb[0].mxu0 %v537
          %v927 = vpop.f32.mrb[0].mxu0
          %v928 = vadd.f32 0.0, %v927
          %v929 = vpop.f32.mrb[0].mxu0
          %930 = vmatprep.mubr.f32.mxu0 0.0
          %931 = vmatmul.mubr.f32.gmra.mrb[0].mxu0 %v538
          %v932 = vpop.f32.mrb[0].mxu0
          %v933 = vadd.f32 0.0, %v932
          %v934 = vpop.f32.mrb[0].mxu0
          %935 = vmatprep.mubr.f32.mxu0 0.0
          %936 = vmatmul.mubr.f32.gmra.mrb[0].mxu0 %v539
          %v937 = vpop.f32.mrb[0].mxu0
          %v938 = vadd.f32 0.0, %v937
          %v939 = vpop.f32.mrb[0].mxu0
          %940 = vmatprep.mubr.f32.mxu0 0.0
          %941 = vmatmul.mubr.f32.gmra.mrb[0].mxu0 %v540
          %v942 = vpop.f32.mrb[0].mxu0
          %v943 = vadd.f32 0.0, %v942
          %v944 = vpop.f32.mrb[0].mxu0
          %945 = vmatprep.mubr.f32.mxu0 0.0
          %946 = vmatmul.mubr.f32.gmra.mrb[0].mxu0 %v541
          %v947 = vpop.f32.mrb[0].mxu0
          %v948 = vadd.f32 0.0, %v947
          %v949 = vpop.f32.mrb[0].mxu0
          %950 = vmatprep.mubr.f32.mxu0 0.0
          %951 = vmatmul.mubr.f32.gmra.mrb[0].mxu0 %v542
          %v952 = vpop.f32.mrb[0].mxu0
          %v953 = vadd.f32 0.0, %v952
          %v954 = vpop.f32.mrb[0].mxu0
          %955 = vmatprep.mubr.f32.mxu0 0.0
          %956 = vmatmul.mubr.f32.gmra.mrb[0].mxu0 %v543
          %v957 = vpop.f32.mrb[0].mxu0
          %v958 = vadd.f32 0.0, %v957
          %v959 = vpop.f32.mrb[0].mxu0
          %960 = vmatprep.mubr.f32.mxu0 0.0
          %961 = vmatmul.mubr.f32.gmra.mrb[0].mxu0 %v544
          %v962 = vpop.f32.mrb[0].mxu0
          %v963 = vadd.f32 0.0, %v962
          %v964 = vpop.f32.mrb[0].mxu0
          %965 = vmatprep.mubr.f32.mxu0 0.0
          %966 = vmatmul.mubr.f32.gmra.mrb[0].mxu0 %v545
          %v967 = vpop.f32.mrb[0].mxu0
          %v968 = vadd.f32 0.0, %v967
          %v969 = vpop.f32.mrb[0].mxu0
          %970 = vmatprep.mubr.f32.mxu0 0.0
          %971 = vmatmul.mubr.f32.gmra.mrb[0].mxu0 %v546
          %v972 = vpop.f32.mrb[0].mxu0
          %v973 = vadd.f32 0.0, %v972
          %v974 = vpop.f32.mrb[0].mxu0
          %975 = vmatprep.mubr.f32.mxu0 0.0
          %976 = vmatmul.mubr.f32.gmra.mrb[0].mxu0 %v547
          %v977 = vpop.f32.mrb[0].mxu0
          %v978 = vadd.f32 0.0, %v977
          %v979 = vpop.f32.mrb[0].mxu0
          %980 = vmatprep.mubr.f32.mxu0 0.0
          %981 = vmatmul.mubr.f32.gmra.mrb[0].mxu0 %v548
          %v982 = vpop.f32.mrb[0].mxu0
          %v983 = vadd.f32 0.0, %v982
          %v984 = vpop.f32.mrb[0].mxu0
          %985 = vmatprep.mubr.f32.mxu0 0.0
          %986 = vmatmul.mubr.f32.gmra.mrb[0].mxu0 %v549
          %v987 = vpop.f32.mrb[0].mxu0
          %v988 = vadd.f32 0.0, %v987
          %v989 = vpop.f32.mrb[0].mxu0
          %990 = vmatprep.mubr.f32.mxu0 0.0
          %991 = vmatmul.mubr.f32.gmra.mrb[0].mxu0 %v550
          %v992 = vpop.f32.mrb[0].mxu0
          %v993 = vadd.f32 0.0, %v992
          %v994 = vpop.f32.mrb[0].mxu0
          %995 = vmatprep.mubr.f32.mxu0 0.0
          %996 = vmatmul.mubr.f32.gmra.mrb[0].mxu0 %v551
          %v997 = vpop.f32.mrb[0].mxu0
          %v998 = vadd.f32 0.0, %v997
          %v999 = vpop.f32.mrb[0].mxu0
          %1000 = vmatprep.mubr.f32.mxu0 0.0
          %1001 = vmatmul.mubr.f32.gmra.mrb[0].mxu0 %v552
          %v1002 = vpop.f32.mrb[0].mxu0
          %v1003 = vadd.f32 0.0, %v1002
          %v1004 = vpop.f32.mrb[0].mxu0
          %1005 = vmatprep.mubr.f32.mxu0 0.0
          %1006 = vmatmul.mubr.f32.gmra.mrb[0].mxu0 %v553
          %v1007 = vpop.f32.mrb[0].mxu0
          %v1008 = vadd.f32 0.0, %v1007
          %v1009 = vpop.f32.mrb[0].mxu0
          %1010 = vmatprep.mubr.f32.mxu0 0.0
          %1011 = vmatmul.mubr.f32.gmra.mrb[0].mxu0 %v554
          %v1012 = vpop.f32.mrb[0].mxu0
          %v1013 = vadd.f32 0.0, %v1012
          %v1014 = vpop.f32.mrb[0].mxu0
          %1015 = vmatprep.mubr.f32.mxu0 0.0
          %1016 = vmatmul.mubr.f32.gmra.mrb[0].mxu0 %v555
          %v1017 = vpop.f32.mrb[0].mxu0
          %v1018 = vadd.f32 0.0, %v1017
          %v1019 = vpop.f32.mrb[0].mxu0
          %1020 = vmatprep.mubr.f32.mxu0 0.0
          %1021 = vmatmul.mubr.f32.gmra.mrb[0].mxu0 %v556
          %v1022 = vpop.f32.mrb[0].mxu0
          %v1023 = vadd.f32 0.0, %v1022
          %v1024 = vpop.f32.mrb[0].mxu0
          %1025 = vmatprep.mubr.f32.mxu0 0.0
          %1026 = vmatmul.mubr.f32.gmra.mrb[0].mxu0 %v557
          %v1027 = vpop.f32.mrb[0].mxu0
          %v1028 = vadd.f32 0.0, %v1027
          %v1029 = vpop.f32.mrb[0].mxu0
          %1030 = vmatprep.mubr.f32.mxu0 0.0
          %1031 = vmatmul.mubr.f32.gmra.mrb[0].mxu0 %v558
          %v1032 = vpop.f32.mrb[0].mxu0
          %v1033 = vadd.f32 0.0, %v1032
          %v1034 = vpop.f32.mrb[0].mxu0
          %1035 = vmatprep.mubr.f32.mxu0 0.0
          %1036 = vmatmul.mubr.f32.gmra.mrb[0].mxu0 %v559
          %v1037 = vpop.f32.mrb[0].mxu0
          %v1038 = vadd.f32 0.0, %v1037
          %v1039 = vpop.f32.mrb[0].mxu0
          %1040 = vmatprep.mubr.f32.mxu0 0.0
          %1041 = vmatmul.mubr.f32.gmra.mrb[0].mxu0 %v560
          %v1042 = vpop.f32.mrb[0].mxu0
          %v1043 = vadd.f32 0.0, %v1042
          %v1044 = vpop.f32.mrb[0].mxu0
          %1045 = vmatprep.mubr.f32.mxu0 0.0
          %1046 = vmatmul.mubr.f32.gmra.mrb[0].mxu0 %v561
          %v1047 = vpop.f32.mrb[0].mxu0
          %v1048 = vadd.f32 0.0, %v1047
          %v1049 = vpop.f32.mrb[0].mxu0
          %1050 = vmatprep.mubr.f32.mxu0 0.0
          %1051 = vmatmul.mubr.f32.gmra.mrb[0].mxu0 %v562
          %v1052 = vpop.f32.mrb[0].mxu0
          %v1053 = vadd.f32 0.0, %v1052
          %v1054 = vpop.f32.mrb[0].mxu0
          %1055 = vmatprep.mubr.f32.mxu0 0.0
          %1056 = vmatmul.mubr.f32.gmra.mrb[0].mxu0 %v563
          %v1057 = vpop.f32.mrb[0].mxu0
          %v1058 = vadd.f32 0.0, %v1057
          %v1059 = vpop.f32.mrb[0].mxu0
          %1060 = vmatprep.mubr.f32.mxu0 0.0
          %1061 = vmatmul.mubr.f32.gmra.mrb[0].mxu0 %v564
          %v1062 = vpop.f32.mrb[0].mxu0
          %v1063 = vadd.f32 0.0, %v1062
          %v1064 = vpop.f32.mrb[0].mxu0
          %1065 = vmatprep.mubr.f32.mxu0 0.0
          %1066 = vmatmul.mubr.f32.gmra.mrb[0].mxu0 %v565
          %v1067 = vpop.f32.mrb[0].mxu0
          %v1068 = vadd.f32 0.0, %v1067
          %v1069 = vpop.f32.mrb[0].mxu0
          %1070 = vmatprep.mubr.f32.mxu0 0.0
          %1071 = vmatmul.mubr.f32.gmra.mrb[0].mxu0 %v566
          %v1072 = vpop.f32.mrb[0].mxu0
          %v1073 = vadd.f32 0.0, %v1072
          %v1074 = vpop.f32.mrb[0].mxu0
          %1075 = vmatprep.mubr.f32.mxu0 0.0
          %1076 = vmatmul.mubr.f32.gmra.mrb[0].mxu0 %v567
          %v1077 = vpop.f32.mrb[0].mxu0
          %v1078 = vadd.f32 0.0, %v1077
          %v1079 = vpop.f32.mrb[0].mxu0
          %1080 = vmatprep.mubr.f32.mxu0 0.0
          %1081 = vmatmul.mubr.f32.gmra.mrb[0].mxu0 %v568
          %v1082 = vpop.f32.mrb[0].mxu0
          %v1083 = vadd.f32 0.0, %v1082
          %v1084 = vpop.f32.mrb[0].mxu0
          %1085 = vmatprep.mubr.f32.mxu0 0.0
          %1086 = vmatmul.mubr.f32.gmra.mrb[0].mxu0 %v569
          %v1087 = vpop.f32.mrb[0].mxu0
          %v1088 = vadd.f32 0.0, %v1087
          %v1089 = vpop.f32.mrb[0].mxu0
          %1090 = vmatprep.mubr.f32.mxu0 0.0
          %1091 = vmatmul.mubr.f32.gmra.mrb[0].mxu0 %v570
          %v1092 = vpop.f32.mrb[0].mxu0
          %v1093 = vadd.f32 0.0, %v1092
          %v1094 = vpop.f32.mrb[0].mxu0
          %1095 = vmatprep.mubr.f32.mxu0 0.0
          %1096 = vmatmul.mubr.f32.gmra.mrb[0].mxu0 %v571
          %v1097 = vpop.f32.mrb[0].mxu0
          %v1098 = vadd.f32 0.0, %v1097
          %v1099 = vpop.f32.mrb[0].mxu0
          %1100 = vmatprep.mubr.f32.mxu0 0.0
          %1101 = vmatmul.mubr.f32.gmra.mrb[0].mxu0 %v572
          %v1102 = vpop.f32.mrb[0].mxu0
          %v1103 = vadd.f32 0.0, %v1102
          %v1104 = vpop.f32.mrb[0].mxu0
          %1105 = vmatprep.mubr.f32.mxu0 0.0
          %1106 = vmatmul.mubr.f32.gmra.mrb[0].mxu0 %v573
          %v1107 = vpop.f32.mrb[0].mxu0
          %v1108 = vadd.f32 0.0, %v1107
          %v1109 = vpop.f32.mrb[0].mxu0
          %1110 = vmatprep.mubr.f32.mxu0 0.0
          %1111 = vmatmul.mubr.f32.gmra.mrb[0].mxu0 %v574
          %v1112 = vpop.f32.mrb[0].mxu0
          %v1113 = vadd.f32 0.0, %v1112
          %v1114 = vpop.f32.mrb[0].mxu0
          %1115 = vmatprep.mubr.f32.mxu0 0.0
          %1116 = vmatmul.mubr.f32.gmra.mrb[0].mxu0 %v575
          %v1117 = vpop.f32.mrb[0].mxu0
          %v1118 = vadd.f32 0.0, %v1117
          %v1119 = vpop.f32.mrb[0].mxu0
          %1120 = vmatprep.mubr.f32.mxu0 0.0
          %1121 = vmatmul.mubr.f32.gmra.mrb[0].mxu0 %v576
          %v1122 = vpop.f32.mrb[0].mxu0
          %v1123 = vadd.f32 0.0, %v1122
          %v1124 = vpop.f32.mrb[0].mxu0
          %1125 = vmatprep.mubr.f32.mxu0 0.0
          %1126 = vmatmul.mubr.f32.gmra.mrb[0].mxu0 %v577
          %v1127 = vpop.f32.mrb[0].mxu0
          %v1128 = vadd.f32 0.0, %v1127
          %v1129 = vpop.f32.mrb[0].mxu0
          %1130 = vmatprep.mubr.f32.mxu0 0.0
          %1131 = vmatmul.mubr.f32.gmra.mrb[0].mxu0 %v578
          %v1132 = vpop.f32.mrb[0].mxu0
          %v1133 = vadd.f32 0.0, %v1132
          %v1134 = vpop.f32.mrb[0].mxu0
          %1135 = vmatprep.mubr.f32.mxu0 0.0
          %1136 = vmatmul.mubr.f32.gmra.mrb[0].mxu0 %v579
          %v1137 = vpop.f32.mrb[0].mxu0
          %v1138 = vadd.f32 0.0, %v1137
          %v1139 = vpop.f32.mrb[0].mxu0
          %1140 = vmatprep.mubr.f32.mxu0 0.0
          %1141 = vmatmul.mubr.f32.gmra.mrb[0].mxu0 %v580
          %v1142 = vpop.f32.mrb[0].mxu0
          %v1143 = vadd.f32 0.0, %v1142
          %v1144 = vpop.f32.mrb[0].mxu0
          %1145 = vmatprep.mubr.f32.mxu0 0.0
          %1146 = vmatmul.mubr.f32.gmra.mrb[0].mxu0 %v581
          %v1147 = vpop.f32.mrb[0].mxu0
          %v1148 = vadd.f32 0.0, %v1147
          %v1149 = vpop.f32.mrb[0].mxu0
          %1150 = vmatprep.mubr.f32.mxu0 0.0
          %1151 = vmatmul.mubr.f32.gmra.mrb[0].mxu0 %v582
          %v1152 = vpop.f32.mrb[0].mxu0
          %v1153 = vadd.f32 0.0, %v1152
          %v1154 = vpop.f32.mrb[0].mxu0
          %1155 = vmatprep.mubr.f32.mxu0 0.0
          %1156 = vmatmul.mubr.f32.gmra.mrb[0].mxu0 %v583
          %v1157 = vpop.f32.mrb[0].mxu0
          %v1158 = vadd.f32 0.0, %v1157
          %v1159 = vpop.f32.mrb[0].mxu0
          %1160 = vmatprep.mubr.f32.mxu0 0.0
          %1161 = vmatmul.mubr.f32.gmra.mrb[0].mxu0 %v584
          %v1162 = vpop.f32.mrb[0].mxu0
          %v1163 = vadd.f32 0.0, %v1162
          %v1164 = vpop.f32.mrb[0].mxu0
          %1165 = vmatprep.mubr.f32.mxu0 0.0
          %1166 = vmatmul.mubr.f32.gmra.mrb[0].mxu0 %v585
          %v1167 = vpop.f32.mrb[0].mxu0
          %v1168 = vadd.f32 0.0, %v1167
          %v1169 = vpop.f32.mrb[0].mxu0
          %1170 = vmatprep.mubr.f32.mxu0 0.0
          %1171 = vmatmul.mubr.f32.gmra.mrb[0].mxu0 %v586
          %v1172 = vpop.f32.mrb[0].mxu0
          %v1173 = vadd.f32 0.0, %v1172
          %v1174 = vpop.f32.mrb[0].mxu0
          %1175 = vmatprep.mubr.f32.mxu0 0.0
          %1176 = vmatmul.mubr.f32.gmra.mrb[0].mxu0 %v587
          %v1177 = vpop.f32.mrb[0].mxu0
          %v1178 = vadd.f32 0.0, %v1177
          %v1179 = vpop.f32.mrb[0].mxu0
          %1180 = vmatprep.mubr.f32.mxu0 0.0
          %1181 = vmatmul.mubr.f32.gmra.mrb[0].mxu0 %v588
          %v1182 = vpop.f32.mrb[0].mxu0
          %v1183 = vadd.f32 0.0, %v1182
          %v1184 = vpop.f32.mrb[0].mxu0
          %1185 = vmatprep.mubr.f32.mxu0 0.0
          %1186 = vmatmul.mubr.f32.gmra.mrb[0].mxu0 %v589
          %v1187 = vpop.f32.mrb[0].mxu0
          %v1188 = vadd.f32 0.0, %v1187
          %v1189 = vpop.f32.mrb[0].mxu0
          %1190 = vmatprep.mubr.f32.mxu0 0.0
          %1191 = vmatmul.mubr.f32.gmra.mrb[0].mxu0 %v590
          %v1192 = vpop.f32.mrb[0].mxu0
          %v1193 = vadd.f32 0.0, %v1192
          %v1194 = vpop.f32.mrb[0].mxu0
          %1195 = vmatprep.mubr.f32.mxu0 0.0
          %1196 = vmatmul.mubr.f32.gmra.mrb[0].mxu0 %v591
          %v1197 = vpop.f32.mrb[0].mxu0
          %v1198 = vadd.f32 0.0, %v1197
          %v1199 = vpop.f32.mrb[0].mxu0
          %1200 = vmatprep.mubr.f32.mxu0 0.0
          %1201 = vmatmul.mubr.f32.gmra.mrb[0].mxu0 %v592
          %v1202 = vpop.f32.mrb[0].mxu0
          %v1203 = vadd.f32 0.0, %v1202
          %v1204 = vpop.f32.mrb[0].mxu0
          %1205 = vmatprep.mubr.f32.mxu0 0.0
          %1206 = vmatmul.mubr.f32.gmra.mrb[0].mxu0 %v593
          %v1207 = vpop.f32.mrb[0].mxu0
          %v1208 = vadd.f32 0.0, %v1207
          %v1209 = vpop.f32.mrb[0].mxu0
          %1210 = vmatprep.mubr.f32.mxu0 0.0
          %1211 = vmatmul.mubr.f32.gmra.mrb[0].mxu0 %v594
          %v1212 = vpop.f32.mrb[0].mxu0
          %v1213 = vadd.f32 0.0, %v1212
          %v1214 = vpop.f32.mrb[0].mxu0
          %1215 = vmatprep.mubr.f32.mxu0 0.0
          %1216 = vmatmul.mubr.f32.gmra.mrb[0].mxu0 %v595
          %v1217 = vpop.f32.mrb[0].mxu0
          %v1218 = vadd.f32 0.0, %v1217
          %v1219 = vpop.f32.mrb[0].mxu0
          %1220 = vmatprep.mubr.f32.mxu0 0.0
          %1221 = vmatmul.mubr.f32.gmra.mrb[0].mxu0 %v596
          %v1222 = vpop.f32.mrb[0].mxu0
          %v1223 = vadd.f32 0.0, %v1222
          %v1224 = vpop.f32.mrb[0].mxu0
          %1225 = vmatprep.mubr.f32.mxu0 0.0
          %1226 = vmatmul.mubr.f32.gmra.mrb[0].mxu0 %v597
          %v1227 = vpop.f32.mrb[0].mxu0
          %v1228 = vadd.f32 0.0, %v1227
          %v1229 = vpop.f32.mrb[0].mxu0
          %1230 = vmatprep.mubr.f32.mxu0 0.0
          %1231 = vmatmul.mubr.f32.gmra.mrb[0].mxu0 %v598
          %v1232 = vpop.f32.mrb[0].mxu0
          %v1233 = vadd.f32 0.0, %v1232
          %v1234 = vpop.f32.mrb[0].mxu0
          %1235 = vmatprep.mubr.f32.mxu0 0.0
          %1236 = vmatmul.mubr.f32.gmra.mrb[0].mxu0 %v599
          %v1237 = vpop.f32.mrb[0].mxu0
          %v1238 = vadd.f32 0.0, %v1237
          %v1239 = vpop.f32.mrb[0].mxu0
          %1240 = vmatprep.mubr.f32.mxu0 0.0
          %1241 = vmatmul.mubr.f32.gmra.mrb[0].mxu0 %v600
          %v1242 = vpop.f32.mrb[0].mxu0
          %v1243 = vadd.f32 0.0, %v1242
          %v1244 = vpop.f32.mrb[0].mxu0
          %1245 = vmatprep.mubr.f32.mxu0 0.0
          %1246 = vmatmul.mubr.f32.gmra.mrb[0].mxu0 %v601
          %v1247 = vpop.f32.mrb[0].mxu0
          %v1248 = vadd.f32 0.0, %v1247
          %v1249 = vpop.f32.mrb[0].mxu0
          %1250 = vmatprep.mubr.f32.mxu0 0.0
          %1251 = vmatmul.mubr.f32.gmra.mrb[0].mxu0 %v602
          %v1252 = vpop.f32.mrb[0].mxu0
          %v1253 = vadd.f32 0.0, %v1252
          %v1254 = vpop.f32.mrb[0].mxu0
          %1255 = vmatprep.mubr.f32.mxu0 0.0
          %1256 = vmatmul.mubr.f32.gmra.mrb[0].mxu0 %v603
          %v1257 = vpop.f32.mrb[0].mxu0
          %v1258 = vadd.f32 0.0, %v1257
          %v1259 = vpop.f32.mrb[0].mxu0
          %1260 = vmatprep.mubr.f32.mxu0 0.0
          %1261 = vmatmul.mubr.f32.gmra.mrb[0].mxu0 %v604
          %v1262 = vpop.f32.mrb[0].mxu0
          %v1263 = vadd.f32 0.0, %v1262
          %v1264 = vpop.f32.mrb[0].mxu0
          %1265 = vmatprep.mubr.f32.mxu0 0.0
          %1266 = vmatmul.mubr.f32.gmra.mrb[0].mxu0 %v605
          %v1267 = vpop.f32.mrb[0].mxu0
          %v1268 = vadd.f32 0.0, %v1267
          %v1269 = vpop.f32.mrb[0].mxu0
          %1270 = vmatprep.mubr.f32.mxu0 0.0
          %1271 = vmatmul.mubr.f32.gmra.mrb[0].mxu0 %v606
          %v1272 = vpop.f32.mrb[0].mxu0
          %v1273 = vadd.f32 0.0, %v1272
          %v1274 = vpop.f32.mrb[0].mxu0
          %1275 = vmatprep.mubr.f32.mxu0 0.0
          %1276 = vmatmul.mubr.f32.gmra.mrb[0].mxu0 %v607
          %v1277 = vpop.f32.mrb[0].mxu0
          %v1278 = vadd.f32 0.0, %v1277
          %v1279 = vpop.f32.mrb[0].mxu0
          %1280 = vmatprep.mubr.f32.mxu0 0.0
          %1281 = vmatmul.mubr.f32.gmra.mrb[0].mxu0 %v608
          %v1282 = vpop.f32.mrb[0].mxu0
          %v1283 = vadd.f32 0.0, %v1282
          %v1284 = vpop.f32.mrb[0].mxu0
          %1285 = vmatprep.mubr.f32.mxu0 0.0
          %1286 = vmatmul.mubr.f32.gmra.mrb[0].mxu0 %v609
          %v1287 = vpop.f32.mrb[0].mxu0
          %v1288 = vadd.f32 0.0, %v1287
          %v1289 = vpop.f32.mrb[0].mxu0
          %1290 = vmatprep.mubr.f32.mxu0 0.0
          %1291 = vmatmul.mubr.f32.gmra.mrb[0].mxu0 %v610
          %v1292 = vpop.f32.mrb[0].mxu0
          %v1293 = vadd.f32 0.0, %v1292
          %v1294 = vpop.f32.mrb[0].mxu0
          %1295 = vmatprep.mubr.f32.mxu0 0.0
          %1296 = vmatmul.mubr.f32.gmra.mrb[0].mxu0 %v611
          %v1297 = vpop.f32.mrb[0].mxu0
          %v1298 = vadd.f32 0.0, %v1297
          %v1299 = vpop.f32.mrb[0].mxu0
          %1300 = vmatprep.mubr.f32.mxu0 0.0
          %1301 = vmatmul.mubr.f32.gmra.mrb[0].mxu0 %v612
          %v1302 = vpop.f32.mrb[0].mxu0
          %v1303 = vadd.f32 0.0, %v1302
          %v1304 = vpop.f32.mrb[0].mxu0
          %1305 = vmatprep.mubr.f32.mxu0 0.0
          %1306 = vmatmul.mubr.f32.gmra.mrb[0].mxu0 %v613
          %v1307 = vpop.f32.mrb[0].mxu0
          %v1308 = vadd.f32 0.0, %v1307
          %v1309 = vpop.f32.mrb[0].mxu0
          %1310 = vmatprep.mubr.f32.mxu0 0.0
          %1311 = vmatmul.mubr.f32.gmra.mrb[0].mxu0 %v614
          %v1312 = vpop.f32.mrb[0].mxu0
          %v1313 = vadd.f32 0.0, %v1312
          %v1314 = vpop.f32.mrb[0].mxu0
          %1315 = vmatprep.mubr.f32.mxu0 0.0
          %1316 = vmatmul.mubr.f32.gmra.mrb[0].mxu0 %v615
          %v1317 = vpop.f32.mrb[0].mxu0
          %v1318 = vadd.f32 0.0, %v1317
          %v1319 = vpop.f32.mrb[0].mxu0
          %1320 = vmatprep.mubr.f32.mxu0 0.0
          %1321 = vmatmul.mubr.f32.gmra.mrb[0].mxu0 %v616
          %v1322 = vpop.f32.mrb[0].mxu0
          %v1323 = vadd.f32 0.0, %v1322
          %v1324 = vpop.f32.mrb[0].mxu0
          %1325 = vmatprep.mubr.f32.mxu0 0.0
          %1326 = vmatmul.mubr.f32.gmra.mrb[0].mxu0 %v617
          %v1327 = vpop.f32.mrb[0].mxu0
          %v1328 = vadd.f32 0.0, %v1327
          %v1329 = vpop.f32.mrb[0].mxu0
          %1330 = vmatprep.mubr.f32.mxu0 0.0
          %1331 = vmatmul.mubr.f32.gmra.mrb[0].mxu0 %v618
          %v1332 = vpop.f32.mrb[0].mxu0
          %v1333 = vadd.f32 0.0, %v1332
          %v1334 = vpop.f32.mrb[0].mxu0
          %1335 = vmatprep.mubr.f32.mxu0 0.0
          %1336 = vmatmul.mubr.f32.gmra.mrb[0].mxu0 %v619
          %v1337 = vpop.f32.mrb[0].mxu0
          %v1338 = vadd.f32 0.0, %v1337
          %v1339 = vpop.f32.mrb[0].mxu0
          %1340 = vdwg.mxu0
          %v1341 = vpack.c.bf16 %v708, %v703
          %v1342 = vpack.c.bf16 %v718, %v713
          %v1343 = vpack.c.bf16 %v728, %v723
          %v1344 = vpack.c.bf16 %v738, %v733
          %v1345 = vpack.c.bf16 %v748, %v743
          %v1346 = vpack.c.bf16 %v758, %v753
          %v1347 = vpack.c.bf16 %v768, %v763
          %v1348 = vpack.c.bf16 %v778, %v773
          %v1349 = vpack.c.bf16 %v788, %v783
          %v1350 = vpack.c.bf16 %v798, %v793
          %v1351 = vpack.c.bf16 %v808, %v803
          %v1352 = vpack.c.bf16 %v818, %v813
          %v1353 = vpack.c.bf16 %v828, %v823
          %v1354 = vpack.c.bf16 %v838, %v833
          %v1355 = vpack.c.bf16 %v848, %v843
          %v1356 = vpack.c.bf16 %v858, %v853
          %v1357 = vpack.c.bf16 %v868, %v863
          %v1358 = vpack.c.bf16 %v878, %v873
          %v1359 = vpack.c.bf16 %v888, %v883
          %v1360 = vpack.c.bf16 %v898, %v893
          %v1361 = vpack.c.bf16 %v908, %v903
          %v1362 = vpack.c.bf16 %v918, %v913
          %v1363 = vpack.c.bf16 %v928, %v923
          %v1364 = vpack.c.bf16 %v938, %v933
          %v1365 = vpack.c.bf16 %v948, %v943
          %v1366 = vpack.c.bf16 %v958, %v953
          %v1367 = vpack.c.bf16 %v968, %v963
          %v1368 = vpack.c.bf16 %v978, %v973
          %v1369 = vpack.c.bf16 %v988, %v983
          %v1370 = vpack.c.bf16 %v998, %v993
          %v1371 = vpack.c.bf16 %v1008, %v1003
          %v1372 = vpack.c.bf16 %v1018, %v1013
          %v1373 = vpack.c.bf16 %v1028, %v1023
          %v1374 = vpack.c.bf16 %v1038, %v1033
          %v1375 = vpack.c.bf16 %v1048, %v1043
          %v1376 = vpack.c.bf16 %v1058, %v1053
          %v1377 = vpack.c.bf16 %v1068, %v1063
          %v1378 = vpack.c.bf16 %v1078, %v1073
          %v1379 = vpack.c.bf16 %v1088, %v1083
          %v1380 = vpack.c.bf16 %v1098, %v1093
          %v1381 = vpack.c.bf16 %v1108, %v1103
          %v1382 = vpack.c.bf16 %v1118, %v1113
          %v1383 = vpack.c.bf16 %v1128, %v1123
          %v1384 = vpack.c.bf16 %v1138, %v1133
          %v1385 = vpack.c.bf16 %v1148, %v1143
          %v1386 = vpack.c.bf16 %v1158, %v1153
          %v1387 = vpack.c.bf16 %v1168, %v1163
          %v1388 = vpack.c.bf16 %v1178, %v1173
          %v1389 = vpack.c.bf16 %v1188, %v1183
          %v1390 = vpack.c.bf16 %v1198, %v1193
          %v1391 = vpack.c.bf16 %v1208, %v1203
          %v1392 = vpack.c.bf16 %v1218, %v1213
          %v1393 = vpack.c.bf16 %v1228, %v1223
          %v1394 = vpack.c.bf16 %v1238, %v1233
          %v1395 = vpack.c.bf16 %v1248, %v1243
          %v1396 = vpack.c.bf16 %v1258, %v1253
          %v1397 = vpack.c.bf16 %v1268, %v1263
          %v1398 = vpack.c.bf16 %v1278, %v1273
          %v1399 = vpack.c.bf16 %v1288, %v1283
          %v1400 = vpack.c.bf16 %v1298, %v1293
          %v1401 = vpack.c.bf16 %v1308, %v1303
          %v1402 = vpack.c.bf16 %v1318, %v1313
          %v1403 = vpack.c.bf16 %v1328, %v1323
          %v1404 = vpack.c.bf16 %v1338, %v1333
          %1405 = vst [vmem:[#allocation2] sm:$0xff] %v1341
          %1406 = vst [vmem:[#allocation2 + $0x8] sm:$0xff] %v1342
          %1407 = vst [vmem:[#allocation2 + $0x10] sm:$0xff] %v1343
          %1408 = vst [vmem:[#allocation2 + $0x18] sm:$0xff] %v1344
          %1409 = vst [vmem:[#allocation2 + $0x20] sm:$0xff] %v1345
          %1410 = vst [vmem:[#allocation2 + $0x28] sm:$0xff] %v1346
          %1411 = vst [vmem:[#allocation2 + $0x30] sm:$0xff] %v1347
          %1412 = vst [vmem:[#allocation2 + $0x38] sm:$0xff] %v1348
          %1413 = vst [vmem:[#allocation2 + $0x40] sm:$0xff] %v1349
          %1414 = vst [vmem:[#allocation2 + $0x48] sm:$0xff] %v1350
          %1415 = vst [vmem:[#allocation2 + $0x50] sm:$0xff] %v1351
          %1416 = vst [vmem:[#allocation2 + $0x58] sm:$0xff] %v1352
          %1417 = vst [vmem:[#allocation2 + $0x60] sm:$0xff] %v1353
          %1418 = vst [vmem:[#allocation2 + $0x68] sm:$0xff] %v1354
          %1419 = vst [vmem:[#allocation2 + $0x70] sm:$0xff] %v1355
          %1420 = vst [vmem:[#allocation2 + $0x78] sm:$0xff] %v1356
          %1421 = vst [vmem:[#allocation2 + $0x80] sm:$0xff] %v1357
          %1422 = vst [vmem:[#allocation2 + $0x88] sm:$0xff] %v1358
          %1423 = vst [vmem:[#allocation2 + $0x90] sm:$0xff] %v1359
          %1424 = vst [vmem:[#allocation2 + $0x98] sm:$0xff] %v1360
          %1425 = vst [vmem:[#allocation2 + $0xa0] sm:$0xff] %v1361
          %1426 = vst [vmem:[#allocation2 + $0xa8] sm:$0xff] %v1362
          %1427 = vst [vmem:[#allocation2 + $0xb0] sm:$0xff] %v1363
          %1428 = vst [vmem:[#allocation2 + $0xb8] sm:$0xff] %v1364
          %1429 = vst [vmem:[#allocation2 + $0xc0] sm:$0xff] %v1365
          %1430 = vst [vmem:[#allocation2 + $0xc8] sm:$0xff] %v1366
          %1431 = vst [vmem:[#allocation2 + $0xd0] sm:$0xff] %v1367
          %1432 = vst [vmem:[#allocation2 + $0xd8] sm:$0xff] %v1368
          %1433 = vst [vmem:[#allocation2 + $0xe0] sm:$0xff] %v1369
          %1434 = vst [vmem:[#allocation2 + $0xe8] sm:$0xff] %v1370
          %1435 = vst [vmem:[#allocation2 + $0xf0] sm:$0xff] %v1371
          %1436 = vst [vmem:[#allocation2 + $0xf8] sm:$0xff] %v1372
          %1437 = vst [vmem:[#allocation2 + $0x100] sm:$0xff] %v1373
          %1438 = vst [vmem:[#allocation2 + $0x108] sm:$0xff] %v1374
          %1439 = vst [vmem:[#allocation2 + $0x110] sm:$0xff] %v1375
          %1440 = vst [vmem:[#allocation2 + $0x118] sm:$0xff] %v1376
          %1441 = vst [vmem:[#allocation2 + $0x120] sm:$0xff] %v1377
          %1442 = vst [vmem:[#allocation2 + $0x128] sm:$0xff] %v1378
          %1443 = vst [vmem:[#allocation2 + $0x130] sm:$0xff] %v1379
          %1444 = vst [vmem:[#allocation2 + $0x138] sm:$0xff] %v1380
          %1445 = vst [vmem:[#allocation2 + $0x140] sm:$0xff] %v1381
          %1446 = vst [vmem:[#allocation2 + $0x148] sm:$0xff] %v1382
          %1447 = vst [vmem:[#allocation2 + $0x150] sm:$0xff] %v1383
          %1448 = vst [vmem:[#allocation2 + $0x158] sm:$0xff] %v1384
          %1449 = vst [vmem:[#allocation2 + $0x160] sm:$0xff] %v1385
          %1450 = vst [vmem:[#allocation2 + $0x168] sm:$0xff] %v1386
          %1451 = vst [vmem:[#allocation2 + $0x170] sm:$0xff] %v1387
          %1452 = vst [vmem:[#allocation2 + $0x178] sm:$0xff] %v1388
          %1453 = vst [vmem:[#allocation2 + $0x180] sm:$0xff] %v1389
          %1454 = vst [vmem:[#allocation2 + $0x188] sm:$0xff] %v1390
          %1455 = vst [vmem:[#allocation2 + $0x190] sm:$0xff] %v1391
          %1456 = vst [vmem:[#allocation2 + $0x198] sm:$0xff] %v1392
          %1457 = vst [vmem:[#allocation2 + $0x1a0] sm:$0xff] %v1393
          %1458 = vst [vmem:[#allocation2 + $0x1a8] sm:$0xff] %v1394
          %1459 = vst [vmem:[#allocation2 + $0x1b0] sm:$0xff] %v1395
          %1460 = vst [vmem:[#allocation2 + $0x1b8] sm:$0xff] %v1396
          %1461 = vst [vmem:[#allocation2 + $0x1c0] sm:$0xff] %v1397
          %1462 = vst [vmem:[#allocation2 + $0x1c8] sm:$0xff] %v1398
          %1463 = vst [vmem:[#allocation2 + $0x1d0] sm:$0xff] %v1399
          %1464 = vst [vmem:[#allocation2 + $0x1d8] sm:$0xff] %v1400
          %1465 = vst [vmem:[#allocation2 + $0x1e0] sm:$0xff] %v1401
          %1466 = vst [vmem:[#allocation2 + $0x1e8] sm:$0xff] %v1402
          %1467 = vst [vmem:[#allocation2 + $0x1f0] sm:$0xff] %v1403
          %1468 = vst [vmem:[#allocation2 + $0x1f8] sm:$0xff] %v1404
          %1469 = vst [vmem:[#allocation5] sm:$0xff] 0.0
        $region96: #{tpu_custom_call.1} parent=55 // pred_fallthru
          _
        // Predicated region
        $region97: #{tpu_custom_call.1} parent=55 // pred_check
          %p1470 = pneg %p486
        $region98: #{tpu_custom_call.1} parent=55 // pred_check_branch
          %1472 = sbr.rel (%p1470) target = $region100
        $region99: #{tpu_custom_call.1} parent=55 // pred_region
          %v1473 = vld [vmem:[%s410] sm:$0xff]
          %v1474 = vld [vmem:[%s410 + $0x8] sm:$0xff]
          %v1475 = vld [vmem:[%s410 + $0x10] sm:$0xff]
          %v1476 = vld [vmem:[%s410 + $0x18] sm:$0xff]
          %v1477 = vld [vmem:[%s410 + $0x20] sm:$0xff]
          %v1478 = vld [vmem:[%s410 + $0x28] sm:$0xff]
          %v1479 = vld [vmem:[%s410 + $0x30] sm:$0xff]
          %v1480 = vld [vmem:[%s410 + $0x38] sm:$0xff]
          %v1481 = vld [vmem:[%s410 + $0x40] sm:$0xff]
          %v1482 = vld [vmem:[%s410 + $0x48] sm:$0xff]
          %v1483 = vld [vmem:[%s410 + $0x50] sm:$0xff]
          %v1484 = vld [vmem:[%s410 + $0x58] sm:$0xff]
          %v1485 = vld [vmem:[%s410 + $0x60] sm:$0xff]
          %v1486 = vld [vmem:[%s410 + $0x68] sm:$0xff]
          %v1487 = vld [vmem:[%s410 + $0x70] sm:$0xff]
          %v1488 = vld [vmem:[%s410 + $0x78] sm:$0xff]
          %v1489 = vld [vmem:[%s410 + $0x80] sm:$0xff]
          %v1490 = vld [vmem:[%s410 + $0x88] sm:$0xff]
          %v1491 = vld [vmem:[%s410 + $0x90] sm:$0xff]
          %v1492 = vld [vmem:[%s410 + $0x98] sm:$0xff]
          %v1493 = vld [vmem:[%s410 + $0xa0] sm:$0xff]
          %v1494 = vld [vmem:[%s410 + $0xa8] sm:$0xff]
          %v1495 = vld [vmem:[%s410 + $0xb0] sm:$0xff]
          %v1496 = vld [vmem:[%s410 + $0xb8] sm:$0xff]
          %v1497 = vld [vmem:[%s410 + $0xc0] sm:$0xff]
          %v1498 = vld [vmem:[%s410 + $0xc8] sm:$0xff]
          %v1499 = vld [vmem:[%s410 + $0xd0] sm:$0xff]
          %v1500 = vld [vmem:[%s410 + $0xd8] sm:$0xff]
          %v1501 = vld [vmem:[%s410 + $0xe0] sm:$0xff]
          %v1502 = vld [vmem:[%s410 + $0xe8] sm:$0xff]
          %v1503 = vld [vmem:[%s410 + $0xf0] sm:$0xff]
          %v1504 = vld [vmem:[%s410 + $0xf8] sm:$0xff]
          %v1505 = vld [vmem:[%s410 + $0x100] sm:$0xff]
          %v1506 = vld [vmem:[%s410 + $0x108] sm:$0xff]
          %v1507 = vld [vmem:[%s410 + $0x110] sm:$0xff]
          %v1508 = vld [vmem:[%s410 + $0x118] sm:$0xff]
          %v1509 = vld [vmem:[%s410 + $0x120] sm:$0xff]
          %v1510 = vld [vmem:[%s410 + $0x128] sm:$0xff]
          %v1511 = vld [vmem:[%s410 + $0x130] sm:$0xff]
          %v1512 = vld [vmem:[%s410 + $0x138] sm:$0xff]
          %v1513 = vld [vmem:[%s410 + $0x140] sm:$0xff]
          %v1514 = vld [vmem:[%s410 + $0x148] sm:$0xff]
          %v1515 = vld [vmem:[%s410 + $0x150] sm:$0xff]
          %v1516 = vld [vmem:[%s410 + $0x158] sm:$0xff]
          %v1517 = vld [vmem:[%s410 + $0x160] sm:$0xff]
          %v1518 = vld [vmem:[%s410 + $0x168] sm:$0xff]
          %v1519 = vld [vmem:[%s410 + $0x170] sm:$0xff]
          %v1520 = vld [vmem:[%s410 + $0x178] sm:$0xff]
          %v1521 = vld [vmem:[%s410 + $0x180] sm:$0xff]
          %v1522 = vld [vmem:[%s410 + $0x188] sm:$0xff]
          %v1523 = vld [vmem:[%s410 + $0x190] sm:$0xff]
          %v1524 = vld [vmem:[%s410 + $0x198] sm:$0xff]
          %v1525 = vld [vmem:[%s410 + $0x1a0] sm:$0xff]
          %v1526 = vld [vmem:[%s410 + $0x1a8] sm:$0xff]
          %v1527 = vld [vmem:[%s410 + $0x1b0] sm:$0xff]
          %v1528 = vld [vmem:[%s410 + $0x1b8] sm:$0xff]
          %v1529 = vld [vmem:[%s410 + $0x1c0] sm:$0xff]
          %v1530 = vld [vmem:[%s410 + $0x1c8] sm:$0xff]
          %v1531 = vld [vmem:[%s410 + $0x1d0] sm:$0xff]
          %v1532 = vld [vmem:[%s410 + $0x1d8] sm:$0xff]
          %v1533 = vld [vmem:[%s410 + $0x1e0] sm:$0xff]
          %v1534 = vld [vmem:[%s410 + $0x1e8] sm:$0xff]
          %v1535 = vld [vmem:[%s410 + $0x1f0] sm:$0xff]
          %v1536 = vld [vmem:[%s410 + $0x1f8] sm:$0xff]
          %v1537 = vld [vmem:[%s410 + $0x200] sm:$0xff]
          %v1538 = vld [vmem:[%s410 + $0x208] sm:$0xff]
          %v1539 = vld [vmem:[%s410 + $0x210] sm:$0xff]
          %v1540 = vld [vmem:[%s410 + $0x218] sm:$0xff]
          %v1541 = vld [vmem:[%s410 + $0x220] sm:$0xff]
          %v1542 = vld [vmem:[%s410 + $0x228] sm:$0xff]
          %v1543 = vld [vmem:[%s410 + $0x230] sm:$0xff]
          %v1544 = vld [vmem:[%s410 + $0x238] sm:$0xff]
          %v1545 = vld [vmem:[%s410 + $0x240] sm:$0xff]
          %v1546 = vld [vmem:[%s410 + $0x248] sm:$0xff]
          %v1547 = vld [vmem:[%s410 + $0x250] sm:$0xff]
          %v1548 = vld [vmem:[%s410 + $0x258] sm:$0xff]
          %v1549 = vld [vmem:[%s410 + $0x260] sm:$0xff]
          %v1550 = vld [vmem:[%s410 + $0x268] sm:$0xff]
          %v1551 = vld [vmem:[%s410 + $0x270] sm:$0xff]
          %v1552 = vld [vmem:[%s410 + $0x278] sm:$0xff]
          %v1553 = vld [vmem:[%s410 + $0x280] sm:$0xff]
          %v1554 = vld [vmem:[%s410 + $0x288] sm:$0xff]
          %v1555 = vld [vmem:[%s410 + $0x290] sm:$0xff]
          %v1556 = vld [vmem:[%s410 + $0x298] sm:$0xff]
          %v1557 = vld [vmem:[%s410 + $0x2a0] sm:$0xff]
          %v1558 = vld [vmem:[%s410 + $0x2a8] sm:$0xff]
          %v1559 = vld [vmem:[%s410 + $0x2b0] sm:$0xff]
          %v1560 = vld [vmem:[%s410 + $0x2b8] sm:$0xff]
          %v1561 = vld [vmem:[%s410 + $0x2c0] sm:$0xff]
          %v1562 = vld [vmem:[%s410 + $0x2c8] sm:$0xff]
          %v1563 = vld [vmem:[%s410 + $0x2d0] sm:$0xff]
          %v1564 = vld [vmem:[%s410 + $0x2d8] sm:$0xff]
          %v1565 = vld [vmem:[%s410 + $0x2e0] sm:$0xff]
          %v1566 = vld [vmem:[%s410 + $0x2e8] sm:$0xff]
          %v1567 = vld [vmem:[%s410 + $0x2f0] sm:$0xff]
          %v1568 = vld [vmem:[%s410 + $0x2f8] sm:$0xff]
          %v1569 = vld [vmem:[%s410 + $0x300] sm:$0xff]
          %v1570 = vld [vmem:[%s410 + $0x308] sm:$0xff]
          %v1571 = vld [vmem:[%s410 + $0x310] sm:$0xff]
          %v1572 = vld [vmem:[%s410 + $0x318] sm:$0xff]
          %v1573 = vld [vmem:[%s410 + $0x320] sm:$0xff]
          %v1574 = vld [vmem:[%s410 + $0x328] sm:$0xff]
          %v1575 = vld [vmem:[%s410 + $0x330] sm:$0xff]
          %v1576 = vld [vmem:[%s410 + $0x338] sm:$0xff]
          %v1577 = vld [vmem:[%s410 + $0x340] sm:$0xff]
          %v1578 = vld [vmem:[%s410 + $0x348] sm:$0xff]
          %v1579 = vld [vmem:[%s410 + $0x350] sm:$0xff]
          %v1580 = vld [vmem:[%s410 + $0x358] sm:$0xff]
          %v1581 = vld [vmem:[%s410 + $0x360] sm:$0xff]
          %v1582 = vld [vmem:[%s410 + $0x368] sm:$0xff]
          %v1583 = vld [vmem:[%s410 + $0x370] sm:$0xff]
          %v1584 = vld [vmem:[%s410 + $0x378] sm:$0xff]
          %v1585 = vld [vmem:[%s410 + $0x380] sm:$0xff]
          %v1586 = vld [vmem:[%s410 + $0x388] sm:$0xff]
          %v1587 = vld [vmem:[%s410 + $0x390] sm:$0xff]
          %v1588 = vld [vmem:[%s410 + $0x398] sm:$0xff]
          %v1589 = vld [vmem:[%s410 + $0x3a0] sm:$0xff]
          %v1590 = vld [vmem:[%s410 + $0x3a8] sm:$0xff]
          %v1591 = vld [vmem:[%s410 + $0x3b0] sm:$0xff]
          %v1592 = vld [vmem:[%s410 + $0x3b8] sm:$0xff]
          %v1593 = vld [vmem:[%s410 + $0x3c0] sm:$0xff]
          %v1594 = vld [vmem:[%s410 + $0x3c8] sm:$0xff]
          %v1595 = vld [vmem:[%s410 + $0x3d0] sm:$0xff]
          %v1596 = vld [vmem:[%s410 + $0x3d8] sm:$0xff]
          %v1597 = vld [vmem:[%s410 + $0x3e0] sm:$0xff]
          %v1598 = vld [vmem:[%s410 + $0x3e8] sm:$0xff]
          %v1599 = vld [vmem:[%s410 + $0x3f0] sm:$0xff]
          %v1600 = vld [vmem:[%s410 + $0x3f8] sm:$0xff]
          %v1601 = vld [vmem:[#allocation2] sm:$0xff]
          %v1602 = vld [vmem:[#allocation2 + $0x8] sm:$0xff]
          %v1603 = vld [vmem:[#allocation2 + $0x10] sm:$0xff]
          %v1604 = vld [vmem:[#allocation2 + $0x18] sm:$0xff]
          %v1605 = vld [vmem:[#allocation2 + $0x20] sm:$0xff]
          %v1606 = vld [vmem:[#allocation2 + $0x28] sm:$0xff]
          %v1607 = vld [vmem:[#allocation2 + $0x30] sm:$0xff]
          %v1608 = vld [vmem:[#allocation2 + $0x38] sm:$0xff]
          %v1609 = vld [vmem:[#allocation2 + $0x40] sm:$0xff]
          %v1610 = vld [vmem:[#allocation2 + $0x48] sm:$0xff]
          %v1611 = vld [vmem:[#allocation2 + $0x50] sm:$0xff]
          %v1612 = vld [vmem:[#allocation2 + $0x58] sm:$0xff]
          %v1613 = vld [vmem:[#allocation2 + $0x60] sm:$0xff]
          %v1614 = vld [vmem:[#allocation2 + $0x68] sm:$0xff]
          %v1615 = vld [vmem:[#allocation2 + $0x70] sm:$0xff]
          %v1616 = vld [vmem:[#allocation2 + $0x78] sm:$0xff]
          %v1617 = vld [vmem:[#allocation2 + $0x80] sm:$0xff]
          %v1618 = vld [vmem:[#allocation2 + $0x88] sm:$0xff]
          %v1619 = vld [vmem:[#allocation2 + $0x90] sm:$0xff]
          %v1620 = vld [vmem:[#allocation2 + $0x98] sm:$0xff]
          %v1621 = vld [vmem:[#allocation2 + $0xa0] sm:$0xff]
          %v1622 = vld [vmem:[#allocation2 + $0xa8] sm:$0xff]
          %v1623 = vld [vmem:[#allocation2 + $0xb0] sm:$0xff]
          %v1624 = vld [vmem:[#allocation2 + $0xb8] sm:$0xff]
          %v1625 = vld [vmem:[#allocation2 + $0xc0] sm:$0xff]
          %v1626 = vld [vmem:[#allocation2 + $0xc8] sm:$0xff]
          %v1627 = vld [vmem:[#allocation2 + $0xd0] sm:$0xff]
          %v1628 = vld [vmem:[#allocation2 + $0xd8] sm:$0xff]
          %v1629 = vld [vmem:[#allocation2 + $0xe0] sm:$0xff]
          %v1630 = vld [vmem:[#allocation2 + $0xe8] sm:$0xff]
          %v1631 = vld [vmem:[#allocation2 + $0xf0] sm:$0xff]
          %v1632 = vld [vmem:[#allocation2 + $0xf8] sm:$0xff]
          %v1633 = vld [vmem:[#allocation2 + $0x100] sm:$0xff]
          %v1634 = vld [vmem:[#allocation2 + $0x108] sm:$0xff]
          %v1635 = vld [vmem:[#allocation2 + $0x110] sm:$0xff]
          %v1636 = vld [vmem:[#allocation2 + $0x118] sm:$0xff]
          %v1637 = vld [vmem:[#allocation2 + $0x120] sm:$0xff]
          %v1638 = vld [vmem:[#allocation2 + $0x128] sm:$0xff]
          %v1639 = vld [vmem:[#allocation2 + $0x130] sm:$0xff]
          %v1640 = vld [vmem:[#allocation2 + $0x138] sm:$0xff]
          %v1641 = vld [vmem:[#allocation2 + $0x140] sm:$0xff]
          %v1642 = vld [vmem:[#allocation2 + $0x148] sm:$0xff]
          %v1643 = vld [vmem:[#allocation2 + $0x150] sm:$0xff]
          %v1644 = vld [vmem:[#allocation2 + $0x158] sm:$0xff]
          %v1645 = vld [vmem:[#allocation2 + $0x160] sm:$0xff]
          %v1646 = vld [vmem:[#allocation2 + $0x168] sm:$0xff]
          %v1647 = vld [vmem:[#allocation2 + $0x170] sm:$0xff]
          %v1648 = vld [vmem:[#allocation2 + $0x178] sm:$0xff]
          %v1649 = vld [vmem:[#allocation2 + $0x180] sm:$0xff]
          %v1650 = vld [vmem:[#allocation2 + $0x188] sm:$0xff]
          %v1651 = vld [vmem:[#allocation2 + $0x190] sm:$0xff]
          %v1652 = vld [vmem:[#allocation2 + $0x198] sm:$0xff]
          %v1653 = vld [vmem:[#allocation2 + $0x1a0] sm:$0xff]
          %v1654 = vld [vmem:[#allocation2 + $0x1a8] sm:$0xff]
          %v1655 = vld [vmem:[#allocation2 + $0x1b0] sm:$0xff]
          %v1656 = vld [vmem:[#allocation2 + $0x1b8] sm:$0xff]
          %v1657 = vld [vmem:[#allocation2 + $0x1c0] sm:$0xff]
          %v1658 = vld [vmem:[#allocation2 + $0x1c8] sm:$0xff]
          %v1659 = vld [vmem:[#allocation2 + $0x1d0] sm:$0xff]
          %v1660 = vld [vmem:[#allocation2 + $0x1d8] sm:$0xff]
          %v1661 = vld [vmem:[#allocation2 + $0x1e0] sm:$0xff]
          %v1662 = vld [vmem:[#allocation2 + $0x1e8] sm:$0xff]
          %v1663 = vld [vmem:[#allocation2 + $0x1f0] sm:$0xff]
          %v1664 = vld [vmem:[#allocation2 + $0x1f8] sm:$0xff]
          %v1665 = vld [vmem:[#allocation12] sm:$0x1]
          %v1667 = vlaneseq
          %v1668 = vshrl.u32 %v1667, 7
          %v1669 = vsub.s32 0, %v1668
          %v1670 = vrot.slane %v1665, %v1669
          %v1800 = vunpack.c.l.b16 %v1473
          %v1801 = vunpack.c.h.b16 %v1473
          %v1802 = vunpack.c.l.b16 %v1474
          %v1803 = vunpack.c.h.b16 %v1474
          %v1804 = vunpack.c.l.b16 %v1475
          %v1805 = vunpack.c.h.b16 %v1475
          %v1806 = vunpack.c.l.b16 %v1476
          %v1807 = vunpack.c.h.b16 %v1476
          %v1808 = vunpack.c.l.b16 %v1477
          %v1809 = vunpack.c.h.b16 %v1477
          %v1810 = vunpack.c.l.b16 %v1478
          %v1811 = vunpack.c.h.b16 %v1478
          %v1812 = vunpack.c.l.b16 %v1479
          %v1813 = vunpack.c.h.b16 %v1479
          %v1814 = vunpack.c.l.b16 %v1480
          %v1815 = vunpack.c.h.b16 %v1480
          %v1816 = vunpack.c.l.b16 %v1481
          %v1817 = vunpack.c.h.b16 %v1481
          %v1818 = vunpack.c.l.b16 %v1482
          %v1819 = vunpack.c.h.b16 %v1482
          %v1820 = vunpack.c.l.b16 %v1483
          %v1821 = vunpack.c.h.b16 %v1483
          %v1822 = vunpack.c.l.b16 %v1484
          %v1823 = vunpack.c.h.b16 %v1484
          %v1824 = vunpack.c.l.b16 %v1485
          %v1825 = vunpack.c.h.b16 %v1485
          %v1826 = vunpack.c.l.b16 %v1486
          %v1827 = vunpack.c.h.b16 %v1486
          %v1828 = vunpack.c.l.b16 %v1487
          %v1829 = vunpack.c.h.b16 %v1487
          %v1830 = vunpack.c.l.b16 %v1488
          %v1831 = vunpack.c.h.b16 %v1488
          %v1832 = vunpack.c.l.b16 %v1489
          %v1833 = vunpack.c.h.b16 %v1489
          %v1834 = vunpack.c.l.b16 %v1490
          %v1835 = vunpack.c.h.b16 %v1490
          %v1836 = vunpack.c.l.b16 %v1491
          %v1837 = vunpack.c.h.b16 %v1491
          %v1838 = vunpack.c.l.b16 %v1492
          %v1839 = vunpack.c.h.b16 %v1492
          %v1840 = vunpack.c.l.b16 %v1493
          %v1841 = vunpack.c.h.b16 %v1493
          %v1842 = vunpack.c.l.b16 %v1494
          %v1843 = vunpack.c.h.b16 %v1494
          %v1844 = vunpack.c.l.b16 %v1495
          %v1845 = vunpack.c.h.b16 %v1495
          %v1846 = vunpack.c.l.b16 %v1496
          %v1847 = vunpack.c.h.b16 %v1496
          %v1848 = vunpack.c.l.b16 %v1497
          %v1849 = vunpack.c.h.b16 %v1497
          %v1850 = vunpack.c.l.b16 %v1498
          %v1851 = vunpack.c.h.b16 %v1498
          %v1852 = vunpack.c.l.b16 %v1499
          %v1853 = vunpack.c.h.b16 %v1499
          %v1854 = vunpack.c.l.b16 %v1500
          %v1855 = vunpack.c.h.b16 %v1500
          %v1856 = vunpack.c.l.b16 %v1501
          %v1857 = vunpack.c.h.b16 %v1501
          %v1858 = vunpack.c.l.b16 %v1502
          %v1859 = vunpack.c.h.b16 %v1502
          %v1860 = vunpack.c.l.b16 %v1503
          %v1861 = vunpack.c.h.b16 %v1503
          %v1862 = vunpack.c.l.b16 %v1504
          %v1863 = vunpack.c.h.b16 %v1504
          %v1864 = vunpack.c.l.b16 %v1505
          %v1865 = vunpack.c.h.b16 %v1505
          %v1866 = vunpack.c.l.b16 %v1506
          %v1867 = vunpack.c.h.b16 %v1506
          %v1868 = vunpack.c.l.b16 %v1507
          %v1869 = vunpack.c.h.b16 %v1507
          %v1870 = vunpack.c.l.b16 %v1508
          %v1871 = vunpack.c.h.b16 %v1508
          %v1872 = vunpack.c.l.b16 %v1509
          %v1873 = vunpack.c.h.b16 %v1509
          %v1874 = vunpack.c.l.b16 %v1510
          %v1875 = vunpack.c.h.b16 %v1510
          %v1876 = vunpack.c.l.b16 %v1511
          %v1877 = vunpack.c.h.b16 %v1511
          %v1878 = vunpack.c.l.b16 %v1512
          %v1879 = vunpack.c.h.b16 %v1512
          %v1880 = vunpack.c.l.b16 %v1513
          %v1881 = vunpack.c.h.b16 %v1513
          %v1882 = vunpack.c.l.b16 %v1514
          %v1883 = vunpack.c.h.b16 %v1514
          %v1884 = vunpack.c.l.b16 %v1515
          %v1885 = vunpack.c.h.b16 %v1515
          %v1886 = vunpack.c.l.b16 %v1516
          %v1887 = vunpack.c.h.b16 %v1516
          %v1888 = vunpack.c.l.b16 %v1517
          %v1889 = vunpack.c.h.b16 %v1517
          %v1890 = vunpack.c.l.b16 %v1518
          %v1891 = vunpack.c.h.b16 %v1518
          %v1892 = vunpack.c.l.b16 %v1519
          %v1893 = vunpack.c.h.b16 %v1519
          %v1894 = vunpack.c.l.b16 %v1520
          %v1895 = vunpack.c.h.b16 %v1520
          %v1896 = vunpack.c.l.b16 %v1521
          %v1897 = vunpack.c.h.b16 %v1521
          %v1898 = vunpack.c.l.b16 %v1522
          %v1899 = vunpack.c.h.b16 %v1522
          %v1900 = vunpack.c.l.b16 %v1523
          %v1901 = vunpack.c.h.b16 %v1523
          %v1902 = vunpack.c.l.b16 %v1524
          %v1903 = vunpack.c.h.b16 %v1524
          %v1904 = vunpack.c.l.b16 %v1525
          %v1905 = vunpack.c.h.b16 %v1525
          %v1906 = vunpack.c.l.b16 %v1526
          %v1907 = vunpack.c.h.b16 %v1526
          %v1908 = vunpack.c.l.b16 %v1527
          %v1909 = vunpack.c.h.b16 %v1527
          %v1910 = vunpack.c.l.b16 %v1528
          %v1911 = vunpack.c.h.b16 %v1528
          %v1912 = vunpack.c.l.b16 %v1529
          %v1913 = vunpack.c.h.b16 %v1529
          %v1914 = vunpack.c.l.b16 %v1530
          %v1915 = vunpack.c.h.b16 %v1530
          %v1916 = vunpack.c.l.b16 %v1531
          %v1917 = vunpack.c.h.b16 %v1531
          %v1918 = vunpack.c.l.b16 %v1532
          %v1919 = vunpack.c.h.b16 %v1532
          %v1920 = vunpack.c.l.b16 %v1533
          %v1921 = vunpack.c.h.b16 %v1533
          %v1922 = vunpack.c.l.b16 %v1534
          %v1923 = vunpack.c.h.b16 %v1534
          %v1924 = vunpack.c.l.b16 %v1535
          %v1925 = vunpack.c.h.b16 %v1535
          %v1926 = vunpack.c.l.b16 %v1536
          %v1927 = vunpack.c.h.b16 %v1536
          %v1928 = vunpack.c.l.b16 %v1537
          %v1929 = vunpack.c.h.b16 %v1537
          %v1930 = vunpack.c.l.b16 %v1538
          %v1931 = vunpack.c.h.b16 %v1538
          %v1932 = vunpack.c.l.b16 %v1539
          %v1933 = vunpack.c.h.b16 %v1539
          %v1934 = vunpack.c.l.b16 %v1540
          %v1935 = vunpack.c.h.b16 %v1540
          %v1936 = vunpack.c.l.b16 %v1541
          %v1937 = vunpack.c.h.b16 %v1541
          %v1938 = vunpack.c.l.b16 %v1542
          %v1939 = vunpack.c.h.b16 %v1542
          %v1940 = vunpack.c.l.b16 %v1543
          %v1941 = vunpack.c.h.b16 %v1543
          %v1942 = vunpack.c.l.b16 %v1544
          %v1943 = vunpack.c.h.b16 %v1544
          %v1944 = vunpack.c.l.b16 %v1545
          %v1945 = vunpack.c.h.b16 %v1545
          %v1946 = vunpack.c.l.b16 %v1546
          %v1947 = vunpack.c.h.b16 %v1546
          %v1948 = vunpack.c.l.b16 %v1547
          %v1949 = vunpack.c.h.b16 %v1547
          %v1950 = vunpack.c.l.b16 %v1548
          %v1951 = vunpack.c.h.b16 %v1548
          %v1952 = vunpack.c.l.b16 %v1549
          %v1953 = vunpack.c.h.b16 %v1549
          %v1954 = vunpack.c.l.b16 %v1550
          %v1955 = vunpack.c.h.b16 %v1550
          %v1956 = vunpack.c.l.b16 %v1551
          %v1957 = vunpack.c.h.b16 %v1551
          %v1958 = vunpack.c.l.b16 %v1552
          %v1959 = vunpack.c.h.b16 %v1552
          %v1960 = vunpack.c.l.b16 %v1553
          %v1961 = vunpack.c.h.b16 %v1553
          %v1962 = vunpack.c.l.b16 %v1554
          %v1963 = vunpack.c.h.b16 %v1554
          %v1964 = vunpack.c.l.b16 %v1555
          %v1965 = vunpack.c.h.b16 %v1555
          %v1966 = vunpack.c.l.b16 %v1556
          %v1967 = vunpack.c.h.b16 %v1556
          %v1968 = vunpack.c.l.b16 %v1557
          %v1969 = vunpack.c.h.b16 %v1557
          %v1970 = vunpack.c.l.b16 %v1558
          %v1971 = vunpack.c.h.b16 %v1558
          %v1972 = vunpack.c.l.b16 %v1559
          %v1973 = vunpack.c.h.b16 %v1559
          %v1974 = vunpack.c.l.b16 %v1560
          %v1975 = vunpack.c.h.b16 %v1560
          %v1976 = vunpack.c.l.b16 %v1561
          %v1977 = vunpack.c.h.b16 %v1561
          %v1978 = vunpack.c.l.b16 %v1562
          %v1979 = vunpack.c.h.b16 %v1562
          %v1980 = vunpack.c.l.b16 %v1563
          %v1981 = vunpack.c.h.b16 %v1563
          %v1982 = vunpack.c.l.b16 %v1564
          %v1983 = vunpack.c.h.b16 %v1564
          %v1984 = vunpack.c.l.b16 %v1565
          %v1985 = vunpack.c.h.b16 %v1565
          %v1986 = vunpack.c.l.b16 %v1566
          %v1987 = vunpack.c.h.b16 %v1566
          %v1988 = vunpack.c.l.b16 %v1567
          %v1989 = vunpack.c.h.b16 %v1567
          %v1990 = vunpack.c.l.b16 %v1568
          %v1991 = vunpack.c.h.b16 %v1568
          %v1992 = vunpack.c.l.b16 %v1569
          %v1993 = vunpack.c.h.b16 %v1569
          %v1994 = vunpack.c.l.b16 %v1570
          %v1995 = vunpack.c.h.b16 %v1570
          %v1996 = vunpack.c.l.b16 %v1571
          %v1997 = vunpack.c.h.b16 %v1571
          %v1998 = vunpack.c.l.b16 %v1572
          %v1999 = vunpack.c.h.b16 %v1572
          %v2000 = vunpack.c.l.b16 %v1573
          %v2001 = vunpack.c.h.b16 %v1573
          %v2002 = vunpack.c.l.b16 %v1574
          %v2003 = vunpack.c.h.b16 %v1574
          %v2004 = vunpack.c.l.b16 %v1575
          %v2005 = vunpack.c.h.b16 %v1575
          %v2006 = vunpack.c.l.b16 %v1576
          %v2007 = vunpack.c.h.b16 %v1576
          %v2008 = vunpack.c.l.b16 %v1577
          %v2009 = vunpack.c.h.b16 %v1577
          %v2010 = vunpack.c.l.b16 %v1578
          %v2011 = vunpack.c.h.b16 %v1578
          %v2012 = vunpack.c.l.b16 %v1579
          %v2013 = vunpack.c.h.b16 %v1579
          %v2014 = vunpack.c.l.b16 %v1580
          %v2015 = vunpack.c.h.b16 %v1580
          %v2016 = vunpack.c.l.b16 %v1581
          %v2017 = vunpack.c.h.b16 %v1581
          %v2018 = vunpack.c.l.b16 %v1582
          %v2019 = vunpack.c.h.b16 %v1582
          %v2020 = vunpack.c.l.b16 %v1583
          %v2021 = vunpack.c.h.b16 %v1583
          %v2022 = vunpack.c.l.b16 %v1584
          %v2023 = vunpack.c.h.b16 %v1584
          %v2024 = vunpack.c.l.b16 %v1585
          %v2025 = vunpack.c.h.b16 %v1585
          %v2026 = vunpack.c.l.b16 %v1586
          %v2027 = vunpack.c.h.b16 %v1586
          %v2028 = vunpack.c.l.b16 %v1587
          %v2029 = vunpack.c.h.b16 %v1587
          %v2030 = vunpack.c.l.b16 %v1588
          %v2031 = vunpack.c.h.b16 %v1588
          %v2032 = vunpack.c.l.b16 %v1589
          %v2033 = vunpack.c.h.b16 %v1589
          %v2034 = vunpack.c.l.b16 %v1590
          %v2035 = vunpack.c.h.b16 %v1590
          %v2036 = vunpack.c.l.b16 %v1591
          %v2037 = vunpack.c.h.b16 %v1591
          %v2038 = vunpack.c.l.b16 %v1592
          %v2039 = vunpack.c.h.b16 %v1592
          %v2040 = vunpack.c.l.b16 %v1593
          %v2041 = vunpack.c.h.b16 %v1593
          %v2042 = vunpack.c.l.b16 %v1594
          %v2043 = vunpack.c.h.b16 %v1594
          %v2044 = vunpack.c.l.b16 %v1595
          %v2045 = vunpack.c.h.b16 %v1595
          %v2046 = vunpack.c.l.b16 %v1596
          %v2047 = vunpack.c.h.b16 %v1596
          %v2048 = vunpack.c.l.b16 %v1597
          %v2049 = vunpack.c.h.b16 %v1597
          %v2050 = vunpack.c.l.b16 %v1598
          %v2051 = vunpack.c.h.b16 %v1598
          %v2052 = vunpack.c.l.b16 %v1599
          %v2053 = vunpack.c.h.b16 %v1599
          %v2054 = vunpack.c.l.b16 %v1600
          %v2055 = vunpack.c.h.b16 %v1600
          %v2056 = vpack.c.b16 %v1808, %v1800
          %v2057 = vpack.c.b16 %v1809, %v1801
          %v2058 = vpack.c.b16 %v1810, %v1802
          %v2059 = vpack.c.b16 %v1811, %v1803
          %v2060 = vpack.c.b16 %v1812, %v1804
          %v2061 = vpack.c.b16 %v1813, %v1805
          %v2062 = vpack.c.b16 %v1814, %v1806
          %v2063 = vpack.c.b16 %v1815, %v1807
          %v2064 = vpack.c.b16 %v1824, %v1816
          %v2065 = vpack.c.b16 %v1825, %v1817
          %v2066 = vpack.c.b16 %v1826, %v1818
          %v2067 = vpack.c.b16 %v1827, %v1819
          %v2068 = vpack.c.b16 %v1828, %v1820
          %v2069 = vpack.c.b16 %v1829, %v1821
          %v2070 = vpack.c.b16 %v1830, %v1822
          %v2071 = vpack.c.b16 %v1831, %v1823
          %v2072 = vpack.c.b16 %v1840, %v1832
          %v2073 = vpack.c.b16 %v1841, %v1833
          %v2074 = vpack.c.b16 %v1842, %v1834
          %v2075 = vpack.c.b16 %v1843, %v1835
          %v2076 = vpack.c.b16 %v1844, %v1836
          %v2077 = vpack.c.b16 %v1845, %v1837
          %v2078 = vpack.c.b16 %v1846, %v1838
          %v2079 = vpack.c.b16 %v1847, %v1839
          %v2080 = vpack.c.b16 %v1856, %v1848
          %v2081 = vpack.c.b16 %v1857, %v1849
          %v2082 = vpack.c.b16 %v1858, %v1850
          %v2083 = vpack.c.b16 %v1859, %v1851
          %v2084 = vpack.c.b16 %v1860, %v1852
          %v2085 = vpack.c.b16 %v1861, %v1853
          %v2086 = vpack.c.b16 %v1862, %v1854
          %v2087 = vpack.c.b16 %v1863, %v1855
          %v2088 = vpack.c.b16 %v1872, %v1864
          %v2089 = vpack.c.b16 %v1873, %v1865
          %v2090 = vpack.c.b16 %v1874, %v1866
          %v2091 = vpack.c.b16 %v1875, %v1867
          %v2092 = vpack.c.b16 %v1876, %v1868
          %v2093 = vpack.c.b16 %v1877, %v1869
          %v2094 = vpack.c.b16 %v1878, %v1870
          %v2095 = vpack.c.b16 %v1879, %v1871
          %v2096 = vpack.c.b16 %v1888, %v1880
          %v2097 = vpack.c.b16 %v1889, %v1881
          %v2098 = vpack.c.b16 %v1890, %v1882
          %v2099 = vpack.c.b16 %v1891, %v1883
          %v2100 = vpack.c.b16 %v1892, %v1884
          %v2101 = vpack.c.b16 %v1893, %v1885
          %v2102 = vpack.c.b16 %v1894, %v1886
          %v2103 = vpack.c.b16 %v1895, %v1887
          %v2104 = vpack.c.b16 %v1904, %v1896
          %v2105 = vpack.c.b16 %v1905, %v1897
          %v2106 = vpack.c.b16 %v1906, %v1898
          %v2107 = vpack.c.b16 %v1907, %v1899
          %v2108 = vpack.c.b16 %v1908, %v1900
          %v2109 = vpack.c.b16 %v1909, %v1901
          %v2110 = vpack.c.b16 %v1910, %v1902
          %v2111 = vpack.c.b16 %v1911, %v1903
          %v2112 = vpack.c.b16 %v1920, %v1912
          %v2113 = vpack.c.b16 %v1921, %v1913
          %v2114 = vpack.c.b16 %v1922, %v1914
          %v2115 = vpack.c.b16 %v1923, %v1915
          %v2116 = vpack.c.b16 %v1924, %v1916
          %v2117 = vpack.c.b16 %v1925, %v1917
          %v2118 = vpack.c.b16 %v1926, %v1918
          %v2119 = vpack.c.b16 %v1927, %v1919
          %v2120 = vpack.c.b16 %v1936, %v1928
          %v2121 = vpack.c.b16 %v1937, %v1929
          %v2122 = vpack.c.b16 %v1938, %v1930
          %v2123 = vpack.c.b16 %v1939, %v1931
          %v2124 = vpack.c.b16 %v1940, %v1932
          %v2125 = vpack.c.b16 %v1941, %v1933
          %v2126 = vpack.c.b16 %v1942, %v1934
          %v2127 = vpack.c.b16 %v1943, %v1935
          %v2128 = vpack.c.b16 %v1952, %v1944
          %v2129 = vpack.c.b16 %v1953, %v1945
          %v2130 = vpack.c.b16 %v1954, %v1946
          %v2131 = vpack.c.b16 %v1955, %v1947
          %v2132 = vpack.c.b16 %v1956, %v1948
          %v2133 = vpack.c.b16 %v1957, %v1949
          %v2134 = vpack.c.b16 %v1958, %v1950
          %v2135 = vpack.c.b16 %v1959, %v1951
          %v2136 = vpack.c.b16 %v1968, %v1960
          %v2137 = vpack.c.b16 %v1969, %v1961
          %v2138 = vpack.c.b16 %v1970, %v1962
          %v2139 = vpack.c.b16 %v1971, %v1963
          %v2140 = vpack.c.b16 %v1972, %v1964
          %v2141 = vpack.c.b16 %v1973, %v1965
          %v2142 = vpack.c.b16 %v1974, %v1966
          %v2143 = vpack.c.b16 %v1975, %v1967
          %v2144 = vpack.c.b16 %v1984, %v1976
          %v2145 = vpack.c.b16 %v1985, %v1977
          %v2146 = vpack.c.b16 %v1986, %v1978
          %v2147 = vpack.c.b16 %v1987, %v1979
          %v2148 = vpack.c.b16 %v1988, %v1980
          %v2149 = vpack.c.b16 %v1989, %v1981
          %v2150 = vpack.c.b16 %v1990, %v1982
          %v2151 = vpack.c.b16 %v1991, %v1983
          %v2152 = vpack.c.b16 %v2000, %v1992
          %v2153 = vpack.c.b16 %v2001, %v1993
          %v2154 = vpack.c.b16 %v2002, %v1994
          %v2155 = vpack.c.b16 %v2003, %v1995
          %v2156 = vpack.c.b16 %v2004, %v1996
          %v2157 = vpack.c.b16 %v2005, %v1997
          %v2158 = vpack.c.b16 %v2006, %v1998
          %v2159 = vpack.c.b16 %v2007, %v1999
          %v2160 = vpack.c.b16 %v2016, %v2008
          %v2161 = vpack.c.b16 %v2017, %v2009
          %v2162 = vpack.c.b16 %v2018, %v2010
          %v2163 = vpack.c.b16 %v2019, %v2011
          %v2164 = vpack.c.b16 %v2020, %v2012
          %v2165 = vpack.c.b16 %v2021, %v2013
          %v2166 = vpack.c.b16 %v2022, %v2014
          %v2167 = vpack.c.b16 %v2023, %v2015
          %v2168 = vpack.c.b16 %v2032, %v2024
          %v2169 = vpack.c.b16 %v2033, %v2025
          %v2170 = vpack.c.b16 %v2034, %v2026
          %v2171 = vpack.c.b16 %v2035, %v2027
          %v2172 = vpack.c.b16 %v2036, %v2028
          %v2173 = vpack.c.b16 %v2037, %v2029
          %v2174 = vpack.c.b16 %v2038, %v2030
          %v2175 = vpack.c.b16 %v2039, %v2031
          %v2176 = vpack.c.b16 %v2048, %v2040
          %v2177 = vpack.c.b16 %v2049, %v2041
          %v2178 = vpack.c.b16 %v2050, %v2042
          %v2179 = vpack.c.b16 %v2051, %v2043
          %v2180 = vpack.c.b16 %v2052, %v2044
          %v2181 = vpack.c.b16 %v2053, %v2045
          %v2182 = vpack.c.b16 %v2054, %v2046
          %v2183 = vpack.c.b16 %v2055, %v2047
          %2312 = vmatprep.subr.bf16.mxu0 0
          %2313 = vmatpush1.bf16.msra.mxu0 %v1601
          %2314 = vmatprep.subr.bf16.mxu0 0
          %2315 = vmatpush1.bf16.msra.mxu0 %v1602
          %2316 = vmatprep.subr.bf16.mxu0 0
          %2317 = vmatpush1.bf16.msra.mxu0 %v1603
          %2318 = vmatprep.subr.bf16.mxu0 0
          %2319 = vmatpush1.bf16.msra.mxu0 %v1604
          %2320 = vmatprep.subr.bf16.mxu0 0
          %2321 = vmatpush1.bf16.msra.mxu0 %v1605
          %2322 = vmatprep.subr.bf16.mxu0 0
          %2323 = vmatpush1.bf16.msra.mxu0 %v1606
          %2324 = vmatprep.subr.bf16.mxu0 0
          %2325 = vmatpush1.bf16.msra.mxu0 %v1607
          %2326 = vmatprep.subr.bf16.mxu0 0
          %2327 = vmatpush1.bf16.msra.mxu0 %v1608
          %2328 = vmatprep.subr.bf16.mxu0 0
          %2329 = vmatpush1.bf16.msra.mxu0 %v1609
          %2330 = vmatprep.subr.bf16.mxu0 0
          %2331 = vmatpush1.bf16.msra.mxu0 %v1610
          %2332 = vmatprep.subr.bf16.mxu0 0
          %2333 = vmatpush1.bf16.msra.mxu0 %v1611
          %2334 = vmatprep.subr.bf16.mxu0 0
          %2335 = vmatpush1.bf16.msra.mxu0 %v1612
          %2336 = vmatprep.subr.bf16.mxu0 0
          %2337 = vmatpush1.bf16.msra.mxu0 %v1613
          %2338 = vmatprep.subr.bf16.mxu0 0
          %2339 = vmatpush1.bf16.msra.mxu0 %v1614
          %2340 = vmatprep.subr.bf16.mxu0 0
          %2341 = vmatpush1.bf16.msra.mxu0 %v1615
          %2342 = vmatprep.subr.bf16.mxu0 0
          %2343 = vmatpush1.bf16.msra.mxu0 %v1616
          %2344 = vmatprep.mubr.bf16.mxu0 %v2057
          %2345 = vmatmul.mubr.bf16.gmra.mrb[0].mxu0 %v2056
          %v2346 = vpop.f32.mrb[0].mxu0
          %v2347 = vadd.f32 %v1670, %v2346
          %v2348 = vpop.f32.mrb[0].mxu0
          %v2349 = vpop.f32.mrb[0].mxu0
          %v2350 = vadd.f32 %v1670, %v2349
          %v2351 = vpop.f32.mrb[0].mxu0
          %2352 = vmatprep.mubr.bf16.mxu0 %v2065
          %2353 = vmatmul.mubr.bf16.gmra.mrb[0].mxu0 %v2064
          %v2354 = vpop.f32.mrb[0].mxu0
          %v2355 = vadd.f32 %v1670, %v2354
          %v2356 = vpop.f32.mrb[0].mxu0
          %v2357 = vpop.f32.mrb[0].mxu0
          %v2358 = vadd.f32 %v1670, %v2357
          %v2359 = vpop.f32.mrb[0].mxu0
          %2360 = vmatprep.mubr.bf16.mxu0 %v2073
          %2361 = vmatmul.mubr.bf16.gmra.mrb[0].mxu0 %v2072
          %v2362 = vpop.f32.mrb[0].mxu0
          %v2363 = vadd.f32 %v1670, %v2362
          %v2364 = vpop.f32.mrb[0].mxu0
          %v2365 = vpop.f32.mrb[0].mxu0
          %v2366 = vadd.f32 %v1670, %v2365
          %v2367 = vpop.f32.mrb[0].mxu0
          %2368 = vmatprep.mubr.bf16.mxu0 %v2081
          %2369 = vmatmul.mubr.bf16.gmra.mrb[0].mxu0 %v2080
          %v2370 = vpop.f32.mrb[0].mxu0
          %v2371 = vadd.f32 %v1670, %v2370
          %v2372 = vpop.f32.mrb[0].mxu0
          %v2373 = vpop.f32.mrb[0].mxu0
          %v2374 = vadd.f32 %v1670, %v2373
          %v2375 = vpop.f32.mrb[0].mxu0
          %2376 = vmatprep.mubr.bf16.mxu0 %v2089
          %2377 = vmatmul.mubr.bf16.gmra.mrb[0].mxu0 %v2088
          %v2378 = vpop.f32.mrb[0].mxu0
          %v2379 = vadd.f32 %v1670, %v2378
          %v2380 = vpop.f32.mrb[0].mxu0
          %v2381 = vpop.f32.mrb[0].mxu0
          %v2382 = vadd.f32 %v1670, %v2381
          %v2383 = vpop.f32.mrb[0].mxu0
          %2384 = vmatprep.mubr.bf16.mxu0 %v2097
          %2385 = vmatmul.mubr.bf16.gmra.mrb[0].mxu0 %v2096
          %v2386 = vpop.f32.mrb[0].mxu0
          %v2387 = vadd.f32 %v1670, %v2386
          %v2388 = vpop.f32.mrb[0].mxu0
          %v2389 = vpop.f32.mrb[0].mxu0
          %v2390 = vadd.f32 %v1670, %v2389
          %v2391 = vpop.f32.mrb[0].mxu0
          %2392 = vmatprep.mubr.bf16.mxu0 %v2105
          %2393 = vmatmul.mubr.bf16.gmra.mrb[0].mxu0 %v2104
          %v2394 = vpop.f32.mrb[0].mxu0
          %v2395 = vadd.f32 %v1670, %v2394
          %v2396 = vpop.f32.mrb[0].mxu0
          %v2397 = vpop.f32.mrb[0].mxu0
          %v2398 = vadd.f32 %v1670, %v2397
          %v2399 = vpop.f32.mrb[0].mxu0
          %2400 = vmatprep.mubr.bf16.mxu0 %v2113
          %2401 = vmatmul.mubr.bf16.gmra.mrb[0].mxu0 %v2112
          %v2402 = vpop.f32.mrb[0].mxu0
          %v2403 = vadd.f32 %v1670, %v2402
          %v2404 = vpop.f32.mrb[0].mxu0
          %v2405 = vpop.f32.mrb[0].mxu0
          %v2406 = vadd.f32 %v1670, %v2405
          %v2407 = vpop.f32.mrb[0].mxu0
          %2408 = vmatprep.mubr.bf16.mxu0 %v2121
          %2409 = vmatmul.mubr.bf16.gmra.mrb[0].mxu0 %v2120
          %v2410 = vpop.f32.mrb[0].mxu0
          %v2411 = vadd.f32 %v1670, %v2410
          %v2412 = vpop.f32.mrb[0].mxu0
          %v2413 = vpop.f32.mrb[0].mxu0
          %v2414 = vadd.f32 %v1670, %v2413
          %v2415 = vpop.f32.mrb[0].mxu0
          %2416 = vmatprep.mubr.bf16.mxu0 %v2129
          %2417 = vmatmul.mubr.bf16.gmra.mrb[0].mxu0 %v2128
          %v2418 = vpop.f32.mrb[0].mxu0
          %v2419 = vadd.f32 %v1670, %v2418
          %v2420 = vpop.f32.mrb[0].mxu0
          %v2421 = vpop.f32.mrb[0].mxu0
          %v2422 = vadd.f32 %v1670, %v2421
          %v2423 = vpop.f32.mrb[0].mxu0
          %2424 = vmatprep.mubr.bf16.mxu0 %v2137
          %2425 = vmatmul.mubr.bf16.gmra.mrb[0].mxu0 %v2136
          %v2426 = vpop.f32.mrb[0].mxu0
          %v2427 = vadd.f32 %v1670, %v2426
          %v2428 = vpop.f32.mrb[0].mxu0
          %v2429 = vpop.f32.mrb[0].mxu0
          %v2430 = vadd.f32 %v1670, %v2429
          %v2431 = vpop.f32.mrb[0].mxu0
          %2432 = vmatprep.mubr.bf16.mxu0 %v2145
          %2433 = vmatmul.mubr.bf16.gmra.mrb[0].mxu0 %v2144
          %v2434 = vpop.f32.mrb[0].mxu0
          %v2435 = vadd.f32 %v1670, %v2434
          %v2436 = vpop.f32.mrb[0].mxu0
          %v2437 = vpop.f32.mrb[0].mxu0
          %v2438 = vadd.f32 %v1670, %v2437
          %v2439 = vpop.f32.mrb[0].mxu0
          %2440 = vmatprep.mubr.bf16.mxu0 %v2153
          %2441 = vmatmul.mubr.bf16.gmra.mrb[0].mxu0 %v2152
          %v2442 = vpop.f32.mrb[0].mxu0
          %v2443 = vadd.f32 %v1670, %v2442
          %v2444 = vpop.f32.mrb[0].mxu0
          %v2445 = vpop.f32.mrb[0].mxu0
          %v2446 = vadd.f32 %v1670, %v2445
          %v2447 = vpop.f32.mrb[0].mxu0
          %2448 = vmatprep.mubr.bf16.mxu0 %v2161
          %2449 = vmatmul.mubr.bf16.gmra.mrb[0].mxu0 %v2160
          %v2450 = vpop.f32.mrb[0].mxu0
          %v2451 = vadd.f32 %v1670, %v2450
          %v2452 = vpop.f32.mrb[0].mxu0
          %v2453 = vpop.f32.mrb[0].mxu0
          %v2454 = vadd.f32 %v1670, %v2453
          %v2455 = vpop.f32.mrb[0].mxu0
          %2456 = vmatprep.mubr.bf16.mxu0 %v2169
          %2457 = vmatmul.mubr.bf16.gmra.mrb[0].mxu0 %v2168
          %v2458 = vpop.f32.mrb[0].mxu0
          %v2459 = vadd.f32 %v1670, %v2458
          %v2460 = vpop.f32.mrb[0].mxu0
          %v2461 = vpop.f32.mrb[0].mxu0
          %v2462 = vadd.f32 %v1670, %v2461
          %v2463 = vpop.f32.mrb[0].mxu0
          %2464 = vmatprep.mubr.bf16.mxu0 %v2177
          %2465 = vmatmul.mubr.bf16.gmra.mrb[0].mxu0 %v2176
          %v2466 = vpop.f32.mrb[0].mxu0
          %v2467 = vadd.f32 %v1670, %v2466
          %v2468 = vpop.f32.mrb[0].mxu0
          %v2469 = vpop.f32.mrb[0].mxu0
          %v2470 = vadd.f32 %v1670, %v2469
          %v2471 = vpop.f32.mrb[0].mxu0
          %2472 = vdwg.mxu0
          %2473 = vmatprep.subr.bf16.mxu0 0
          %2474 = vmatpush1.bf16.msra.mxu0 %v1617
          %2475 = vmatprep.subr.bf16.mxu0 0
          %2476 = vmatpush1.bf16.msra.mxu0 %v1618
          %2477 = vmatprep.subr.bf16.mxu0 0
          %2478 = vmatpush1.bf16.msra.mxu0 %v1619
          %2479 = vmatprep.subr.bf16.mxu0 0
          %2480 = vmatpush1.bf16.msra.mxu0 %v1620
          %2481 = vmatprep.subr.bf16.mxu0 0
          %2482 = vmatpush1.bf16.msra.mxu0 %v1621
          %2483 = vmatprep.subr.bf16.mxu0 0
          %2484 = vmatpush1.bf16.msra.mxu0 %v1622
          %2485 = vmatprep.subr.bf16.mxu0 0
          %2486 = vmatpush1.bf16.msra.mxu0 %v1623
          %2487 = vmatprep.subr.bf16.mxu0 0
          %2488 = vmatpush1.bf16.msra.mxu0 %v1624
          %2489 = vmatprep.subr.bf16.mxu0 0
          %2490 = vmatpush1.bf16.msra.mxu0 %v1625
          %2491 = vmatprep.subr.bf16.mxu0 0
          %2492 = vmatpush1.bf16.msra.mxu0 %v1626
          %2493 = vmatprep.subr.bf16.mxu0 0
          %2494 = vmatpush1.bf16.msra.mxu0 %v1627
          %2495 = vmatprep.subr.bf16.mxu0 0
          %2496 = vmatpush1.bf16.msra.mxu0 %v1628
          %2497 = vmatprep.subr.bf16.mxu0 0
          %2498 = vmatpush1.bf16.msra.mxu0 %v1629
          %2499 = vmatprep.subr.bf16.mxu0 0
          %2500 = vmatpush1.bf16.msra.mxu0 %v1630
          %2501 = vmatprep.subr.bf16.mxu0 0
          %2502 = vmatpush1.bf16.msra.mxu0 %v1631
          %2503 = vmatprep.subr.bf16.mxu0 0
          %2504 = vmatpush1.bf16.msra.mxu0 %v1632
          %2505 = vmatprep.mubr.bf16.mxu0 %v2059
          %2506 = vmatmul.mubr.bf16.gmra.mrb[0].mxu0 %v2058
          %v2507 = vpop.f32.mrb[0].mxu0
          %v2508 = vadd.f32 %v2347, %v2507
          %v2509 = vpop.f32.mrb[0].mxu0
          %v2510 = vpop.f32.mrb[0].mxu0
          %v2511 = vadd.f32 %v2350, %v2510
          %v2512 = vpop.f32.mrb[0].mxu0
          %2513 = vmatprep.mubr.bf16.mxu0 %v2067
          %2514 = vmatmul.mubr.bf16.gmra.mrb[0].mxu0 %v2066
          %v2515 = vpop.f32.mrb[0].mxu0
          %v2516 = vadd.f32 %v2355, %v2515
          %v2517 = vpop.f32.mrb[0].mxu0
          %v2518 = vpop.f32.mrb[0].mxu0
          %v2519 = vadd.f32 %v2358, %v2518
          %v2520 = vpop.f32.mrb[0].mxu0
          %2521 = vmatprep.mubr.bf16.mxu0 %v2075
          %2522 = vmatmul.mubr.bf16.gmra.mrb[0].mxu0 %v2074
          %v2523 = vpop.f32.mrb[0].mxu0
          %v2524 = vadd.f32 %v2363, %v2523
          %v2525 = vpop.f32.mrb[0].mxu0
          %v2526 = vpop.f32.mrb[0].mxu0
          %v2527 = vadd.f32 %v2366, %v2526
          %v2528 = vpop.f32.mrb[0].mxu0
          %2529 = vmatprep.mubr.bf16.mxu0 %v2083
          %2530 = vmatmul.mubr.bf16.gmra.mrb[0].mxu0 %v2082
          %v2531 = vpop.f32.mrb[0].mxu0
          %v2532 = vadd.f32 %v2371, %v2531
          %v2533 = vpop.f32.mrb[0].mxu0
          %v2534 = vpop.f32.mrb[0].mxu0
          %v2535 = vadd.f32 %v2374, %v2534
          %v2536 = vpop.f32.mrb[0].mxu0
          %2537 = vmatprep.mubr.bf16.mxu0 %v2091
          %2538 = vmatmul.mubr.bf16.gmra.mrb[0].mxu0 %v2090
          %v2539 = vpop.f32.mrb[0].mxu0
          %v2540 = vadd.f32 %v2379, %v2539
          %v2541 = vpop.f32.mrb[0].mxu0
          %v2542 = vpop.f32.mrb[0].mxu0
          %v2543 = vadd.f32 %v2382, %v2542
          %v2544 = vpop.f32.mrb[0].mxu0
          %2545 = vmatprep.mubr.bf16.mxu0 %v2099
          %2546 = vmatmul.mubr.bf16.gmra.mrb[0].mxu0 %v2098
          %v2547 = vpop.f32.mrb[0].mxu0
          %v2548 = vadd.f32 %v2387, %v2547
          %v2549 = vpop.f32.mrb[0].mxu0
          %v2550 = vpop.f32.mrb[0].mxu0
          %v2551 = vadd.f32 %v2390, %v2550
          %v2552 = vpop.f32.mrb[0].mxu0
          %2553 = vmatprep.mubr.bf16.mxu0 %v2107
          %2554 = vmatmul.mubr.bf16.gmra.mrb[0].mxu0 %v2106
          %v2555 = vpop.f32.mrb[0].mxu0
          %v2556 = vadd.f32 %v2395, %v2555
          %v2557 = vpop.f32.mrb[0].mxu0
          %v2558 = vpop.f32.mrb[0].mxu0
          %v2559 = vadd.f32 %v2398, %v2558
          %v2560 = vpop.f32.mrb[0].mxu0
          %2561 = vmatprep.mubr.bf16.mxu0 %v2115
          %2562 = vmatmul.mubr.bf16.gmra.mrb[0].mxu0 %v2114
          %v2563 = vpop.f32.mrb[0].mxu0
          %v2564 = vadd.f32 %v2403, %v2563
          %v2565 = vpop.f32.mrb[0].mxu0
          %v2566 = vpop.f32.mrb[0].mxu0
          %v2567 = vadd.f32 %v2406, %v2566
          %v2568 = vpop.f32.mrb[0].mxu0
          %2569 = vmatprep.mubr.bf16.mxu0 %v2123
          %2570 = vmatmul.mubr.bf16.gmra.mrb[0].mxu0 %v2122
          %v2571 = vpop.f32.mrb[0].mxu0
          %v2572 = vadd.f32 %v2411, %v2571
          %v2573 = vpop.f32.mrb[0].mxu0
          %v2574 = vpop.f32.mrb[0].mxu0
          %v2575 = vadd.f32 %v2414, %v2574
          %v2576 = vpop.f32.mrb[0].mxu0
          %2577 = vmatprep.mubr.bf16.mxu0 %v2131
          %2578 = vmatmul.mubr.bf16.gmra.mrb[0].mxu0 %v2130
          %v2579 = vpop.f32.mrb[0].mxu0
          %v2580 = vadd.f32 %v2419, %v2579
          %v2581 = vpop.f32.mrb[0].mxu0
          %v2582 = vpop.f32.mrb[0].mxu0
          %v2583 = vadd.f32 %v2422, %v2582
          %v2584 = vpop.f32.mrb[0].mxu0
          %2585 = vmatprep.mubr.bf16.mxu0 %v2139
          %2586 = vmatmul.mubr.bf16.gmra.mrb[0].mxu0 %v2138
          %v2587 = vpop.f32.mrb[0].mxu0
          %v2588 = vadd.f32 %v2427, %v2587
          %v2589 = vpop.f32.mrb[0].mxu0
          %v2590 = vpop.f32.mrb[0].mxu0
          %v2591 = vadd.f32 %v2430, %v2590
          %v2592 = vpop.f32.mrb[0].mxu0
          %2593 = vmatprep.mubr.bf16.mxu0 %v2147
          %2594 = vmatmul.mubr.bf16.gmra.mrb[0].mxu0 %v2146
          %v2595 = vpop.f32.mrb[0].mxu0
          %v2596 = vadd.f32 %v2435, %v2595
          %v2597 = vpop.f32.mrb[0].mxu0
          %v2598 = vpop.f32.mrb[0].mxu0
          %v2599 = vadd.f32 %v2438, %v2598
          %v2600 = vpop.f32.mrb[0].mxu0
          %2601 = vmatprep.mubr.bf16.mxu0 %v2155
          %2602 = vmatmul.mubr.bf16.gmra.mrb[0].mxu0 %v2154
          %v2603 = vpop.f32.mrb[0].mxu0
          %v2604 = vadd.f32 %v2443, %v2603
          %v2605 = vpop.f32.mrb[0].mxu0
          %v2606 = vpop.f32.mrb[0].mxu0
          %v2607 = vadd.f32 %v2446, %v2606
          %v2608 = vpop.f32.mrb[0].mxu0
          %2609 = vmatprep.mubr.bf16.mxu0 %v2163
          %2610 = vmatmul.mubr.bf16.gmra.mrb[0].mxu0 %v2162
          %v2611 = vpop.f32.mrb[0].mxu0
          %v2612 = vadd.f32 %v2451, %v2611
          %v2613 = vpop.f32.mrb[0].mxu0
          %v2614 = vpop.f32.mrb[0].mxu0
          %v2615 = vadd.f32 %v2454, %v2614
          %v2616 = vpop.f32.mrb[0].mxu0
          %2617 = vmatprep.mubr.bf16.mxu0 %v2171
          %2618 = vmatmul.mubr.bf16.gmra.mrb[0].mxu0 %v2170
          %v2619 = vpop.f32.mrb[0].mxu0
          %v2620 = vadd.f32 %v2459, %v2619
          %v2621 = vpop.f32.mrb[0].mxu0
          %v2622 = vpop.f32.mrb[0].mxu0
          %v2623 = vadd.f32 %v2462, %v2622
          %v2624 = vpop.f32.mrb[0].mxu0
          %2625 = vmatprep.mubr.bf16.mxu0 %v2179
          %2626 = vmatmul.mubr.bf16.gmra.mrb[0].mxu0 %v2178
          %v2627 = vpop.f32.mrb[0].mxu0
          %v2628 = vadd.f32 %v2467, %v2627
          %v2629 = vpop.f32.mrb[0].mxu0
          %v2630 = vpop.f32.mrb[0].mxu0
          %v2631 = vadd.f32 %v2470, %v2630
          %v2632 = vpop.f32.mrb[0].mxu0
          %2633 = vdwg.mxu0
          %2634 = vmatprep.subr.bf16.mxu0 0
          %2635 = vmatpush1.bf16.msra.mxu0 %v1633
          %2636 = vmatprep.subr.bf16.mxu0 0
          %2637 = vmatpush1.bf16.msra.mxu0 %v1634
          %2638 = vmatprep.subr.bf16.mxu0 0
          %2639 = vmatpush1.bf16.msra.mxu0 %v1635
          %2640 = vmatprep.subr.bf16.mxu0 0
          %2641 = vmatpush1.bf16.msra.mxu0 %v1636
          %2642 = vmatprep.subr.bf16.mxu0 0
          %2643 = vmatpush1.bf16.msra.mxu0 %v1637
          %2644 = vmatprep.subr.bf16.mxu0 0
          %2645 = vmatpush1.bf16.msra.mxu0 %v1638
          %2646 = vmatprep.subr.bf16.mxu0 0
          %2647 = vmatpush1.bf16.msra.mxu0 %v1639
          %2648 = vmatprep.subr.bf16.mxu0 0
          %2649 = vmatpush1.bf16.msra.mxu0 %v1640
          %2650 = vmatprep.subr.bf16.mxu0 0
          %2651 = vmatpush1.bf16.msra.mxu0 %v1641
          %2652 = vmatprep.subr.bf16.mxu0 0
          %2653 = vmatpush1.bf16.msra.mxu0 %v1642
          %2654 = vmatprep.subr.bf16.mxu0 0
          %2655 = vmatpush1.bf16.msra.mxu0 %v1643
          %2656 = vmatprep.subr.bf16.mxu0 0
          %2657 = vmatpush1.bf16.msra.mxu0 %v1644
          %2658 = vmatprep.subr.bf16.mxu0 0
          %2659 = vmatpush1.bf16.msra.mxu0 %v1645
          %2660 = vmatprep.subr.bf16.mxu0 0
          %2661 = vmatpush1.bf16.msra.mxu0 %v1646
          %2662 = vmatprep.subr.bf16.mxu0 0
          %2663 = vmatpush1.bf16.msra.mxu0 %v1647
          %2664 = vmatprep.subr.bf16.mxu0 0
          %2665 = vmatpush1.bf16.msra.mxu0 %v1648
          %2666 = vmatprep.mubr.bf16.mxu0 %v2061
          %2667 = vmatmul.mubr.bf16.gmra.mrb[0].mxu0 %v2060
          %v2668 = vpop.f32.mrb[0].mxu0
          %v2669 = vadd.f32 %v2508, %v2668
          %v2670 = vpop.f32.mrb[0].mxu0
          %v2671 = vpop.f32.mrb[0].mxu0
          %v2672 = vadd.f32 %v2511, %v2671
          %v2673 = vpop.f32.mrb[0].mxu0
          %2674 = vmatprep.mubr.bf16.mxu0 %v2069
          %2675 = vmatmul.mubr.bf16.gmra.mrb[0].mxu0 %v2068
          %v2676 = vpop.f32.mrb[0].mxu0
          %v2677 = vadd.f32 %v2516, %v2676
          %v2678 = vpop.f32.mrb[0].mxu0
          %v2679 = vpop.f32.mrb[0].mxu0
          %v2680 = vadd.f32 %v2519, %v2679
          %v2681 = vpop.f32.mrb[0].mxu0
          %2682 = vmatprep.mubr.bf16.mxu0 %v2077
          %2683 = vmatmul.mubr.bf16.gmra.mrb[0].mxu0 %v2076
          %v2684 = vpop.f32.mrb[0].mxu0
          %v2685 = vadd.f32 %v2524, %v2684
          %v2686 = vpop.f32.mrb[0].mxu0
          %v2687 = vpop.f32.mrb[0].mxu0
          %v2688 = vadd.f32 %v2527, %v2687
          %v2689 = vpop.f32.mrb[0].mxu0
          %2690 = vmatprep.mubr.bf16.mxu0 %v2085
          %2691 = vmatmul.mubr.bf16.gmra.mrb[0].mxu0 %v2084
          %v2692 = vpop.f32.mrb[0].mxu0
          %v2693 = vadd.f32 %v2532, %v2692
          %v2694 = vpop.f32.mrb[0].mxu0
          %v2695 = vpop.f32.mrb[0].mxu0
          %v2696 = vadd.f32 %v2535, %v2695
          %v2697 = vpop.f32.mrb[0].mxu0
          %2698 = vmatprep.mubr.bf16.mxu0 %v2093
          %2699 = vmatmul.mubr.bf16.gmra.mrb[0].mxu0 %v2092
          %v2700 = vpop.f32.mrb[0].mxu0
          %v2701 = vadd.f32 %v2540, %v2700
          %v2702 = vpop.f32.mrb[0].mxu0
          %v2703 = vpop.f32.mrb[0].mxu0
          %v2704 = vadd.f32 %v2543, %v2703
          %v2705 = vpop.f32.mrb[0].mxu0
          %2706 = vmatprep.mubr.bf16.mxu0 %v2101
          %2707 = vmatmul.mubr.bf16.gmra.mrb[0].mxu0 %v2100
          %v2708 = vpop.f32.mrb[0].mxu0
          %v2709 = vadd.f32 %v2548, %v2708
          %v2710 = vpop.f32.mrb[0].mxu0
          %v2711 = vpop.f32.mrb[0].mxu0
          %v2712 = vadd.f32 %v2551, %v2711
          %v2713 = vpop.f32.mrb[0].mxu0
          %2714 = vmatprep.mubr.bf16.mxu0 %v2109
          %2715 = vmatmul.mubr.bf16.gmra.mrb[0].mxu0 %v2108
          %v2716 = vpop.f32.mrb[0].mxu0
          %v2717 = vadd.f32 %v2556, %v2716
          %v2718 = vpop.f32.mrb[0].mxu0
          %v2719 = vpop.f32.mrb[0].mxu0
          %v2720 = vadd.f32 %v2559, %v2719
          %v2721 = vpop.f32.mrb[0].mxu0
          %2722 = vmatprep.mubr.bf16.mxu0 %v2117
          %2723 = vmatmul.mubr.bf16.gmra.mrb[0].mxu0 %v2116
          %v2724 = vpop.f32.mrb[0].mxu0
          %v2725 = vadd.f32 %v2564, %v2724
          %v2726 = vpop.f32.mrb[0].mxu0
          %v2727 = vpop.f32.mrb[0].mxu0
          %v2728 = vadd.f32 %v2567, %v2727
          %v2729 = vpop.f32.mrb[0].mxu0
          %2730 = vmatprep.mubr.bf16.mxu0 %v2125
          %2731 = vmatmul.mubr.bf16.gmra.mrb[0].mxu0 %v2124
          %v2732 = vpop.f32.mrb[0].mxu0
          %v2733 = vadd.f32 %v2572, %v2732
          %v2734 = vpop.f32.mrb[0].mxu0
          %v2735 = vpop.f32.mrb[0].mxu0
          %v2736 = vadd.f32 %v2575, %v2735
          %v2737 = vpop.f32.mrb[0].mxu0
          %2738 = vmatprep.mubr.bf16.mxu0 %v2133
          %2739 = vmatmul.mubr.bf16.gmra.mrb[0].mxu0 %v2132
          %v2740 = vpop.f32.mrb[0].mxu0
          %v2741 = vadd.f32 %v2580, %v2740
          %v2742 = vpop.f32.mrb[0].mxu0
          %v2743 = vpop.f32.mrb[0].mxu0
          %v2744 = vadd.f32 %v2583, %v2743
          %v2745 = vpop.f32.mrb[0].mxu0
          %2746 = vmatprep.mubr.bf16.mxu0 %v2141
          %2747 = vmatmul.mubr.bf16.gmra.mrb[0].mxu0 %v2140
          %v2748 = vpop.f32.mrb[0].mxu0
          %v2749 = vadd.f32 %v2588, %v2748
          %v2750 = vpop.f32.mrb[0].mxu0
          %v2751 = vpop.f32.mrb[0].mxu0
          %v2752 = vadd.f32 %v2591, %v2751
          %v2753 = vpop.f32.mrb[0].mxu0
          %2754 = vmatprep.mubr.bf16.mxu0 %v2149
          %2755 = vmatmul.mubr.bf16.gmra.mrb[0].mxu0 %v2148
          %v2756 = vpop.f32.mrb[0].mxu0
          %v2757 = vadd.f32 %v2596, %v2756
          %v2758 = vpop.f32.mrb[0].mxu0
          %v2759 = vpop.f32.mrb[0].mxu0
          %v2760 = vadd.f32 %v2599, %v2759
          %v2761 = vpop.f32.mrb[0].mxu0
          %2762 = vmatprep.mubr.bf16.mxu0 %v2157
          %2763 = vmatmul.mubr.bf16.gmra.mrb[0].mxu0 %v2156
          %v2764 = vpop.f32.mrb[0].mxu0
          %v2765 = vadd.f32 %v2604, %v2764
          %v2766 = vpop.f32.mrb[0].mxu0
          %v2767 = vpop.f32.mrb[0].mxu0
          %v2768 = vadd.f32 %v2607, %v2767
          %v2769 = vpop.f32.mrb[0].mxu0
          %2770 = vmatprep.mubr.bf16.mxu0 %v2165
          %2771 = vmatmul.mubr.bf16.gmra.mrb[0].mxu0 %v2164
          %v2772 = vpop.f32.mrb[0].mxu0
          %v2773 = vadd.f32 %v2612, %v2772
          %v2774 = vpop.f32.mrb[0].mxu0
          %v2775 = vpop.f32.mrb[0].mxu0
          %v2776 = vadd.f32 %v2615, %v2775
          %v2777 = vpop.f32.mrb[0].mxu0
          %2778 = vmatprep.mubr.bf16.mxu0 %v2173
          %2779 = vmatmul.mubr.bf16.gmra.mrb[0].mxu0 %v2172
          %v2780 = vpop.f32.mrb[0].mxu0
          %v2781 = vadd.f32 %v2620, %v2780
          %v2782 = vpop.f32.mrb[0].mxu0
          %v2783 = vpop.f32.mrb[0].mxu0
          %v2784 = vadd.f32 %v2623, %v2783
          %v2785 = vpop.f32.mrb[0].mxu0
          %2786 = vmatprep.mubr.bf16.mxu0 %v2181
          %2787 = vmatmul.mubr.bf16.gmra.mrb[0].mxu0 %v2180
          %v2788 = vpop.f32.mrb[0].mxu0
          %v2789 = vadd.f32 %v2628, %v2788
          %v2790 = vpop.f32.mrb[0].mxu0
          %v2791 = vpop.f32.mrb[0].mxu0
          %v2792 = vadd.f32 %v2631, %v2791
          %v2793 = vpop.f32.mrb[0].mxu0
          %2794 = vdwg.mxu0
          %2795 = vmatprep.subr.bf16.mxu0 0
          %2796 = vmatpush1.bf16.msra.mxu0 %v1649
          %2797 = vmatprep.subr.bf16.mxu0 0
          %2798 = vmatpush1.bf16.msra.mxu0 %v1650
          %2799 = vmatprep.subr.bf16.mxu0 0
          %2800 = vmatpush1.bf16.msra.mxu0 %v1651
          %2801 = vmatprep.subr.bf16.mxu0 0
          %2802 = vmatpush1.bf16.msra.mxu0 %v1652
          %2803 = vmatprep.subr.bf16.mxu0 0
          %2804 = vmatpush1.bf16.msra.mxu0 %v1653
          %2805 = vmatprep.subr.bf16.mxu0 0
          %2806 = vmatpush1.bf16.msra.mxu0 %v1654
          %2807 = vmatprep.subr.bf16.mxu0 0
          %2808 = vmatpush1.bf16.msra.mxu0 %v1655
          %2809 = vmatprep.subr.bf16.mxu0 0
          %2810 = vmatpush1.bf16.msra.mxu0 %v1656
          %2811 = vmatprep.subr.bf16.mxu0 0
          %2812 = vmatpush1.bf16.msra.mxu0 %v1657
          %2813 = vmatprep.subr.bf16.mxu0 0
          %2814 = vmatpush1.bf16.msra.mxu0 %v1658
          %2815 = vmatprep.subr.bf16.mxu0 0
          %2816 = vmatpush1.bf16.msra.mxu0 %v1659
          %2817 = vmatprep.subr.bf16.mxu0 0
          %2818 = vmatpush1.bf16.msra.mxu0 %v1660
          %2819 = vmatprep.subr.bf16.mxu0 0
          %2820 = vmatpush1.bf16.msra.mxu0 %v1661
          %2821 = vmatprep.subr.bf16.mxu0 0
          %2822 = vmatpush1.bf16.msra.mxu0 %v1662
          %2823 = vmatprep.subr.bf16.mxu0 0
          %2824 = vmatpush1.bf16.msra.mxu0 %v1663
          %2825 = vmatprep.subr.bf16.mxu0 0
          %2826 = vmatpush1.bf16.msra.mxu0 %v1664
          %2827 = vmatprep.mubr.bf16.mxu0 %v2063
          %2828 = vmatmul.mubr.bf16.gmra.mrb[0].mxu0 %v2062
          %v2829 = vpop.f32.mrb[0].mxu0
          %v2830 = vadd.f32 %v2669, %v2829
          %v2831 = vpop.f32.mrb[0].mxu0
          %v2832 = vpop.f32.mrb[0].mxu0
          %v2833 = vadd.f32 %v2672, %v2832
          %v2834 = vpop.f32.mrb[0].mxu0
          %2835 = vmatprep.mubr.bf16.mxu0 %v2071
          %2836 = vmatmul.mubr.bf16.gmra.mrb[0].mxu0 %v2070
          %v2837 = vpop.f32.mrb[0].mxu0
          %v2838 = vadd.f32 %v2677, %v2837
          %v2839 = vpop.f32.mrb[0].mxu0
          %v2840 = vpop.f32.mrb[0].mxu0
          %v2841 = vadd.f32 %v2680, %v2840
          %v2842 = vpop.f32.mrb[0].mxu0
          %2843 = vmatprep.mubr.bf16.mxu0 %v2079
          %2844 = vmatmul.mubr.bf16.gmra.mrb[0].mxu0 %v2078
          %v2845 = vpop.f32.mrb[0].mxu0
          %v2846 = vadd.f32 %v2685, %v2845
          %v2847 = vpop.f32.mrb[0].mxu0
          %v2848 = vpop.f32.mrb[0].mxu0
          %v2849 = vadd.f32 %v2688, %v2848
          %v2850 = vpop.f32.mrb[0].mxu0
          %2851 = vmatprep.mubr.bf16.mxu0 %v2087
          %2852 = vmatmul.mubr.bf16.gmra.mrb[0].mxu0 %v2086
          %v2853 = vpop.f32.mrb[0].mxu0
          %v2854 = vadd.f32 %v2693, %v2853
          %v2855 = vpop.f32.mrb[0].mxu0
          %v2856 = vpop.f32.mrb[0].mxu0
          %v2857 = vadd.f32 %v2696, %v2856
          %v2858 = vpop.f32.mrb[0].mxu0
          %2859 = vmatprep.mubr.bf16.mxu0 %v2095
          %2860 = vmatmul.mubr.bf16.gmra.mrb[0].mxu0 %v2094
          %v2861 = vpop.f32.mrb[0].mxu0
          %v2862 = vadd.f32 %v2701, %v2861
          %v2863 = vpop.f32.mrb[0].mxu0
          %v2864 = vpop.f32.mrb[0].mxu0
          %v2865 = vadd.f32 %v2704, %v2864
          %v2866 = vpop.f32.mrb[0].mxu0
          %2867 = vmatprep.mubr.bf16.mxu0 %v2103
          %2868 = vmatmul.mubr.bf16.gmra.mrb[0].mxu0 %v2102
          %v2869 = vpop.f32.mrb[0].mxu0
          %v2870 = vadd.f32 %v2709, %v2869
          %v2871 = vpop.f32.mrb[0].mxu0
          %v2872 = vpop.f32.mrb[0].mxu0
          %v2873 = vadd.f32 %v2712, %v2872
          %v2874 = vpop.f32.mrb[0].mxu0
          %2875 = vmatprep.mubr.bf16.mxu0 %v2111
          %2876 = vmatmul.mubr.bf16.gmra.mrb[0].mxu0 %v2110
          %v2877 = vpop.f32.mrb[0].mxu0
          %v2878 = vadd.f32 %v2717, %v2877
          %v2879 = vpop.f32.mrb[0].mxu0
          %v2880 = vpop.f32.mrb[0].mxu0
          %v2881 = vadd.f32 %v2720, %v2880
          %v2882 = vpop.f32.mrb[0].mxu0
          %2883 = vmatprep.mubr.bf16.mxu0 %v2119
          %2884 = vmatmul.mubr.bf16.gmra.mrb[0].mxu0 %v2118
          %v2885 = vpop.f32.mrb[0].mxu0
          %v2886 = vadd.f32 %v2725, %v2885
          %v2887 = vpop.f32.mrb[0].mxu0
          %v2888 = vpop.f32.mrb[0].mxu0
          %v2889 = vadd.f32 %v2728, %v2888
          %v2890 = vpop.f32.mrb[0].mxu0
          %2891 = vmatprep.mubr.bf16.mxu0 %v2127
          %2892 = vmatmul.mubr.bf16.gmra.mrb[0].mxu0 %v2126
          %v2893 = vpop.f32.mrb[0].mxu0
          %v2894 = vadd.f32 %v2733, %v2893
          %v2895 = vpop.f32.mrb[0].mxu0
          %v2896 = vpop.f32.mrb[0].mxu0
          %v2897 = vadd.f32 %v2736, %v2896
          %v2898 = vpop.f32.mrb[0].mxu0
          %2899 = vmatprep.mubr.bf16.mxu0 %v2135
          %2900 = vmatmul.mubr.bf16.gmra.mrb[0].mxu0 %v2134
          %v2901 = vpop.f32.mrb[0].mxu0
          %v2902 = vadd.f32 %v2741, %v2901
          %v2903 = vpop.f32.mrb[0].mxu0
          %v2904 = vpop.f32.mrb[0].mxu0
          %v2905 = vadd.f32 %v2744, %v2904
          %v2906 = vpop.f32.mrb[0].mxu0
          %2907 = vmatprep.mubr.bf16.mxu0 %v2143
          %2908 = vmatmul.mubr.bf16.gmra.mrb[0].mxu0 %v2142
          %v2909 = vpop.f32.mrb[0].mxu0
          %v2910 = vadd.f32 %v2749, %v2909
          %v2911 = vpop.f32.mrb[0].mxu0
          %v2912 = vpop.f32.mrb[0].mxu0
          %v2913 = vadd.f32 %v2752, %v2912
          %v2914 = vpop.f32.mrb[0].mxu0
          %2915 = vmatprep.mubr.bf16.mxu0 %v2151
          %2916 = vmatmul.mubr.bf16.gmra.mrb[0].mxu0 %v2150
          %v2917 = vpop.f32.mrb[0].mxu0
          %v2918 = vadd.f32 %v2757, %v2917
          %v2919 = vpop.f32.mrb[0].mxu0
          %v2920 = vpop.f32.mrb[0].mxu0
          %v2921 = vadd.f32 %v2760, %v2920
          %v2922 = vpop.f32.mrb[0].mxu0
          %2923 = vmatprep.mubr.bf16.mxu0 %v2159
          %2924 = vmatmul.mubr.bf16.gmra.mrb[0].mxu0 %v2158
          %v2925 = vpop.f32.mrb[0].mxu0
          %v2926 = vadd.f32 %v2765, %v2925
          %v2927 = vpop.f32.mrb[0].mxu0
          %v2928 = vpop.f32.mrb[0].mxu0
          %v2929 = vadd.f32 %v2768, %v2928
          %v2930 = vpop.f32.mrb[0].mxu0
          %2931 = vmatprep.mubr.bf16.mxu0 %v2167
          %2932 = vmatmul.mubr.bf16.gmra.mrb[0].mxu0 %v2166
          %v2933 = vpop.f32.mrb[0].mxu0
          %v2934 = vadd.f32 %v2773, %v2933
          %v2935 = vpop.f32.mrb[0].mxu0
          %v2936 = vpop.f32.mrb[0].mxu0
          %v2937 = vadd.f32 %v2776, %v2936
          %v2938 = vpop.f32.mrb[0].mxu0
          %2939 = vmatprep.mubr.bf16.mxu0 %v2175
          %2940 = vmatmul.mubr.bf16.gmra.mrb[0].mxu0 %v2174
          %v2941 = vpop.f32.mrb[0].mxu0
          %v2942 = vadd.f32 %v2781, %v2941
          %v2943 = vpop.f32.mrb[0].mxu0
          %v2944 = vpop.f32.mrb[0].mxu0
          %v2945 = vadd.f32 %v2784, %v2944
          %v2946 = vpop.f32.mrb[0].mxu0
          %2947 = vmatprep.mubr.bf16.mxu0 %v2183
          %2948 = vmatmul.mubr.bf16.gmra.mrb[0].mxu0 %v2182
          %v2949 = vpop.f32.mrb[0].mxu0
          %v2950 = vadd.f32 %v2789, %v2949
          %v2951 = vpop.f32.mrb[0].mxu0
          %v2952 = vpop.f32.mrb[0].mxu0
          %v2953 = vadd.f32 %v2792, %v2952
          %v2954 = vpop.f32.mrb[0].mxu0
          %2955 = vdwg.mxu0
          %vm2956 = vcmp.gt.f32.partialorder %v2830, 0.0
          %vm2957 = vcmp.gt.f32.partialorder %v2833, 0.0
          %vm2958 = vcmp.gt.f32.partialorder %v2838, 0.0
          %vm2959 = vcmp.gt.f32.partialorder %v2841, 0.0
          %vm2960 = vcmp.gt.f32.partialorder %v2846, 0.0
          %vm2961 = vcmp.gt.f32.partialorder %v2849, 0.0
          %vm2962 = vcmp.gt.f32.partialorder %v2854, 0.0
          %vm2963 = vcmp.gt.f32.partialorder %v2857, 0.0
          %vm2964 = vcmp.gt.f32.partialorder %v2862, 0.0
          %vm2965 = vcmp.gt.f32.partialorder %v2865, 0.0
          %vm2966 = vcmp.gt.f32.partialorder %v2870, 0.0
          %vm2967 = vcmp.gt.f32.partialorder %v2873, 0.0
          %vm2968 = vcmp.gt.f32.partialorder %v2878, 0.0
          %vm2969 = vcmp.gt.f32.partialorder %v2881, 0.0
          %vm2970 = vcmp.gt.f32.partialorder %v2886, 0.0
          %vm2971 = vcmp.gt.f32.partialorder %v2889, 0.0
          %vm2972 = vcmp.gt.f32.partialorder %v2894, 0.0
          %vm2973 = vcmp.gt.f32.partialorder %v2897, 0.0
          %vm2974 = vcmp.gt.f32.partialorder %v2902, 0.0
          %vm2975 = vcmp.gt.f32.partialorder %v2905, 0.0
          %vm2976 = vcmp.gt.f32.partialorder %v2910, 0.0
          %vm2977 = vcmp.gt.f32.partialorder %v2913, 0.0
          %vm2978 = vcmp.gt.f32.partialorder %v2918, 0.0
          %vm2979 = vcmp.gt.f32.partialorder %v2921, 0.0
          %vm2980 = vcmp.gt.f32.partialorder %v2926, 0.0
          %vm2981 = vcmp.gt.f32.partialorder %v2929, 0.0
          %vm2982 = vcmp.gt.f32.partialorder %v2934, 0.0
          %vm2983 = vcmp.gt.f32.partialorder %v2937, 0.0
          %vm2984 = vcmp.gt.f32.partialorder %v2942, 0.0
          %vm2985 = vcmp.gt.f32.partialorder %v2945, 0.0
          %vm2986 = vcmp.gt.f32.partialorder %v2950, 0.0
          %vm2987 = vcmp.gt.f32.partialorder %v2953, 0.0
          %v2988 = vmul.f32 %v2830, 0.01
          %v2989 = vmul.f32 %v2833, 0.01
          %v2990 = vmul.f32 %v2838, 0.01
          %v2991 = vmul.f32 %v2841, 0.01
          %v2992 = vmul.f32 %v2846, 0.01
          %v2993 = vmul.f32 %v2849, 0.01
          %v2994 = vmul.f32 %v2854, 0.01
          %v2995 = vmul.f32 %v2857, 0.01
          %v2996 = vmul.f32 %v2862, 0.01
          %v2997 = vmul.f32 %v2865, 0.01
          %v2998 = vmul.f32 %v2870, 0.01
          %v2999 = vmul.f32 %v2873, 0.01
          %v3000 = vmul.f32 %v2878, 0.01
          %v3001 = vmul.f32 %v2881, 0.01
          %v3002 = vmul.f32 %v2886, 0.01
          %v3003 = vmul.f32 %v2889, 0.01
          %v3004 = vmul.f32 %v2894, 0.01
          %v3005 = vmul.f32 %v2897, 0.01
          %v3006 = vmul.f32 %v2902, 0.01
          %v3007 = vmul.f32 %v2905, 0.01
          %v3008 = vmul.f32 %v2910, 0.01
          %v3009 = vmul.f32 %v2913, 0.01
          %v3010 = vmul.f32 %v2918, 0.01
          %v3011 = vmul.f32 %v2921, 0.01
          %v3012 = vmul.f32 %v2926, 0.01
          %v3013 = vmul.f32 %v2929, 0.01
          %v3014 = vmul.f32 %v2934, 0.01
          %v3015 = vmul.f32 %v2937, 0.01
          %v3016 = vmul.f32 %v2942, 0.01
          %v3017 = vmul.f32 %v2945, 0.01
          %v3018 = vmul.f32 %v2950, 0.01
          %v3019 = vmul.f32 %v2953, 0.01
          %v3020 = vsel %vm2956, %v2830, %v2988
          %v3021 = vsel %vm2957, %v2833, %v2989
          %v3022 = vsel %vm2958, %v2838, %v2990
          %v3023 = vsel %vm2959, %v2841, %v2991
          %v3024 = vsel %vm2960, %v2846, %v2992
          %v3025 = vsel %vm2961, %v2849, %v2993
          %v3026 = vsel %vm2962, %v2854, %v2994
          %v3027 = vsel %vm2963, %v2857, %v2995
          %v3028 = vsel %vm2964, %v2862, %v2996
          %v3029 = vsel %vm2965, %v2865, %v2997
          %v3030 = vsel %vm2966, %v2870, %v2998
          %v3031 = vsel %vm2967, %v2873, %v2999
          %v3032 = vsel %vm2968, %v2878, %v3000
          %v3033 = vsel %vm2969, %v2881, %v3001
          %v3034 = vsel %vm2970, %v2886, %v3002
          %v3035 = vsel %vm2971, %v2889, %v3003
          %v3036 = vsel %vm2972, %v2894, %v3004
          %v3037 = vsel %vm2973, %v2897, %v3005
          %v3038 = vsel %vm2974, %v2902, %v3006
          %v3039 = vsel %vm2975, %v2905, %v3007
          %v3040 = vsel %vm2976, %v2910, %v3008
          %v3041 = vsel %vm2977, %v2913, %v3009
          %v3042 = vsel %vm2978, %v2918, %v3010
          %v3043 = vsel %vm2979, %v2921, %v3011
          %v3044 = vsel %vm2980, %v2926, %v3012
          %v3045 = vsel %vm2981, %v2929, %v3013
          %v3046 = vsel %vm2982, %v2934, %v3014
          %v3047 = vsel %vm2983, %v2937, %v3015
          %v3048 = vsel %vm2984, %v2942, %v3016
          %v3049 = vsel %vm2985, %v2945, %v3017
          %v3050 = vsel %vm2986, %v2950, %v3018
          %v3051 = vsel %vm2987, %v2953, %v3019
          %s3052 = scalar_lea.vmem [#allocation3], %s485
          %3053 = vst [vmem:[%s3052] sm:$0xff] %v3020
          %3054 = vst [vmem:[%s3052 + $0x8] sm:$0xff] %v3021
          %3055 = vst [vmem:[%s3052 + $0x10] sm:$0xff] %v3022
          %3056 = vst [vmem:[%s3052 + $0x18] sm:$0xff] %v3023
          %3057 = vst [vmem:[%s3052 + $0x20] sm:$0xff] %v3024
          %3058 = vst [vmem:[%s3052 + $0x28] sm:$0xff] %v3025
          %3059 = vst [vmem:[%s3052 + $0x30] sm:$0xff] %v3026
          %3060 = vst [vmem:[%s3052 + $0x38] sm:$0xff] %v3027
          %3061 = vst [vmem:[%s3052 + $0x40] sm:$0xff] %v3028
          %3062 = vst [vmem:[%s3052 + $0x48] sm:$0xff] %v3029
          %3063 = vst [vmem:[%s3052 + $0x50] sm:$0xff] %v3030
          %3064 = vst [vmem:[%s3052 + $0x58] sm:$0xff] %v3031
          %3065 = vst [vmem:[%s3052 + $0x60] sm:$0xff] %v3032
          %3066 = vst [vmem:[%s3052 + $0x68] sm:$0xff] %v3033
          %3067 = vst [vmem:[%s3052 + $0x70] sm:$0xff] %v3034
          %3068 = vst [vmem:[%s3052 + $0x78] sm:$0xff] %v3035
          %3069 = vst [vmem:[%s3052 + $0x80] sm:$0xff] %v3036
          %3070 = vst [vmem:[%s3052 + $0x88] sm:$0xff] %v3037
          %3071 = vst [vmem:[%s3052 + $0x90] sm:$0xff] %v3038
          %3072 = vst [vmem:[%s3052 + $0x98] sm:$0xff] %v3039
          %3073 = vst [vmem:[%s3052 + $0xa0] sm:$0xff] %v3040
          %3074 = vst [vmem:[%s3052 + $0xa8] sm:$0xff] %v3041
          %3075 = vst [vmem:[%s3052 + $0xb0] sm:$0xff] %v3042
          %3076 = vst [vmem:[%s3052 + $0xb8] sm:$0xff] %v3043
          %3077 = vst [vmem:[%s3052 + $0xc0] sm:$0xff] %v3044
          %3078 = vst [vmem:[%s3052 + $0xc8] sm:$0xff] %v3045
          %3079 = vst [vmem:[%s3052 + $0xd0] sm:$0xff] %v3046
          %3080 = vst [vmem:[%s3052 + $0xd8] sm:$0xff] %v3047
          %3081 = vst [vmem:[%s3052 + $0xe0] sm:$0xff] %v3048
          %3082 = vst [vmem:[%s3052 + $0xe8] sm:$0xff] %v3049
          %3083 = vst [vmem:[%s3052 + $0xf0] sm:$0xff] %v3050
          %3084 = vst [vmem:[%s3052 + $0xf8] sm:$0xff] %v3051
        $region100: #{tpu_custom_call.1} parent=55 // pred_fallthru
          _
        %p3085 = scmp.eq.s32.totalorder %s31, 1
        %p3086 = pnand %p3085, %p487
        %p3087 = pneg %p3086
        // Predicated region
        $region101: #{tpu_custom_call.1} parent=55 // pred_check
          _
        $region102: #{tpu_custom_call.1} parent=55 // pred_check_branch
          %3089 = sbr.rel (%p3086) target = $region104
        $region103: #{tpu_custom_call.1} parent=55 // pred_region
          %v3090 = vld [vmem:[#allocation3] sm:$0xff]
          %v3091 = vld [vmem:[#allocation3 + $0x8] sm:$0xff]
          %v3092 = vld [vmem:[#allocation3 + $0x10] sm:$0xff]
          %v3093 = vld [vmem:[#allocation3 + $0x18] sm:$0xff]
          %v3094 = vld [vmem:[#allocation3 + $0x20] sm:$0xff]
          %v3095 = vld [vmem:[#allocation3 + $0x28] sm:$0xff]
          %v3096 = vld [vmem:[#allocation3 + $0x30] sm:$0xff]
          %v3097 = vld [vmem:[#allocation3 + $0x38] sm:$0xff]
          %v3098 = vld [vmem:[#allocation3 + $0x40] sm:$0xff]
          %v3099 = vld [vmem:[#allocation3 + $0x48] sm:$0xff]
          %v3100 = vld [vmem:[#allocation3 + $0x50] sm:$0xff]
          %v3101 = vld [vmem:[#allocation3 + $0x58] sm:$0xff]
          %v3102 = vld [vmem:[#allocation3 + $0x60] sm:$0xff]
          %v3103 = vld [vmem:[#allocation3 + $0x68] sm:$0xff]
          %v3104 = vld [vmem:[#allocation3 + $0x70] sm:$0xff]
          %v3105 = vld [vmem:[#allocation3 + $0x78] sm:$0xff]
          %v3106 = vld [vmem:[#allocation3 + $0x80] sm:$0xff]
          %v3107 = vld [vmem:[#allocation3 + $0x88] sm:$0xff]
          %v3108 = vld [vmem:[#allocation3 + $0x90] sm:$0xff]
          %v3109 = vld [vmem:[#allocation3 + $0x98] sm:$0xff]
          %v3110 = vld [vmem:[#allocation3 + $0xa0] sm:$0xff]
          %v3111 = vld [vmem:[#allocation3 + $0xa8] sm:$0xff]
          %v3112 = vld [vmem:[#allocation3 + $0xb0] sm:$0xff]
          %v3113 = vld [vmem:[#allocation3 + $0xb8] sm:$0xff]
          %v3114 = vld [vmem:[#allocation3 + $0xc0] sm:$0xff]
          %v3115 = vld [vmem:[#allocation3 + $0xc8] sm:$0xff]
          %v3116 = vld [vmem:[#allocation3 + $0xd0] sm:$0xff]
          %v3117 = vld [vmem:[#allocation3 + $0xd8] sm:$0xff]
          %v3118 = vld [vmem:[#allocation3 + $0xe0] sm:$0xff]
          %v3119 = vld [vmem:[#allocation3 + $0xe8] sm:$0xff]
          %v3120 = vld [vmem:[#allocation3 + $0xf0] sm:$0xff]
          %v3121 = vld [vmem:[#allocation3 + $0xf8] sm:$0xff]
          %v3122 = vld [vmem:[#allocation3 + $0x100] sm:$0xff]
          %v3123 = vld [vmem:[#allocation3 + $0x108] sm:$0xff]
          %v3124 = vld [vmem:[#allocation3 + $0x110] sm:$0xff]
          %v3125 = vld [vmem:[#allocation3 + $0x118] sm:$0xff]
          %v3126 = vld [vmem:[#allocation3 + $0x120] sm:$0xff]
          %v3127 = vld [vmem:[#allocation3 + $0x128] sm:$0xff]
          %v3128 = vld [vmem:[#allocation3 + $0x130] sm:$0xff]
          %v3129 = vld [vmem:[#allocation3 + $0x138] sm:$0xff]
          %v3130 = vld [vmem:[#allocation3 + $0x140] sm:$0xff]
          %v3131 = vld [vmem:[#allocation3 + $0x148] sm:$0xff]
          %v3132 = vld [vmem:[#allocation3 + $0x150] sm:$0xff]
          %v3133 = vld [vmem:[#allocation3 + $0x158] sm:$0xff]
          %v3134 = vld [vmem:[#allocation3 + $0x160] sm:$0xff]
          %v3135 = vld [vmem:[#allocation3 + $0x168] sm:$0xff]
          %v3136 = vld [vmem:[#allocation3 + $0x170] sm:$0xff]
          %v3137 = vld [vmem:[#allocation3 + $0x178] sm:$0xff]
          %v3138 = vld [vmem:[#allocation3 + $0x180] sm:$0xff]
          %v3139 = vld [vmem:[#allocation3 + $0x188] sm:$0xff]
          %v3140 = vld [vmem:[#allocation3 + $0x190] sm:$0xff]
          %v3141 = vld [vmem:[#allocation3 + $0x198] sm:$0xff]
          %v3142 = vld [vmem:[#allocation3 + $0x1a0] sm:$0xff]
          %v3143 = vld [vmem:[#allocation3 + $0x1a8] sm:$0xff]
          %v3144 = vld [vmem:[#allocation3 + $0x1b0] sm:$0xff]
          %v3145 = vld [vmem:[#allocation3 + $0x1b8] sm:$0xff]
          %v3146 = vld [vmem:[#allocation3 + $0x1c0] sm:$0xff]
          %v3147 = vld [vmem:[#allocation3 + $0x1c8] sm:$0xff]
          %v3148 = vld [vmem:[#allocation3 + $0x1d0] sm:$0xff]
          %v3149 = vld [vmem:[#allocation3 + $0x1d8] sm:$0xff]
          %v3150 = vld [vmem:[#allocation3 + $0x1e0] sm:$0xff]
          %v3151 = vld [vmem:[#allocation3 + $0x1e8] sm:$0xff]
          %v3152 = vld [vmem:[#allocation3 + $0x1f0] sm:$0xff]
          %v3153 = vld [vmem:[#allocation3 + $0x1f8] sm:$0xff]
          %v3154 = vld [vmem:[#allocation3 + $0x200] sm:$0xff]
          %v3155 = vld [vmem:[#allocation3 + $0x208] sm:$0xff]
          %v3156 = vld [vmem:[#allocation3 + $0x210] sm:$0xff]
          %v3157 = vld [vmem:[#allocation3 + $0x218] sm:$0xff]
          %v3158 = vld [vmem:[#allocation3 + $0x220] sm:$0xff]
          %v3159 = vld [vmem:[#allocation3 + $0x228] sm:$0xff]
          %v3160 = vld [vmem:[#allocation3 + $0x230] sm:$0xff]
          %v3161 = vld [vmem:[#allocation3 + $0x238] sm:$0xff]
          %v3162 = vld [vmem:[#allocation3 + $0x240] sm:$0xff]
          %v3163 = vld [vmem:[#allocation3 + $0x248] sm:$0xff]
          %v3164 = vld [vmem:[#allocation3 + $0x250] sm:$0xff]
          %v3165 = vld [vmem:[#allocation3 + $0x258] sm:$0xff]
          %v3166 = vld [vmem:[#allocation3 + $0x260] sm:$0xff]
          %v3167 = vld [vmem:[#allocation3 + $0x268] sm:$0xff]
          %v3168 = vld [vmem:[#allocation3 + $0x270] sm:$0xff]
          %v3169 = vld [vmem:[#allocation3 + $0x278] sm:$0xff]
          %v3170 = vld [vmem:[#allocation3 + $0x280] sm:$0xff]
          %v3171 = vld [vmem:[#allocation3 + $0x288] sm:$0xff]
          %v3172 = vld [vmem:[#allocation3 + $0x290] sm:$0xff]
          %v3173 = vld [vmem:[#allocation3 + $0x298] sm:$0xff]
          %v3174 = vld [vmem:[#allocation3 + $0x2a0] sm:$0xff]
          %v3175 = vld [vmem:[#allocation3 + $0x2a8] sm:$0xff]
          %v3176 = vld [vmem:[#allocation3 + $0x2b0] sm:$0xff]
          %v3177 = vld [vmem:[#allocation3 + $0x2b8] sm:$0xff]
          %v3178 = vld [vmem:[#allocation3 + $0x2c0] sm:$0xff]
          %v3179 = vld [vmem:[#allocation3 + $0x2c8] sm:$0xff]
          %v3180 = vld [vmem:[#allocation3 + $0x2d0] sm:$0xff]
          %v3181 = vld [vmem:[#allocation3 + $0x2d8] sm:$0xff]
          %v3182 = vld [vmem:[#allocation3 + $0x2e0] sm:$0xff]
          %v3183 = vld [vmem:[#allocation3 + $0x2e8] sm:$0xff]
          %v3184 = vld [vmem:[#allocation3 + $0x2f0] sm:$0xff]
          %v3185 = vld [vmem:[#allocation3 + $0x2f8] sm:$0xff]
          %v3186 = vld [vmem:[#allocation3 + $0x300] sm:$0xff]
          %v3187 = vld [vmem:[#allocation3 + $0x308] sm:$0xff]
          %v3188 = vld [vmem:[#allocation3 + $0x310] sm:$0xff]
          %v3189 = vld [vmem:[#allocation3 + $0x318] sm:$0xff]
          %v3190 = vld [vmem:[#allocation3 + $0x320] sm:$0xff]
          %v3191 = vld [vmem:[#allocation3 + $0x328] sm:$0xff]
          %v3192 = vld [vmem:[#allocation3 + $0x330] sm:$0xff]
          %v3193 = vld [vmem:[#allocation3 + $0x338] sm:$0xff]
          %v3194 = vld [vmem:[#allocation3 + $0x340] sm:$0xff]
          %v3195 = vld [vmem:[#allocation3 + $0x348] sm:$0xff]
          %v3196 = vld [vmem:[#allocation3 + $0x350] sm:$0xff]
          %v3197 = vld [vmem:[#allocation3 + $0x358] sm:$0xff]
          %v3198 = vld [vmem:[#allocation3 + $0x360] sm:$0xff]
          %v3199 = vld [vmem:[#allocation3 + $0x368] sm:$0xff]
          %v3200 = vld [vmem:[#allocation3 + $0x370] sm:$0xff]
          %v3201 = vld [vmem:[#allocation3 + $0x378] sm:$0xff]
          %v3202 = vld [vmem:[#allocation3 + $0x380] sm:$0xff]
          %v3203 = vld [vmem:[#allocation3 + $0x388] sm:$0xff]
          %v3204 = vld [vmem:[#allocation3 + $0x390] sm:$0xff]
          %v3205 = vld [vmem:[#allocation3 + $0x398] sm:$0xff]
          %v3206 = vld [vmem:[#allocation3 + $0x3a0] sm:$0xff]
          %v3207 = vld [vmem:[#allocation3 + $0x3a8] sm:$0xff]
          %v3208 = vld [vmem:[#allocation3 + $0x3b0] sm:$0xff]
          %v3209 = vld [vmem:[#allocation3 + $0x3b8] sm:$0xff]
          %v3210 = vld [vmem:[#allocation3 + $0x3c0] sm:$0xff]
          %v3211 = vld [vmem:[#allocation3 + $0x3c8] sm:$0xff]
          %v3212 = vld [vmem:[#allocation3 + $0x3d0] sm:$0xff]
          %v3213 = vld [vmem:[#allocation3 + $0x3d8] sm:$0xff]
          %v3214 = vld [vmem:[#allocation3 + $0x3e0] sm:$0xff]
          %v3215 = vld [vmem:[#allocation3 + $0x3e8] sm:$0xff]
          %v3216 = vld [vmem:[#allocation3 + $0x3f0] sm:$0xff]
          %v3217 = vld [vmem:[#allocation3 + $0x3f8] sm:$0xff]
          %v3218 = vld [vmem:[#allocation14] sm:$0xff]
          %v3219 = vld [vmem:[#allocation14 + $0x8] sm:$0xff]
          %v3220 = vld [vmem:[#allocation14 + $0x10] sm:$0xff]
          %v3221 = vld [vmem:[#allocation14 + $0x18] sm:$0xff]
          %v3222 = vld [vmem:[#allocation14 + $0x20] sm:$0xff]
          %v3223 = vld [vmem:[#allocation14 + $0x28] sm:$0xff]
          %v3224 = vld [vmem:[#allocation14 + $0x30] sm:$0xff]
          %v3225 = vld [vmem:[#allocation14 + $0x38] sm:$0xff]
          %v3226 = vld [vmem:[#allocation14 + $0x40] sm:$0xff]
          %v3227 = vld [vmem:[#allocation14 + $0x48] sm:$0xff]
          %v3228 = vld [vmem:[#allocation14 + $0x50] sm:$0xff]
          %v3229 = vld [vmem:[#allocation14 + $0x58] sm:$0xff]
          %v3230 = vld [vmem:[#allocation14 + $0x60] sm:$0xff]
          %v3231 = vld [vmem:[#allocation14 + $0x68] sm:$0xff]
          %v3232 = vld [vmem:[#allocation14 + $0x70] sm:$0xff]
          %v3233 = vld [vmem:[#allocation14 + $0x78] sm:$0xff]
          %3234 = vmatprep.subr.mxu0 0.0
          %3235 = vmatpush1.msra.mxu0 %v3218
          %3236 = vmatprep.subr.mxu0 0.0
          %3237 = vmatpush1.msra.mxu0 %v3219
          %3238 = vmatprep.subr.mxu0 0.0
          %3239 = vmatpush1.msra.mxu0 %v3220
          %3240 = vmatprep.subr.mxu0 0.0
          %3241 = vmatpush1.msra.mxu0 %v3221
          %3242 = vmatprep.subr.mxu0 0.0
          %3243 = vmatpush1.msra.mxu0 %v3222
          %3244 = vmatprep.subr.mxu0 0.0
          %3245 = vmatpush1.msra.mxu0 %v3223
          %3246 = vmatprep.subr.mxu0 0.0
          %3247 = vmatpush1.msra.mxu0 %v3224
          %3248 = vmatprep.subr.mxu0 0.0
          %3249 = vmatpush1.msra.mxu0 %v3225
          %3250 = vmatprep.subr.mxu0 0.0
          %3251 = vmatpush1.msra.mxu0 %v3226
          %3252 = vmatprep.subr.mxu0 0.0
          %3253 = vmatpush1.msra.mxu0 %v3227
          %3254 = vmatprep.subr.mxu0 0.0
          %3255 = vmatpush1.msra.mxu0 %v3228
          %3256 = vmatprep.subr.mxu0 0.0
          %3257 = vmatpush1.msra.mxu0 %v3229
          %3258 = vmatprep.subr.mxu0 0.0
          %3259 = vmatpush1.msra.mxu0 %v3230
          %3260 = vmatprep.subr.mxu0 0.0
          %3261 = vmatpush1.msra.mxu0 %v3231
          %3262 = vmatprep.subr.mxu0 0.0
          %3263 = vmatpush1.msra.mxu0 %v3232
          %3264 = vmatprep.subr.mxu0 0.0
          %3265 = vmatpush1.msra.mxu0 %v3233
          %3266 = vmatprep.subr.mxu0 0.0
          %3267 = vmatpush1.msra.mxu0 0.0
          %3268 = vmatprep.subr.mxu0 0.0
          %3269 = vmatpush1.msra.mxu0 0.0
          %3270 = vmatprep.subr.mxu0 0.0
          %3271 = vmatpush1.msra.mxu0 0.0
          %3272 = vmatprep.subr.mxu0 0.0
          %3273 = vmatpush1.msra.mxu0 0.0
          %3274 = vmatprep.subr.mxu0 0.0
          %3275 = vmatpush1.msra.mxu0 0.0
          %3276 = vmatprep.subr.mxu0 0.0
          %3277 = vmatpush1.msra.mxu0 0.0
          %3278 = vmatprep.subr.mxu0 0.0
          %3279 = vmatpush1.msra.mxu0 0.0
          %3280 = vmatprep.subr.mxu0 0.0
          %3281 = vmatpush1.msra.mxu0 0.0
          %3282 = vmatprep.subr.mxu0 0.0
          %3283 = vmatpush1.msra.mxu0 0.0
          %3284 = vmatprep.subr.mxu0 0.0
          %3285 = vmatpush1.msra.mxu0 0.0
          %3286 = vmatprep.subr.mxu0 0.0
          %3287 = vmatpush1.msra.mxu0 0.0
          %3288 = vmatprep.subr.mxu0 0.0
          %3289 = vmatpush1.msra.mxu0 0.0
          %3290 = vmatprep.subr.mxu0 0.0
          %3291 = vmatpush1.msra.mxu0 0.0
          %3292 = vmatprep.subr.mxu0 0.0
          %3293 = vmatpush1.msra.mxu0 0.0
          %3294 = vmatprep.subr.mxu0 0.0
          %3295 = vmatpush1.msra.mxu0 0.0
          %3296 = vmatprep.subr.mxu0 0.0
          %3297 = vmatpush1.msra.mxu0 0.0
          %3298 = vmatprep.mubr.f32.mxu0 0.0
          %3299 = vmatmul.mubr.f32.gmra.mrb[0].mxu0 %v3090
          %v3300 = vpop.f32.mrb[0].mxu0
          %v3301 = vadd.f32 0.0, %v3300
          %v3302 = vpop.f32.mrb[0].mxu0
          %3303 = vmatprep.mubr.f32.mxu0 0.0
          %3304 = vmatmul.mubr.f32.gmra.mrb[0].mxu0 %v3091
          %v3305 = vpop.f32.mrb[0].mxu0
          %v3306 = vadd.f32 0.0, %v3305
          %v3307 = vpop.f32.mrb[0].mxu0
          %3308 = vmatprep.mubr.f32.mxu0 0.0
          %3309 = vmatmul.mubr.f32.gmra.mrb[0].mxu0 %v3092
          %v3310 = vpop.f32.mrb[0].mxu0
          %v3311 = vadd.f32 0.0, %v3310
          %v3312 = vpop.f32.mrb[0].mxu0
          %3313 = vmatprep.mubr.f32.mxu0 0.0
          %3314 = vmatmul.mubr.f32.gmra.mrb[0].mxu0 %v3093
          %v3315 = vpop.f32.mrb[0].mxu0
          %v3316 = vadd.f32 0.0, %v3315
          %v3317 = vpop.f32.mrb[0].mxu0
          %3318 = vmatprep.mubr.f32.mxu0 0.0
          %3319 = vmatmul.mubr.f32.gmra.mrb[0].mxu0 %v3094
          %v3320 = vpop.f32.mrb[0].mxu0
          %v3321 = vadd.f32 0.0, %v3320
          %v3322 = vpop.f32.mrb[0].mxu0
          %3323 = vmatprep.mubr.f32.mxu0 0.0
          %3324 = vmatmul.mubr.f32.gmra.mrb[0].mxu0 %v3095
          %v3325 = vpop.f32.mrb[0].mxu0
          %v3326 = vadd.f32 0.0, %v3325
          %v3327 = vpop.f32.mrb[0].mxu0
          %3328 = vmatprep.mubr.f32.mxu0 0.0
          %3329 = vmatmul.mubr.f32.gmra.mrb[0].mxu0 %v3096
          %v3330 = vpop.f32.mrb[0].mxu0
          %v3331 = vadd.f32 0.0, %v3330
          %v3332 = vpop.f32.mrb[0].mxu0
          %3333 = vmatprep.mubr.f32.mxu0 0.0
          %3334 = vmatmul.mubr.f32.gmra.mrb[0].mxu0 %v3097
          %v3335 = vpop.f32.mrb[0].mxu0
          %v3336 = vadd.f32 0.0, %v3335
          %v3337 = vpop.f32.mrb[0].mxu0
          %3338 = vmatprep.mubr.f32.mxu0 0.0
          %3339 = vmatmul.mubr.f32.gmra.mrb[0].mxu0 %v3098
          %v3340 = vpop.f32.mrb[0].mxu0
          %v3341 = vadd.f32 0.0, %v3340
          %v3342 = vpop.f32.mrb[0].mxu0
          %3343 = vmatprep.mubr.f32.mxu0 0.0
          %3344 = vmatmul.mubr.f32.gmra.mrb[0].mxu0 %v3099
          %v3345 = vpop.f32.mrb[0].mxu0
          %v3346 = vadd.f32 0.0, %v3345
          %v3347 = vpop.f32.mrb[0].mxu0
          %3348 = vmatprep.mubr.f32.mxu0 0.0
          %3349 = vmatmul.mubr.f32.gmra.mrb[0].mxu0 %v3100
          %v3350 = vpop.f32.mrb[0].mxu0
          %v3351 = vadd.f32 0.0, %v3350
          %v3352 = vpop.f32.mrb[0].mxu0
          %3353 = vmatprep.mubr.f32.mxu0 0.0
          %3354 = vmatmul.mubr.f32.gmra.mrb[0].mxu0 %v3101
          %v3355 = vpop.f32.mrb[0].mxu0
          %v3356 = vadd.f32 0.0, %v3355
          %v3357 = vpop.f32.mrb[0].mxu0
          %3358 = vmatprep.mubr.f32.mxu0 0.0
          %3359 = vmatmul.mubr.f32.gmra.mrb[0].mxu0 %v3102
          %v3360 = vpop.f32.mrb[0].mxu0
          %v3361 = vadd.f32 0.0, %v3360
          %v3362 = vpop.f32.mrb[0].mxu0
          %3363 = vmatprep.mubr.f32.mxu0 0.0
          %3364 = vmatmul.mubr.f32.gmra.mrb[0].mxu0 %v3103
          %v3365 = vpop.f32.mrb[0].mxu0
          %v3366 = vadd.f32 0.0, %v3365
          %v3367 = vpop.f32.mrb[0].mxu0
          %3368 = vmatprep.mubr.f32.mxu0 0.0
          %3369 = vmatmul.mubr.f32.gmra.mrb[0].mxu0 %v3104
          %v3370 = vpop.f32.mrb[0].mxu0
          %v3371 = vadd.f32 0.0, %v3370
          %v3372 = vpop.f32.mrb[0].mxu0
          %3373 = vmatprep.mubr.f32.mxu0 0.0
          %3374 = vmatmul.mubr.f32.gmra.mrb[0].mxu0 %v3105
          %v3375 = vpop.f32.mrb[0].mxu0
          %v3376 = vadd.f32 0.0, %v3375
          %v3377 = vpop.f32.mrb[0].mxu0
          %3378 = vmatprep.mubr.f32.mxu0 0.0
          %3379 = vmatmul.mubr.f32.gmra.mrb[0].mxu0 %v3106
          %v3380 = vpop.f32.mrb[0].mxu0
          %v3381 = vadd.f32 0.0, %v3380
          %v3382 = vpop.f32.mrb[0].mxu0
          %3383 = vmatprep.mubr.f32.mxu0 0.0
          %3384 = vmatmul.mubr.f32.gmra.mrb[0].mxu0 %v3107
          %v3385 = vpop.f32.mrb[0].mxu0
          %v3386 = vadd.f32 0.0, %v3385
          %v3387 = vpop.f32.mrb[0].mxu0
          %3388 = vmatprep.mubr.f32.mxu0 0.0
          %3389 = vmatmul.mubr.f32.gmra.mrb[0].mxu0 %v3108
          %v3390 = vpop.f32.mrb[0].mxu0
          %v3391 = vadd.f32 0.0, %v3390
          %v3392 = vpop.f32.mrb[0].mxu0
          %3393 = vmatprep.mubr.f32.mxu0 0.0
          %3394 = vmatmul.mubr.f32.gmra.mrb[0].mxu0 %v3109
          %v3395 = vpop.f32.mrb[0].mxu0
          %v3396 = vadd.f32 0.0, %v3395
          %v3397 = vpop.f32.mrb[0].mxu0
          %3398 = vmatprep.mubr.f32.mxu0 0.0
          %3399 = vmatmul.mubr.f32.gmra.mrb[0].mxu0 %v3110
          %v3400 = vpop.f32.mrb[0].mxu0
          %v3401 = vadd.f32 0.0, %v3400
          %v3402 = vpop.f32.mrb[0].mxu0
          %3403 = vmatprep.mubr.f32.mxu0 0.0
          %3404 = vmatmul.mubr.f32.gmra.mrb[0].mxu0 %v3111
          %v3405 = vpop.f32.mrb[0].mxu0
          %v3406 = vadd.f32 0.0, %v3405
          %v3407 = vpop.f32.mrb[0].mxu0
          %3408 = vmatprep.mubr.f32.mxu0 0.0
          %3409 = vmatmul.mubr.f32.gmra.mrb[0].mxu0 %v3112
          %v3410 = vpop.f32.mrb[0].mxu0
          %v3411 = vadd.f32 0.0, %v3410
          %v3412 = vpop.f32.mrb[0].mxu0
          %3413 = vmatprep.mubr.f32.mxu0 0.0
          %3414 = vmatmul.mubr.f32.gmra.mrb[0].mxu0 %v3113
          %v3415 = vpop.f32.mrb[0].mxu0
          %v3416 = vadd.f32 0.0, %v3415
          %v3417 = vpop.f32.mrb[0].mxu0
          %3418 = vmatprep.mubr.f32.mxu0 0.0
          %3419 = vmatmul.mubr.f32.gmra.mrb[0].mxu0 %v3114
          %v3420 = vpop.f32.mrb[0].mxu0
          %v3421 = vadd.f32 0.0, %v3420
          %v3422 = vpop.f32.mrb[0].mxu0
          %3423 = vmatprep.mubr.f32.mxu0 0.0
          %3424 = vmatmul.mubr.f32.gmra.mrb[0].mxu0 %v3115
          %v3425 = vpop.f32.mrb[0].mxu0
          %v3426 = vadd.f32 0.0, %v3425
          %v3427 = vpop.f32.mrb[0].mxu0
          %3428 = vmatprep.mubr.f32.mxu0 0.0
          %3429 = vmatmul.mubr.f32.gmra.mrb[0].mxu0 %v3116
          %v3430 = vpop.f32.mrb[0].mxu0
          %v3431 = vadd.f32 0.0, %v3430
          %v3432 = vpop.f32.mrb[0].mxu0
          %3433 = vmatprep.mubr.f32.mxu0 0.0
          %3434 = vmatmul.mubr.f32.gmra.mrb[0].mxu0 %v3117
          %v3435 = vpop.f32.mrb[0].mxu0
          %v3436 = vadd.f32 0.0, %v3435
          %v3437 = vpop.f32.mrb[0].mxu0
          %3438 = vmatprep.mubr.f32.mxu0 0.0
          %3439 = vmatmul.mubr.f32.gmra.mrb[0].mxu0 %v3118
          %v3440 = vpop.f32.mrb[0].mxu0
          %v3441 = vadd.f32 0.0, %v3440
          %v3442 = vpop.f32.mrb[0].mxu0
          %3443 = vmatprep.mubr.f32.mxu0 0.0
          %3444 = vmatmul.mubr.f32.gmra.mrb[0].mxu0 %v3119
          %v3445 = vpop.f32.mrb[0].mxu0
          %v3446 = vadd.f32 0.0, %v3445
          %v3447 = vpop.f32.mrb[0].mxu0
          %3448 = vmatprep.mubr.f32.mxu0 0.0
          %3449 = vmatmul.mubr.f32.gmra.mrb[0].mxu0 %v3120
          %v3450 = vpop.f32.mrb[0].mxu0
          %v3451 = vadd.f32 0.0, %v3450
          %v3452 = vpop.f32.mrb[0].mxu0
          %3453 = vmatprep.mubr.f32.mxu0 0.0
          %3454 = vmatmul.mubr.f32.gmra.mrb[0].mxu0 %v3121
          %v3455 = vpop.f32.mrb[0].mxu0
          %v3456 = vadd.f32 0.0, %v3455
          %v3457 = vpop.f32.mrb[0].mxu0
          %3458 = vmatprep.mubr.f32.mxu0 0.0
          %3459 = vmatmul.mubr.f32.gmra.mrb[0].mxu0 %v3122
          %v3460 = vpop.f32.mrb[0].mxu0
          %v3461 = vadd.f32 0.0, %v3460
          %v3462 = vpop.f32.mrb[0].mxu0
          %3463 = vmatprep.mubr.f32.mxu0 0.0
          %3464 = vmatmul.mubr.f32.gmra.mrb[0].mxu0 %v3123
          %v3465 = vpop.f32.mrb[0].mxu0
          %v3466 = vadd.f32 0.0, %v3465
          %v3467 = vpop.f32.mrb[0].mxu0
          %3468 = vmatprep.mubr.f32.mxu0 0.0
          %3469 = vmatmul.mubr.f32.gmra.mrb[0].mxu0 %v3124
          %v3470 = vpop.f32.mrb[0].mxu0
          %v3471 = vadd.f32 0.0, %v3470
          %v3472 = vpop.f32.mrb[0].mxu0
          %3473 = vmatprep.mubr.f32.mxu0 0.0
          %3474 = vmatmul.mubr.f32.gmra.mrb[0].mxu0 %v3125
          %v3475 = vpop.f32.mrb[0].mxu0
          %v3476 = vadd.f32 0.0, %v3475
          %v3477 = vpop.f32.mrb[0].mxu0
          %3478 = vmatprep.mubr.f32.mxu0 0.0
          %3479 = vmatmul.mubr.f32.gmra.mrb[0].mxu0 %v3126
          %v3480 = vpop.f32.mrb[0].mxu0
          %v3481 = vadd.f32 0.0, %v3480
          %v3482 = vpop.f32.mrb[0].mxu0
          %3483 = vmatprep.mubr.f32.mxu0 0.0
          %3484 = vmatmul.mubr.f32.gmra.mrb[0].mxu0 %v3127
          %v3485 = vpop.f32.mrb[0].mxu0
          %v3486 = vadd.f32 0.0, %v3485
          %v3487 = vpop.f32.mrb[0].mxu0
          %3488 = vmatprep.mubr.f32.mxu0 0.0
          %3489 = vmatmul.mubr.f32.gmra.mrb[0].mxu0 %v3128
          %v3490 = vpop.f32.mrb[0].mxu0
          %v3491 = vadd.f32 0.0, %v3490
          %v3492 = vpop.f32.mrb[0].mxu0
          %3493 = vmatprep.mubr.f32.mxu0 0.0
          %3494 = vmatmul.mubr.f32.gmra.mrb[0].mxu0 %v3129
          %v3495 = vpop.f32.mrb[0].mxu0
          %v3496 = vadd.f32 0.0, %v3495
          %v3497 = vpop.f32.mrb[0].mxu0
          %3498 = vmatprep.mubr.f32.mxu0 0.0
          %3499 = vmatmul.mubr.f32.gmra.mrb[0].mxu0 %v3130
          %v3500 = vpop.f32.mrb[0].mxu0
          %v3501 = vadd.f32 0.0, %v3500
          %v3502 = vpop.f32.mrb[0].mxu0
          %3503 = vmatprep.mubr.f32.mxu0 0.0
          %3504 = vmatmul.mubr.f32.gmra.mrb[0].mxu0 %v3131
          %v3505 = vpop.f32.mrb[0].mxu0
          %v3506 = vadd.f32 0.0, %v3505
          %v3507 = vpop.f32.mrb[0].mxu0
          %3508 = vmatprep.mubr.f32.mxu0 0.0
          %3509 = vmatmul.mubr.f32.gmra.mrb[0].mxu0 %v3132
          %v3510 = vpop.f32.mrb[0].mxu0
          %v3511 = vadd.f32 0.0, %v3510
          %v3512 = vpop.f32.mrb[0].mxu0
          %3513 = vmatprep.mubr.f32.mxu0 0.0
          %3514 = vmatmul.mubr.f32.gmra.mrb[0].mxu0 %v3133
          %v3515 = vpop.f32.mrb[0].mxu0
          %v3516 = vadd.f32 0.0, %v3515
          %v3517 = vpop.f32.mrb[0].mxu0
          %3518 = vmatprep.mubr.f32.mxu0 0.0
          %3519 = vmatmul.mubr.f32.gmra.mrb[0].mxu0 %v3134
          %v3520 = vpop.f32.mrb[0].mxu0
          %v3521 = vadd.f32 0.0, %v3520
          %v3522 = vpop.f32.mrb[0].mxu0
          %3523 = vmatprep.mubr.f32.mxu0 0.0
          %3524 = vmatmul.mubr.f32.gmra.mrb[0].mxu0 %v3135
          %v3525 = vpop.f32.mrb[0].mxu0
          %v3526 = vadd.f32 0.0, %v3525
          %v3527 = vpop.f32.mrb[0].mxu0
          %3528 = vmatprep.mubr.f32.mxu0 0.0
          %3529 = vmatmul.mubr.f32.gmra.mrb[0].mxu0 %v3136
          %v3530 = vpop.f32.mrb[0].mxu0
          %v3531 = vadd.f32 0.0, %v3530
          %v3532 = vpop.f32.mrb[0].mxu0
          %3533 = vmatprep.mubr.f32.mxu0 0.0
          %3534 = vmatmul.mubr.f32.gmra.mrb[0].mxu0 %v3137
          %v3535 = vpop.f32.mrb[0].mxu0
          %v3536 = vadd.f32 0.0, %v3535
          %v3537 = vpop.f32.mrb[0].mxu0
          %3538 = vmatprep.mubr.f32.mxu0 0.0
          %3539 = vmatmul.mubr.f32.gmra.mrb[0].mxu0 %v3138
          %v3540 = vpop.f32.mrb[0].mxu0
          %v3541 = vadd.f32 0.0, %v3540
          %v3542 = vpop.f32.mrb[0].mxu0
          %3543 = vmatprep.mubr.f32.mxu0 0.0
          %3544 = vmatmul.mubr.f32.gmra.mrb[0].mxu0 %v3139
          %v3545 = vpop.f32.mrb[0].mxu0
          %v3546 = vadd.f32 0.0, %v3545
          %v3547 = vpop.f32.mrb[0].mxu0
          %3548 = vmatprep.mubr.f32.mxu0 0.0
          %3549 = vmatmul.mubr.f32.gmra.mrb[0].mxu0 %v3140
          %v3550 = vpop.f32.mrb[0].mxu0
          %v3551 = vadd.f32 0.0, %v3550
          %v3552 = vpop.f32.mrb[0].mxu0
          %3553 = vmatprep.mubr.f32.mxu0 0.0
          %3554 = vmatmul.mubr.f32.gmra.mrb[0].mxu0 %v3141
          %v3555 = vpop.f32.mrb[0].mxu0
          %v3556 = vadd.f32 0.0, %v3555
          %v3557 = vpop.f32.mrb[0].mxu0
          %3558 = vmatprep.mubr.f32.mxu0 0.0
          %3559 = vmatmul.mubr.f32.gmra.mrb[0].mxu0 %v3142
          %v3560 = vpop.f32.mrb[0].mxu0
          %v3561 = vadd.f32 0.0, %v3560
          %v3562 = vpop.f32.mrb[0].mxu0
          %3563 = vmatprep.mubr.f32.mxu0 0.0
          %3564 = vmatmul.mubr.f32.gmra.mrb[0].mxu0 %v3143
          %v3565 = vpop.f32.mrb[0].mxu0
          %v3566 = vadd.f32 0.0, %v3565
          %v3567 = vpop.f32.mrb[0].mxu0
          %3568 = vmatprep.mubr.f32.mxu0 0.0
          %3569 = vmatmul.mubr.f32.gmra.mrb[0].mxu0 %v3144
          %v3570 = vpop.f32.mrb[0].mxu0
          %v3571 = vadd.f32 0.0, %v3570
          %v3572 = vpop.f32.mrb[0].mxu0
          %3573 = vmatprep.mubr.f32.mxu0 0.0
          %3574 = vmatmul.mubr.f32.gmra.mrb[0].mxu0 %v3145
          %v3575 = vpop.f32.mrb[0].mxu0
          %v3576 = vadd.f32 0.0, %v3575
          %v3577 = vpop.f32.mrb[0].mxu0
          %3578 = vmatprep.mubr.f32.mxu0 0.0
          %3579 = vmatmul.mubr.f32.gmra.mrb[0].mxu0 %v3146
          %v3580 = vpop.f32.mrb[0].mxu0
          %v3581 = vadd.f32 0.0, %v3580
          %v3582 = vpop.f32.mrb[0].mxu0
          %3583 = vmatprep.mubr.f32.mxu0 0.0
          %3584 = vmatmul.mubr.f32.gmra.mrb[0].mxu0 %v3147
          %v3585 = vpop.f32.mrb[0].mxu0
          %v3586 = vadd.f32 0.0, %v3585
          %v3587 = vpop.f32.mrb[0].mxu0
          %3588 = vmatprep.mubr.f32.mxu0 0.0
          %3589 = vmatmul.mubr.f32.gmra.mrb[0].mxu0 %v3148
          %v3590 = vpop.f32.mrb[0].mxu0
          %v3591 = vadd.f32 0.0, %v3590
          %v3592 = vpop.f32.mrb[0].mxu0
          %3593 = vmatprep.mubr.f32.mxu0 0.0
          %3594 = vmatmul.mubr.f32.gmra.mrb[0].mxu0 %v3149
          %v3595 = vpop.f32.mrb[0].mxu0
          %v3596 = vadd.f32 0.0, %v3595
          %v3597 = vpop.f32.mrb[0].mxu0
          %3598 = vmatprep.mubr.f32.mxu0 0.0
          %3599 = vmatmul.mubr.f32.gmra.mrb[0].mxu0 %v3150
          %v3600 = vpop.f32.mrb[0].mxu0
          %v3601 = vadd.f32 0.0, %v3600
          %v3602 = vpop.f32.mrb[0].mxu0
          %3603 = vmatprep.mubr.f32.mxu0 0.0
          %3604 = vmatmul.mubr.f32.gmra.mrb[0].mxu0 %v3151
          %v3605 = vpop.f32.mrb[0].mxu0
          %v3606 = vadd.f32 0.0, %v3605
          %v3607 = vpop.f32.mrb[0].mxu0
          %3608 = vmatprep.mubr.f32.mxu0 0.0
          %3609 = vmatmul.mubr.f32.gmra.mrb[0].mxu0 %v3152
          %v3610 = vpop.f32.mrb[0].mxu0
          %v3611 = vadd.f32 0.0, %v3610
          %v3612 = vpop.f32.mrb[0].mxu0
          %3613 = vmatprep.mubr.f32.mxu0 0.0
          %3614 = vmatmul.mubr.f32.gmra.mrb[0].mxu0 %v3153
          %v3615 = vpop.f32.mrb[0].mxu0
          %v3616 = vadd.f32 0.0, %v3615
          %v3617 = vpop.f32.mrb[0].mxu0
          %3618 = vmatprep.mubr.f32.mxu0 0.0
          %3619 = vmatmul.mubr.f32.gmra.mrb[0].mxu0 %v3154
          %v3620 = vpop.f32.mrb[0].mxu0
          %v3621 = vadd.f32 0.0, %v3620
          %v3622 = vpop.f32.mrb[0].mxu0
          %3623 = vmatprep.mubr.f32.mxu0 0.0
          %3624 = vmatmul.mubr.f32.gmra.mrb[0].mxu0 %v3155
          %v3625 = vpop.f32.mrb[0].mxu0
          %v3626 = vadd.f32 0.0, %v3625
          %v3627 = vpop.f32.mrb[0].mxu0
          %3628 = vmatprep.mubr.f32.mxu0 0.0
          %3629 = vmatmul.mubr.f32.gmra.mrb[0].mxu0 %v3156
          %v3630 = vpop.f32.mrb[0].mxu0
          %v3631 = vadd.f32 0.0, %v3630
          %v3632 = vpop.f32.mrb[0].mxu0
          %3633 = vmatprep.mubr.f32.mxu0 0.0
          %3634 = vmatmul.mubr.f32.gmra.mrb[0].mxu0 %v3157
          %v3635 = vpop.f32.mrb[0].mxu0
          %v3636 = vadd.f32 0.0, %v3635
          %v3637 = vpop.f32.mrb[0].mxu0
          %3638 = vmatprep.mubr.f32.mxu0 0.0
          %3639 = vmatmul.mubr.f32.gmra.mrb[0].mxu0 %v3158
          %v3640 = vpop.f32.mrb[0].mxu0
          %v3641 = vadd.f32 0.0, %v3640
          %v3642 = vpop.f32.mrb[0].mxu0
          %3643 = vmatprep.mubr.f32.mxu0 0.0
          %3644 = vmatmul.mubr.f32.gmra.mrb[0].mxu0 %v3159
          %v3645 = vpop.f32.mrb[0].mxu0
          %v3646 = vadd.f32 0.0, %v3645
          %v3647 = vpop.f32.mrb[0].mxu0
          %3648 = vmatprep.mubr.f32.mxu0 0.0
          %3649 = vmatmul.mubr.f32.gmra.mrb[0].mxu0 %v3160
          %v3650 = vpop.f32.mrb[0].mxu0
          %v3651 = vadd.f32 0.0, %v3650
          %v3652 = vpop.f32.mrb[0].mxu0
          %3653 = vmatprep.mubr.f32.mxu0 0.0
          %3654 = vmatmul.mubr.f32.gmra.mrb[0].mxu0 %v3161
          %v3655 = vpop.f32.mrb[0].mxu0
          %v3656 = vadd.f32 0.0, %v3655
          %v3657 = vpop.f32.mrb[0].mxu0
          %3658 = vmatprep.mubr.f32.mxu0 0.0
          %3659 = vmatmul.mubr.f32.gmra.mrb[0].mxu0 %v3162
          %v3660 = vpop.f32.mrb[0].mxu0
          %v3661 = vadd.f32 0.0, %v3660
          %v3662 = vpop.f32.mrb[0].mxu0
          %3663 = vmatprep.mubr.f32.mxu0 0.0
          %3664 = vmatmul.mubr.f32.gmra.mrb[0].mxu0 %v3163
          %v3665 = vpop.f32.mrb[0].mxu0
          %v3666 = vadd.f32 0.0, %v3665
          %v3667 = vpop.f32.mrb[0].mxu0
          %3668 = vmatprep.mubr.f32.mxu0 0.0
          %3669 = vmatmul.mubr.f32.gmra.mrb[0].mxu0 %v3164
          %v3670 = vpop.f32.mrb[0].mxu0
          %v3671 = vadd.f32 0.0, %v3670
          %v3672 = vpop.f32.mrb[0].mxu0
          %3673 = vmatprep.mubr.f32.mxu0 0.0
          %3674 = vmatmul.mubr.f32.gmra.mrb[0].mxu0 %v3165
          %v3675 = vpop.f32.mrb[0].mxu0
          %v3676 = vadd.f32 0.0, %v3675
          %v3677 = vpop.f32.mrb[0].mxu0
          %3678 = vmatprep.mubr.f32.mxu0 0.0
          %3679 = vmatmul.mubr.f32.gmra.mrb[0].mxu0 %v3166
          %v3680 = vpop.f32.mrb[0].mxu0
          %v3681 = vadd.f32 0.0, %v3680
          %v3682 = vpop.f32.mrb[0].mxu0
          %3683 = vmatprep.mubr.f32.mxu0 0.0
          %3684 = vmatmul.mubr.f32.gmra.mrb[0].mxu0 %v3167
          %v3685 = vpop.f32.mrb[0].mxu0
          %v3686 = vadd.f32 0.0, %v3685
          %v3687 = vpop.f32.mrb[0].mxu0
          %3688 = vmatprep.mubr.f32.mxu0 0.0
          %3689 = vmatmul.mubr.f32.gmra.mrb[0].mxu0 %v3168
          %v3690 = vpop.f32.mrb[0].mxu0
          %v3691 = vadd.f32 0.0, %v3690
          %v3692 = vpop.f32.mrb[0].mxu0
          %3693 = vmatprep.mubr.f32.mxu0 0.0
          %3694 = vmatmul.mubr.f32.gmra.mrb[0].mxu0 %v3169
          %v3695 = vpop.f32.mrb[0].mxu0
          %v3696 = vadd.f32 0.0, %v3695
          %v3697 = vpop.f32.mrb[0].mxu0
          %3698 = vmatprep.mubr.f32.mxu0 0.0
          %3699 = vmatmul.mubr.f32.gmra.mrb[0].mxu0 %v3170
          %v3700 = vpop.f32.mrb[0].mxu0
          %v3701 = vadd.f32 0.0, %v3700
          %v3702 = vpop.f32.mrb[0].mxu0
          %3703 = vmatprep.mubr.f32.mxu0 0.0
          %3704 = vmatmul.mubr.f32.gmra.mrb[0].mxu0 %v3171
          %v3705 = vpop.f32.mrb[0].mxu0
          %v3706 = vadd.f32 0.0, %v3705
          %v3707 = vpop.f32.mrb[0].mxu0
          %3708 = vmatprep.mubr.f32.mxu0 0.0
          %3709 = vmatmul.mubr.f32.gmra.mrb[0].mxu0 %v3172
          %v3710 = vpop.f32.mrb[0].mxu0
          %v3711 = vadd.f32 0.0, %v3710
          %v3712 = vpop.f32.mrb[0].mxu0
          %3713 = vmatprep.mubr.f32.mxu0 0.0
          %3714 = vmatmul.mubr.f32.gmra.mrb[0].mxu0 %v3173
          %v3715 = vpop.f32.mrb[0].mxu0
          %v3716 = vadd.f32 0.0, %v3715
          %v3717 = vpop.f32.mrb[0].mxu0
          %3718 = vmatprep.mubr.f32.mxu0 0.0
          %3719 = vmatmul.mubr.f32.gmra.mrb[0].mxu0 %v3174
          %v3720 = vpop.f32.mrb[0].mxu0
          %v3721 = vadd.f32 0.0, %v3720
          %v3722 = vpop.f32.mrb[0].mxu0
          %3723 = vmatprep.mubr.f32.mxu0 0.0
          %3724 = vmatmul.mubr.f32.gmra.mrb[0].mxu0 %v3175
          %v3725 = vpop.f32.mrb[0].mxu0
          %v3726 = vadd.f32 0.0, %v3725
          %v3727 = vpop.f32.mrb[0].mxu0
          %3728 = vmatprep.mubr.f32.mxu0 0.0
          %3729 = vmatmul.mubr.f32.gmra.mrb[0].mxu0 %v3176
          %v3730 = vpop.f32.mrb[0].mxu0
          %v3731 = vadd.f32 0.0, %v3730
          %v3732 = vpop.f32.mrb[0].mxu0
          %3733 = vmatprep.mubr.f32.mxu0 0.0
          %3734 = vmatmul.mubr.f32.gmra.mrb[0].mxu0 %v3177
          %v3735 = vpop.f32.mrb[0].mxu0
          %v3736 = vadd.f32 0.0, %v3735
          %v3737 = vpop.f32.mrb[0].mxu0
          %3738 = vmatprep.mubr.f32.mxu0 0.0
          %3739 = vmatmul.mubr.f32.gmra.mrb[0].mxu0 %v3178
          %v3740 = vpop.f32.mrb[0].mxu0
          %v3741 = vadd.f32 0.0, %v3740
          %v3742 = vpop.f32.mrb[0].mxu0
          %3743 = vmatprep.mubr.f32.mxu0 0.0
          %3744 = vmatmul.mubr.f32.gmra.mrb[0].mxu0 %v3179
          %v3745 = vpop.f32.mrb[0].mxu0
          %v3746 = vadd.f32 0.0, %v3745
          %v3747 = vpop.f32.mrb[0].mxu0
          %3748 = vmatprep.mubr.f32.mxu0 0.0
          %3749 = vmatmul.mubr.f32.gmra.mrb[0].mxu0 %v3180
          %v3750 = vpop.f32.mrb[0].mxu0
          %v3751 = vadd.f32 0.0, %v3750
          %v3752 = vpop.f32.mrb[0].mxu0
          %3753 = vmatprep.mubr.f32.mxu0 0.0
          %3754 = vmatmul.mubr.f32.gmra.mrb[0].mxu0 %v3181
          %v3755 = vpop.f32.mrb[0].mxu0
          %v3756 = vadd.f32 0.0, %v3755
          %v3757 = vpop.f32.mrb[0].mxu0
          %3758 = vmatprep.mubr.f32.mxu0 0.0
          %3759 = vmatmul.mubr.f32.gmra.mrb[0].mxu0 %v3182
          %v3760 = vpop.f32.mrb[0].mxu0
          %v3761 = vadd.f32 0.0, %v3760
          %v3762 = vpop.f32.mrb[0].mxu0
          %3763 = vmatprep.mubr.f32.mxu0 0.0
          %3764 = vmatmul.mubr.f32.gmra.mrb[0].mxu0 %v3183
          %v3765 = vpop.f32.mrb[0].mxu0
          %v3766 = vadd.f32 0.0, %v3765
          %v3767 = vpop.f32.mrb[0].mxu0
          %3768 = vmatprep.mubr.f32.mxu0 0.0
          %3769 = vmatmul.mubr.f32.gmra.mrb[0].mxu0 %v3184
          %v3770 = vpop.f32.mrb[0].mxu0
          %v3771 = vadd.f32 0.0, %v3770
          %v3772 = vpop.f32.mrb[0].mxu0
          %3773 = vmatprep.mubr.f32.mxu0 0.0
          %3774 = vmatmul.mubr.f32.gmra.mrb[0].mxu0 %v3185
          %v3775 = vpop.f32.mrb[0].mxu0
          %v3776 = vadd.f32 0.0, %v3775
          %v3777 = vpop.f32.mrb[0].mxu0
          %3778 = vmatprep.mubr.f32.mxu0 0.0
          %3779 = vmatmul.mubr.f32.gmra.mrb[0].mxu0 %v3186
          %v3780 = vpop.f32.mrb[0].mxu0
          %v3781 = vadd.f32 0.0, %v3780
          %v3782 = vpop.f32.mrb[0].mxu0
          %3783 = vmatprep.mubr.f32.mxu0 0.0
          %3784 = vmatmul.mubr.f32.gmra.mrb[0].mxu0 %v3187
          %v3785 = vpop.f32.mrb[0].mxu0
          %v3786 = vadd.f32 0.0, %v3785
          %v3787 = vpop.f32.mrb[0].mxu0
          %3788 = vmatprep.mubr.f32.mxu0 0.0
          %3789 = vmatmul.mubr.f32.gmra.mrb[0].mxu0 %v3188
          %v3790 = vpop.f32.mrb[0].mxu0
          %v3791 = vadd.f32 0.0, %v3790
          %v3792 = vpop.f32.mrb[0].mxu0
          %3793 = vmatprep.mubr.f32.mxu0 0.0
          %3794 = vmatmul.mubr.f32.gmra.mrb[0].mxu0 %v3189
          %v3795 = vpop.f32.mrb[0].mxu0
          %v3796 = vadd.f32 0.0, %v3795
          %v3797 = vpop.f32.mrb[0].mxu0
          %3798 = vmatprep.mubr.f32.mxu0 0.0
          %3799 = vmatmul.mubr.f32.gmra.mrb[0].mxu0 %v3190
          %v3800 = vpop.f32.mrb[0].mxu0
          %v3801 = vadd.f32 0.0, %v3800
          %v3802 = vpop.f32.mrb[0].mxu0
          %3803 = vmatprep.mubr.f32.mxu0 0.0
          %3804 = vmatmul.mubr.f32.gmra.mrb[0].mxu0 %v3191
          %v3805 = vpop.f32.mrb[0].mxu0
          %v3806 = vadd.f32 0.0, %v3805
          %v3807 = vpop.f32.mrb[0].mxu0
          %3808 = vmatprep.mubr.f32.mxu0 0.0
          %3809 = vmatmul.mubr.f32.gmra.mrb[0].mxu0 %v3192
          %v3810 = vpop.f32.mrb[0].mxu0
          %v3811 = vadd.f32 0.0, %v3810
          %v3812 = vpop.f32.mrb[0].mxu0
          %3813 = vmatprep.mubr.f32.mxu0 0.0
          %3814 = vmatmul.mubr.f32.gmra.mrb[0].mxu0 %v3193
          %v3815 = vpop.f32.mrb[0].mxu0
          %v3816 = vadd.f32 0.0, %v3815
          %v3817 = vpop.f32.mrb[0].mxu0
          %3818 = vmatprep.mubr.f32.mxu0 0.0
          %3819 = vmatmul.mubr.f32.gmra.mrb[0].mxu0 %v3194
          %v3820 = vpop.f32.mrb[0].mxu0
          %v3821 = vadd.f32 0.0, %v3820
          %v3822 = vpop.f32.mrb[0].mxu0
          %3823 = vmatprep.mubr.f32.mxu0 0.0
          %3824 = vmatmul.mubr.f32.gmra.mrb[0].mxu0 %v3195
          %v3825 = vpop.f32.mrb[0].mxu0
          %v3826 = vadd.f32 0.0, %v3825
          %v3827 = vpop.f32.mrb[0].mxu0
          %3828 = vmatprep.mubr.f32.mxu0 0.0
          %3829 = vmatmul.mubr.f32.gmra.mrb[0].mxu0 %v3196
          %v3830 = vpop.f32.mrb[0].mxu0
          %v3831 = vadd.f32 0.0, %v3830
          %v3832 = vpop.f32.mrb[0].mxu0
          %3833 = vmatprep.mubr.f32.mxu0 0.0
          %3834 = vmatmul.mubr.f32.gmra.mrb[0].mxu0 %v3197
          %v3835 = vpop.f32.mrb[0].mxu0
          %v3836 = vadd.f32 0.0, %v3835
          %v3837 = vpop.f32.mrb[0].mxu0
          %3838 = vmatprep.mubr.f32.mxu0 0.0
          %3839 = vmatmul.mubr.f32.gmra.mrb[0].mxu0 %v3198
          %v3840 = vpop.f32.mrb[0].mxu0
          %v3841 = vadd.f32 0.0, %v3840
          %v3842 = vpop.f32.mrb[0].mxu0
          %3843 = vmatprep.mubr.f32.mxu0 0.0
          %3844 = vmatmul.mubr.f32.gmra.mrb[0].mxu0 %v3199
          %v3845 = vpop.f32.mrb[0].mxu0
          %v3846 = vadd.f32 0.0, %v3845
          %v3847 = vpop.f32.mrb[0].mxu0
          %3848 = vmatprep.mubr.f32.mxu0 0.0
          %3849 = vmatmul.mubr.f32.gmra.mrb[0].mxu0 %v3200
          %v3850 = vpop.f32.mrb[0].mxu0
          %v3851 = vadd.f32 0.0, %v3850
          %v3852 = vpop.f32.mrb[0].mxu0
          %3853 = vmatprep.mubr.f32.mxu0 0.0
          %3854 = vmatmul.mubr.f32.gmra.mrb[0].mxu0 %v3201
          %v3855 = vpop.f32.mrb[0].mxu0
          %v3856 = vadd.f32 0.0, %v3855
          %v3857 = vpop.f32.mrb[0].mxu0
          %3858 = vmatprep.mubr.f32.mxu0 0.0
          %3859 = vmatmul.mubr.f32.gmra.mrb[0].mxu0 %v3202
          %v3860 = vpop.f32.mrb[0].mxu0
          %v3861 = vadd.f32 0.0, %v3860
          %v3862 = vpop.f32.mrb[0].mxu0
          %3863 = vmatprep.mubr.f32.mxu0 0.0
          %3864 = vmatmul.mubr.f32.gmra.mrb[0].mxu0 %v3203
          %v3865 = vpop.f32.mrb[0].mxu0
          %v3866 = vadd.f32 0.0, %v3865
          %v3867 = vpop.f32.mrb[0].mxu0
          %3868 = vmatprep.mubr.f32.mxu0 0.0
          %3869 = vmatmul.mubr.f32.gmra.mrb[0].mxu0 %v3204
          %v3870 = vpop.f32.mrb[0].mxu0
          %v3871 = vadd.f32 0.0, %v3870
          %v3872 = vpop.f32.mrb[0].mxu0
          %3873 = vmatprep.mubr.f32.mxu0 0.0
          %3874 = vmatmul.mubr.f32.gmra.mrb[0].mxu0 %v3205
          %v3875 = vpop.f32.mrb[0].mxu0
          %v3876 = vadd.f32 0.0, %v3875
          %v3877 = vpop.f32.mrb[0].mxu0
          %3878 = vmatprep.mubr.f32.mxu0 0.0
          %3879 = vmatmul.mubr.f32.gmra.mrb[0].mxu0 %v3206
          %v3880 = vpop.f32.mrb[0].mxu0
          %v3881 = vadd.f32 0.0, %v3880
          %v3882 = vpop.f32.mrb[0].mxu0
          %3883 = vmatprep.mubr.f32.mxu0 0.0
          %3884 = vmatmul.mubr.f32.gmra.mrb[0].mxu0 %v3207
          %v3885 = vpop.f32.mrb[0].mxu0
          %v3886 = vadd.f32 0.0, %v3885
          %v3887 = vpop.f32.mrb[0].mxu0
          %3888 = vmatprep.mubr.f32.mxu0 0.0
          %3889 = vmatmul.mubr.f32.gmra.mrb[0].mxu0 %v3208
          %v3890 = vpop.f32.mrb[0].mxu0
          %v3891 = vadd.f32 0.0, %v3890
          %v3892 = vpop.f32.mrb[0].mxu0
          %3893 = vmatprep.mubr.f32.mxu0 0.0
          %3894 = vmatmul.mubr.f32.gmra.mrb[0].mxu0 %v3209
          %v3895 = vpop.f32.mrb[0].mxu0
          %v3896 = vadd.f32 0.0, %v3895
          %v3897 = vpop.f32.mrb[0].mxu0
          %3898 = vmatprep.mubr.f32.mxu0 0.0
          %3899 = vmatmul.mubr.f32.gmra.mrb[0].mxu0 %v3210
          %v3900 = vpop.f32.mrb[0].mxu0
          %v3901 = vadd.f32 0.0, %v3900
          %v3902 = vpop.f32.mrb[0].mxu0
          %3903 = vmatprep.mubr.f32.mxu0 0.0
          %3904 = vmatmul.mubr.f32.gmra.mrb[0].mxu0 %v3211
          %v3905 = vpop.f32.mrb[0].mxu0
          %v3906 = vadd.f32 0.0, %v3905
          %v3907 = vpop.f32.mrb[0].mxu0
          %3908 = vmatprep.mubr.f32.mxu0 0.0
          %3909 = vmatmul.mubr.f32.gmra.mrb[0].mxu0 %v3212
          %v3910 = vpop.f32.mrb[0].mxu0
          %v3911 = vadd.f32 0.0, %v3910
          %v3912 = vpop.f32.mrb[0].mxu0
          %3913 = vmatprep.mubr.f32.mxu0 0.0
          %3914 = vmatmul.mubr.f32.gmra.mrb[0].mxu0 %v3213
          %v3915 = vpop.f32.mrb[0].mxu0
          %v3916 = vadd.f32 0.0, %v3915
          %v3917 = vpop.f32.mrb[0].mxu0
          %3918 = vmatprep.mubr.f32.mxu0 0.0
          %3919 = vmatmul.mubr.f32.gmra.mrb[0].mxu0 %v3214
          %v3920 = vpop.f32.mrb[0].mxu0
          %v3921 = vadd.f32 0.0, %v3920
          %v3922 = vpop.f32.mrb[0].mxu0
          %3923 = vmatprep.mubr.f32.mxu0 0.0
          %3924 = vmatmul.mubr.f32.gmra.mrb[0].mxu0 %v3215
          %v3925 = vpop.f32.mrb[0].mxu0
          %v3926 = vadd.f32 0.0, %v3925
          %v3927 = vpop.f32.mrb[0].mxu0
          %3928 = vmatprep.mubr.f32.mxu0 0.0
          %3929 = vmatmul.mubr.f32.gmra.mrb[0].mxu0 %v3216
          %v3930 = vpop.f32.mrb[0].mxu0
          %v3931 = vadd.f32 0.0, %v3930
          %v3932 = vpop.f32.mrb[0].mxu0
          %3933 = vmatprep.mubr.f32.mxu0 0.0
          %3934 = vmatmul.mubr.f32.gmra.mrb[0].mxu0 %v3217
          %v3935 = vpop.f32.mrb[0].mxu0
          %v3936 = vadd.f32 0.0, %v3935
          %v3937 = vpop.f32.mrb[0].mxu0
          %3938 = vdwg.mxu0
          %v3939 = vpack.c.bf16 %v3306, %v3301
          %v3940 = vpack.c.bf16 %v3316, %v3311
          %v3941 = vpack.c.bf16 %v3326, %v3321
          %v3942 = vpack.c.bf16 %v3336, %v3331
          %v3943 = vpack.c.bf16 %v3346, %v3341
          %v3944 = vpack.c.bf16 %v3356, %v3351
          %v3945 = vpack.c.bf16 %v3366, %v3361
          %v3946 = vpack.c.bf16 %v3376, %v3371
          %v3947 = vpack.c.bf16 %v3386, %v3381
          %v3948 = vpack.c.bf16 %v3396, %v3391
          %v3949 = vpack.c.bf16 %v3406, %v3401
          %v3950 = vpack.c.bf16 %v3416, %v3411
          %v3951 = vpack.c.bf16 %v3426, %v3421
          %v3952 = vpack.c.bf16 %v3436, %v3431
          %v3953 = vpack.c.bf16 %v3446, %v3441
          %v3954 = vpack.c.bf16 %v3456, %v3451
          %v3955 = vpack.c.bf16 %v3466, %v3461
          %v3956 = vpack.c.bf16 %v3476, %v3471
          %v3957 = vpack.c.bf16 %v3486, %v3481
          %v3958 = vpack.c.bf16 %v3496, %v3491
          %v3959 = vpack.c.bf16 %v3506, %v3501
          %v3960 = vpack.c.bf16 %v3516, %v3511
          %v3961 = vpack.c.bf16 %v3526, %v3521
          %v3962 = vpack.c.bf16 %v3536, %v3531
          %v3963 = vpack.c.bf16 %v3546, %v3541
          %v3964 = vpack.c.bf16 %v3556, %v3551
          %v3965 = vpack.c.bf16 %v3566, %v3561
          %v3966 = vpack.c.bf16 %v3576, %v3571
          %v3967 = vpack.c.bf16 %v3586, %v3581
          %v3968 = vpack.c.bf16 %v3596, %v3591
          %v3969 = vpack.c.bf16 %v3606, %v3601
          %v3970 = vpack.c.bf16 %v3616, %v3611
          %v3971 = vpack.c.bf16 %v3626, %v3621
          %v3972 = vpack.c.bf16 %v3636, %v3631
          %v3973 = vpack.c.bf16 %v3646, %v3641
          %v3974 = vpack.c.bf16 %v3656, %v3651
          %v3975 = vpack.c.bf16 %v3666, %v3661
          %v3976 = vpack.c.bf16 %v3676, %v3671
          %v3977 = vpack.c.bf16 %v3686, %v3681
          %v3978 = vpack.c.bf16 %v3696, %v3691
          %v3979 = vpack.c.bf16 %v3706, %v3701
          %v3980 = vpack.c.bf16 %v3716, %v3711
          %v3981 = vpack.c.bf16 %v3726, %v3721
          %v3982 = vpack.c.bf16 %v3736, %v3731
          %v3983 = vpack.c.bf16 %v3746, %v3741
          %v3984 = vpack.c.bf16 %v3756, %v3751
          %v3985 = vpack.c.bf16 %v3766, %v3761
          %v3986 = vpack.c.bf16 %v3776, %v3771
          %v3987 = vpack.c.bf16 %v3786, %v3781
          %v3988 = vpack.c.bf16 %v3796, %v3791
          %v3989 = vpack.c.bf16 %v3806, %v3801
          %v3990 = vpack.c.bf16 %v3816, %v3811
          %v3991 = vpack.c.bf16 %v3826, %v3821
          %v3992 = vpack.c.bf16 %v3836, %v3831
          %v3993 = vpack.c.bf16 %v3846, %v3841
          %v3994 = vpack.c.bf16 %v3856, %v3851
          %v3995 = vpack.c.bf16 %v3866, %v3861
          %v3996 = vpack.c.bf16 %v3876, %v3871
          %v3997 = vpack.c.bf16 %v3886, %v3881
          %v3998 = vpack.c.bf16 %v3896, %v3891
          %v3999 = vpack.c.bf16 %v3906, %v3901
          %v4000 = vpack.c.bf16 %v3916, %v3911
          %v4001 = vpack.c.bf16 %v3926, %v3921
          %v4002 = vpack.c.bf16 %v3936, %v3931
          %4003 = vst [vmem:[#allocation4] sm:$0xff] %v3939
          %4004 = vst [vmem:[#allocation4 + $0x8] sm:$0xff] %v3940
          %4005 = vst [vmem:[#allocation4 + $0x10] sm:$0xff] %v3941
          %4006 = vst [vmem:[#allocation4 + $0x18] sm:$0xff] %v3942
          %4007 = vst [vmem:[#allocation4 + $0x20] sm:$0xff] %v3943
          %4008 = vst [vmem:[#allocation4 + $0x28] sm:$0xff] %v3944
          %4009 = vst [vmem:[#allocation4 + $0x30] sm:$0xff] %v3945
          %4010 = vst [vmem:[#allocation4 + $0x38] sm:$0xff] %v3946
          %4011 = vst [vmem:[#allocation4 + $0x40] sm:$0xff] %v3947
          %4012 = vst [vmem:[#allocation4 + $0x48] sm:$0xff] %v3948
          %4013 = vst [vmem:[#allocation4 + $0x50] sm:$0xff] %v3949
          %4014 = vst [vmem:[#allocation4 + $0x58] sm:$0xff] %v3950
          %4015 = vst [vmem:[#allocation4 + $0x60] sm:$0xff] %v3951
          %4016 = vst [vmem:[#allocation4 + $0x68] sm:$0xff] %v3952
          %4017 = vst [vmem:[#allocation4 + $0x70] sm:$0xff] %v3953
          %4018 = vst [vmem:[#allocation4 + $0x78] sm:$0xff] %v3954
          %4019 = vst [vmem:[#allocation4 + $0x80] sm:$0xff] %v3955
          %4020 = vst [vmem:[#allocation4 + $0x88] sm:$0xff] %v3956
          %4021 = vst [vmem:[#allocation4 + $0x90] sm:$0xff] %v3957
          %4022 = vst [vmem:[#allocation4 + $0x98] sm:$0xff] %v3958
          %4023 = vst [vmem:[#allocation4 + $0xa0] sm:$0xff] %v3959
          %4024 = vst [vmem:[#allocation4 + $0xa8] sm:$0xff] %v3960
          %4025 = vst [vmem:[#allocation4 + $0xb0] sm:$0xff] %v3961
          %4026 = vst [vmem:[#allocation4 + $0xb8] sm:$0xff] %v3962
          %4027 = vst [vmem:[#allocation4 + $0xc0] sm:$0xff] %v3963
          %4028 = vst [vmem:[#allocation4 + $0xc8] sm:$0xff] %v3964
          %4029 = vst [vmem:[#allocation4 + $0xd0] sm:$0xff] %v3965
          %4030 = vst [vmem:[#allocation4 + $0xd8] sm:$0xff] %v3966
          %4031 = vst [vmem:[#allocation4 + $0xe0] sm:$0xff] %v3967
          %4032 = vst [vmem:[#allocation4 + $0xe8] sm:$0xff] %v3968
          %4033 = vst [vmem:[#allocation4 + $0xf0] sm:$0xff] %v3969
          %4034 = vst [vmem:[#allocation4 + $0xf8] sm:$0xff] %v3970
          %4035 = vst [vmem:[#allocation4 + $0x100] sm:$0xff] %v3971
          %4036 = vst [vmem:[#allocation4 + $0x108] sm:$0xff] %v3972
          %4037 = vst [vmem:[#allocation4 + $0x110] sm:$0xff] %v3973
          %4038 = vst [vmem:[#allocation4 + $0x118] sm:$0xff] %v3974
          %4039 = vst [vmem:[#allocation4 + $0x120] sm:$0xff] %v3975
          %4040 = vst [vmem:[#allocation4 + $0x128] sm:$0xff] %v3976
          %4041 = vst [vmem:[#allocation4 + $0x130] sm:$0xff] %v3977
          %4042 = vst [vmem:[#allocation4 + $0x138] sm:$0xff] %v3978
          %4043 = vst [vmem:[#allocation4 + $0x140] sm:$0xff] %v3979
          %4044 = vst [vmem:[#allocation4 + $0x148] sm:$0xff] %v3980
          %4045 = vst [vmem:[#allocation4 + $0x150] sm:$0xff] %v3981
          %4046 = vst [vmem:[#allocation4 + $0x158] sm:$0xff] %v3982
          %4047 = vst [vmem:[#allocation4 + $0x160] sm:$0xff] %v3983
          %4048 = vst [vmem:[#allocation4 + $0x168] sm:$0xff] %v3984
          %4049 = vst [vmem:[#allocation4 + $0x170] sm:$0xff] %v3985
          %4050 = vst [vmem:[#allocation4 + $0x178] sm:$0xff] %v3986
          %4051 = vst [vmem:[#allocation4 + $0x180] sm:$0xff] %v3987
          %4052 = vst [vmem:[#allocation4 + $0x188] sm:$0xff] %v3988
          %4053 = vst [vmem:[#allocation4 + $0x190] sm:$0xff] %v3989
          %4054 = vst [vmem:[#allocation4 + $0x198] sm:$0xff] %v3990
          %4055 = vst [vmem:[#allocation4 + $0x1a0] sm:$0xff] %v3991
          %4056 = vst [vmem:[#allocation4 + $0x1a8] sm:$0xff] %v3992
          %4057 = vst [vmem:[#allocation4 + $0x1b0] sm:$0xff] %v3993
          %4058 = vst [vmem:[#allocation4 + $0x1b8] sm:$0xff] %v3994
          %4059 = vst [vmem:[#allocation4 + $0x1c0] sm:$0xff] %v3995
          %4060 = vst [vmem:[#allocation4 + $0x1c8] sm:$0xff] %v3996
          %4061 = vst [vmem:[#allocation4 + $0x1d0] sm:$0xff] %v3997
          %4062 = vst [vmem:[#allocation4 + $0x1d8] sm:$0xff] %v3998
          %4063 = vst [vmem:[#allocation4 + $0x1e0] sm:$0xff] %v3999
          %4064 = vst [vmem:[#allocation4 + $0x1e8] sm:$0xff] %v4000
          %4065 = vst [vmem:[#allocation4 + $0x1f0] sm:$0xff] %v4001
          %4066 = vst [vmem:[#allocation4 + $0x1f8] sm:$0xff] %v4002
        $region104: #{tpu_custom_call.1} parent=55 // pred_fallthru
          _
        // Predicated region
        $region105: #{tpu_custom_call.1} parent=55 // pred_check
          %p4067 = pneg %p3085
        $region106: #{tpu_custom_call.1} parent=55 // pred_check_branch
          %4069 = sbr.rel (%p4067) target = $region108
        $region107: #{tpu_custom_call.1} parent=55 // pred_region
          %v4070 = vld [vmem:[%s410] sm:$0xff]
          %v4071 = vld [vmem:[%s410 + $0x8] sm:$0xff]
          %v4072 = vld [vmem:[%s410 + $0x10] sm:$0xff]
          %v4073 = vld [vmem:[%s410 + $0x18] sm:$0xff]
          %v4074 = vld [vmem:[%s410 + $0x20] sm:$0xff]
          %v4075 = vld [vmem:[%s410 + $0x28] sm:$0xff]
          %v4076 = vld [vmem:[%s410 + $0x30] sm:$0xff]
          %v4077 = vld [vmem:[%s410 + $0x38] sm:$0xff]
          %v4078 = vld [vmem:[%s410 + $0x40] sm:$0xff]
          %v4079 = vld [vmem:[%s410 + $0x48] sm:$0xff]
          %v4080 = vld [vmem:[%s410 + $0x50] sm:$0xff]
          %v4081 = vld [vmem:[%s410 + $0x58] sm:$0xff]
          %v4082 = vld [vmem:[%s410 + $0x60] sm:$0xff]
          %v4083 = vld [vmem:[%s410 + $0x68] sm:$0xff]
          %v4084 = vld [vmem:[%s410 + $0x70] sm:$0xff]
          %v4085 = vld [vmem:[%s410 + $0x78] sm:$0xff]
          %v4086 = vld [vmem:[%s410 + $0x80] sm:$0xff]
          %v4087 = vld [vmem:[%s410 + $0x88] sm:$0xff]
          %v4088 = vld [vmem:[%s410 + $0x90] sm:$0xff]
          %v4089 = vld [vmem:[%s410 + $0x98] sm:$0xff]
          %v4090 = vld [vmem:[%s410 + $0xa0] sm:$0xff]
          %v4091 = vld [vmem:[%s410 + $0xa8] sm:$0xff]
          %v4092 = vld [vmem:[%s410 + $0xb0] sm:$0xff]
          %v4093 = vld [vmem:[%s410 + $0xb8] sm:$0xff]
          %v4094 = vld [vmem:[%s410 + $0xc0] sm:$0xff]
          %v4095 = vld [vmem:[%s410 + $0xc8] sm:$0xff]
          %v4096 = vld [vmem:[%s410 + $0xd0] sm:$0xff]
          %v4097 = vld [vmem:[%s410 + $0xd8] sm:$0xff]
          %v4098 = vld [vmem:[%s410 + $0xe0] sm:$0xff]
          %v4099 = vld [vmem:[%s410 + $0xe8] sm:$0xff]
          %v4100 = vld [vmem:[%s410 + $0xf0] sm:$0xff]
          %v4101 = vld [vmem:[%s410 + $0xf8] sm:$0xff]
          %v4102 = vld [vmem:[%s410 + $0x100] sm:$0xff]
          %v4103 = vld [vmem:[%s410 + $0x108] sm:$0xff]
          %v4104 = vld [vmem:[%s410 + $0x110] sm:$0xff]
          %v4105 = vld [vmem:[%s410 + $0x118] sm:$0xff]
          %v4106 = vld [vmem:[%s410 + $0x120] sm:$0xff]
          %v4107 = vld [vmem:[%s410 + $0x128] sm:$0xff]
          %v4108 = vld [vmem:[%s410 + $0x130] sm:$0xff]
          %v4109 = vld [vmem:[%s410 + $0x138] sm:$0xff]
          %v4110 = vld [vmem:[%s410 + $0x140] sm:$0xff]
          %v4111 = vld [vmem:[%s410 + $0x148] sm:$0xff]
          %v4112 = vld [vmem:[%s410 + $0x150] sm:$0xff]
          %v4113 = vld [vmem:[%s410 + $0x158] sm:$0xff]
          %v4114 = vld [vmem:[%s410 + $0x160] sm:$0xff]
          %v4115 = vld [vmem:[%s410 + $0x168] sm:$0xff]
          %v4116 = vld [vmem:[%s410 + $0x170] sm:$0xff]
          %v4117 = vld [vmem:[%s410 + $0x178] sm:$0xff]
          %v4118 = vld [vmem:[%s410 + $0x180] sm:$0xff]
          %v4119 = vld [vmem:[%s410 + $0x188] sm:$0xff]
          %v4120 = vld [vmem:[%s410 + $0x190] sm:$0xff]
          %v4121 = vld [vmem:[%s410 + $0x198] sm:$0xff]
          %v4122 = vld [vmem:[%s410 + $0x1a0] sm:$0xff]
          %v4123 = vld [vmem:[%s410 + $0x1a8] sm:$0xff]
          %v4124 = vld [vmem:[%s410 + $0x1b0] sm:$0xff]
          %v4125 = vld [vmem:[%s410 + $0x1b8] sm:$0xff]
          %v4126 = vld [vmem:[%s410 + $0x1c0] sm:$0xff]
          %v4127 = vld [vmem:[%s410 + $0x1c8] sm:$0xff]
          %v4128 = vld [vmem:[%s410 + $0x1d0] sm:$0xff]
          %v4129 = vld [vmem:[%s410 + $0x1d8] sm:$0xff]
          %v4130 = vld [vmem:[%s410 + $0x1e0] sm:$0xff]
          %v4131 = vld [vmem:[%s410 + $0x1e8] sm:$0xff]
          %v4132 = vld [vmem:[%s410 + $0x1f0] sm:$0xff]
          %v4133 = vld [vmem:[%s410 + $0x1f8] sm:$0xff]
          %v4134 = vld [vmem:[%s410 + $0x200] sm:$0xff]
          %v4135 = vld [vmem:[%s410 + $0x208] sm:$0xff]
          %v4136 = vld [vmem:[%s410 + $0x210] sm:$0xff]
          %v4137 = vld [vmem:[%s410 + $0x218] sm:$0xff]
          %v4138 = vld [vmem:[%s410 + $0x220] sm:$0xff]
          %v4139 = vld [vmem:[%s410 + $0x228] sm:$0xff]
          %v4140 = vld [vmem:[%s410 + $0x230] sm:$0xff]
          %v4141 = vld [vmem:[%s410 + $0x238] sm:$0xff]
          %v4142 = vld [vmem:[%s410 + $0x240] sm:$0xff]
          %v4143 = vld [vmem:[%s410 + $0x248] sm:$0xff]
          %v4144 = vld [vmem:[%s410 + $0x250] sm:$0xff]
          %v4145 = vld [vmem:[%s410 + $0x258] sm:$0xff]
          %v4146 = vld [vmem:[%s410 + $0x260] sm:$0xff]
          %v4147 = vld [vmem:[%s410 + $0x268] sm:$0xff]
          %v4148 = vld [vmem:[%s410 + $0x270] sm:$0xff]
          %v4149 = vld [vmem:[%s410 + $0x278] sm:$0xff]
          %v4150 = vld [vmem:[%s410 + $0x280] sm:$0xff]
          %v4151 = vld [vmem:[%s410 + $0x288] sm:$0xff]
          %v4152 = vld [vmem:[%s410 + $0x290] sm:$0xff]
          %v4153 = vld [vmem:[%s410 + $0x298] sm:$0xff]
          %v4154 = vld [vmem:[%s410 + $0x2a0] sm:$0xff]
          %v4155 = vld [vmem:[%s410 + $0x2a8] sm:$0xff]
          %v4156 = vld [vmem:[%s410 + $0x2b0] sm:$0xff]
          %v4157 = vld [vmem:[%s410 + $0x2b8] sm:$0xff]
          %v4158 = vld [vmem:[%s410 + $0x2c0] sm:$0xff]
          %v4159 = vld [vmem:[%s410 + $0x2c8] sm:$0xff]
          %v4160 = vld [vmem:[%s410 + $0x2d0] sm:$0xff]
          %v4161 = vld [vmem:[%s410 + $0x2d8] sm:$0xff]
          %v4162 = vld [vmem:[%s410 + $0x2e0] sm:$0xff]
          %v4163 = vld [vmem:[%s410 + $0x2e8] sm:$0xff]
          %v4164 = vld [vmem:[%s410 + $0x2f0] sm:$0xff]
          %v4165 = vld [vmem:[%s410 + $0x2f8] sm:$0xff]
          %v4166 = vld [vmem:[%s410 + $0x300] sm:$0xff]
          %v4167 = vld [vmem:[%s410 + $0x308] sm:$0xff]
          %v4168 = vld [vmem:[%s410 + $0x310] sm:$0xff]
          %v4169 = vld [vmem:[%s410 + $0x318] sm:$0xff]
          %v4170 = vld [vmem:[%s410 + $0x320] sm:$0xff]
          %v4171 = vld [vmem:[%s410 + $0x328] sm:$0xff]
          %v4172 = vld [vmem:[%s410 + $0x330] sm:$0xff]
          %v4173 = vld [vmem:[%s410 + $0x338] sm:$0xff]
          %v4174 = vld [vmem:[%s410 + $0x340] sm:$0xff]
          %v4175 = vld [vmem:[%s410 + $0x348] sm:$0xff]
          %v4176 = vld [vmem:[%s410 + $0x350] sm:$0xff]
          %v4177 = vld [vmem:[%s410 + $0x358] sm:$0xff]
          %v4178 = vld [vmem:[%s410 + $0x360] sm:$0xff]
          %v4179 = vld [vmem:[%s410 + $0x368] sm:$0xff]
          %v4180 = vld [vmem:[%s410 + $0x370] sm:$0xff]
          %v4181 = vld [vmem:[%s410 + $0x378] sm:$0xff]
          %v4182 = vld [vmem:[%s410 + $0x380] sm:$0xff]
          %v4183 = vld [vmem:[%s410 + $0x388] sm:$0xff]
          %v4184 = vld [vmem:[%s410 + $0x390] sm:$0xff]
          %v4185 = vld [vmem:[%s410 + $0x398] sm:$0xff]
          %v4186 = vld [vmem:[%s410 + $0x3a0] sm:$0xff]
          %v4187 = vld [vmem:[%s410 + $0x3a8] sm:$0xff]
          %v4188 = vld [vmem:[%s410 + $0x3b0] sm:$0xff]
          %v4189 = vld [vmem:[%s410 + $0x3b8] sm:$0xff]
          %v4190 = vld [vmem:[%s410 + $0x3c0] sm:$0xff]
          %v4191 = vld [vmem:[%s410 + $0x3c8] sm:$0xff]
          %v4192 = vld [vmem:[%s410 + $0x3d0] sm:$0xff]
          %v4193 = vld [vmem:[%s410 + $0x3d8] sm:$0xff]
          %v4194 = vld [vmem:[%s410 + $0x3e0] sm:$0xff]
          %v4195 = vld [vmem:[%s410 + $0x3e8] sm:$0xff]
          %v4196 = vld [vmem:[%s410 + $0x3f0] sm:$0xff]
          %v4197 = vld [vmem:[%s410 + $0x3f8] sm:$0xff]
          %v4198 = vld [vmem:[#allocation4] sm:$0xff]
          %v4199 = vld [vmem:[#allocation4 + $0x8] sm:$0xff]
          %v4200 = vld [vmem:[#allocation4 + $0x10] sm:$0xff]
          %v4201 = vld [vmem:[#allocation4 + $0x18] sm:$0xff]
          %v4202 = vld [vmem:[#allocation4 + $0x20] sm:$0xff]
          %v4203 = vld [vmem:[#allocation4 + $0x28] sm:$0xff]
          %v4204 = vld [vmem:[#allocation4 + $0x30] sm:$0xff]
          %v4205 = vld [vmem:[#allocation4 + $0x38] sm:$0xff]
          %v4206 = vld [vmem:[#allocation4 + $0x40] sm:$0xff]
          %v4207 = vld [vmem:[#allocation4 + $0x48] sm:$0xff]
          %v4208 = vld [vmem:[#allocation4 + $0x50] sm:$0xff]
          %v4209 = vld [vmem:[#allocation4 + $0x58] sm:$0xff]
          %v4210 = vld [vmem:[#allocation4 + $0x60] sm:$0xff]
          %v4211 = vld [vmem:[#allocation4 + $0x68] sm:$0xff]
          %v4212 = vld [vmem:[#allocation4 + $0x70] sm:$0xff]
          %v4213 = vld [vmem:[#allocation4 + $0x78] sm:$0xff]
          %v4214 = vld [vmem:[#allocation4 + $0x80] sm:$0xff]
          %v4215 = vld [vmem:[#allocation4 + $0x88] sm:$0xff]
          %v4216 = vld [vmem:[#allocation4 + $0x90] sm:$0xff]
          %v4217 = vld [vmem:[#allocation4 + $0x98] sm:$0xff]
          %v4218 = vld [vmem:[#allocation4 + $0xa0] sm:$0xff]
          %v4219 = vld [vmem:[#allocation4 + $0xa8] sm:$0xff]
          %v4220 = vld [vmem:[#allocation4 + $0xb0] sm:$0xff]
          %v4221 = vld [vmem:[#allocation4 + $0xb8] sm:$0xff]
          %v4222 = vld [vmem:[#allocation4 + $0xc0] sm:$0xff]
          %v4223 = vld [vmem:[#allocation4 + $0xc8] sm:$0xff]
          %v4224 = vld [vmem:[#allocation4 + $0xd0] sm:$0xff]
          %v4225 = vld [vmem:[#allocation4 + $0xd8] sm:$0xff]
          %v4226 = vld [vmem:[#allocation4 + $0xe0] sm:$0xff]
          %v4227 = vld [vmem:[#allocation4 + $0xe8] sm:$0xff]
          %v4228 = vld [vmem:[#allocation4 + $0xf0] sm:$0xff]
          %v4229 = vld [vmem:[#allocation4 + $0xf8] sm:$0xff]
          %v4230 = vld [vmem:[#allocation4 + $0x100] sm:$0xff]
          %v4231 = vld [vmem:[#allocation4 + $0x108] sm:$0xff]
          %v4232 = vld [vmem:[#allocation4 + $0x110] sm:$0xff]
          %v4233 = vld [vmem:[#allocation4 + $0x118] sm:$0xff]
          %v4234 = vld [vmem:[#allocation4 + $0x120] sm:$0xff]
          %v4235 = vld [vmem:[#allocation4 + $0x128] sm:$0xff]
          %v4236 = vld [vmem:[#allocation4 + $0x130] sm:$0xff]
          %v4237 = vld [vmem:[#allocation4 + $0x138] sm:$0xff]
          %v4238 = vld [vmem:[#allocation4 + $0x140] sm:$0xff]
          %v4239 = vld [vmem:[#allocation4 + $0x148] sm:$0xff]
          %v4240 = vld [vmem:[#allocation4 + $0x150] sm:$0xff]
          %v4241 = vld [vmem:[#allocation4 + $0x158] sm:$0xff]
          %v4242 = vld [vmem:[#allocation4 + $0x160] sm:$0xff]
          %v4243 = vld [vmem:[#allocation4 + $0x168] sm:$0xff]
          %v4244 = vld [vmem:[#allocation4 + $0x170] sm:$0xff]
          %v4245 = vld [vmem:[#allocation4 + $0x178] sm:$0xff]
          %v4246 = vld [vmem:[#allocation4 + $0x180] sm:$0xff]
          %v4247 = vld [vmem:[#allocation4 + $0x188] sm:$0xff]
          %v4248 = vld [vmem:[#allocation4 + $0x190] sm:$0xff]
          %v4249 = vld [vmem:[#allocation4 + $0x198] sm:$0xff]
          %v4250 = vld [vmem:[#allocation4 + $0x1a0] sm:$0xff]
          %v4251 = vld [vmem:[#allocation4 + $0x1a8] sm:$0xff]
          %v4252 = vld [vmem:[#allocation4 + $0x1b0] sm:$0xff]
          %v4253 = vld [vmem:[#allocation4 + $0x1b8] sm:$0xff]
          %v4254 = vld [vmem:[#allocation4 + $0x1c0] sm:$0xff]
          %v4255 = vld [vmem:[#allocation4 + $0x1c8] sm:$0xff]
          %v4256 = vld [vmem:[#allocation4 + $0x1d0] sm:$0xff]
          %v4257 = vld [vmem:[#allocation4 + $0x1d8] sm:$0xff]
          %v4258 = vld [vmem:[#allocation4 + $0x1e0] sm:$0xff]
          %v4259 = vld [vmem:[#allocation4 + $0x1e8] sm:$0xff]
          %v4260 = vld [vmem:[#allocation4 + $0x1f0] sm:$0xff]
          %v4261 = vld [vmem:[#allocation4 + $0x1f8] sm:$0xff]
          %v4262 = vld [vmem:[#allocation15] sm:$0x1]
          %v4264 = vlaneseq
          %v4265 = vshrl.u32 %v4264, 7
          %v4266 = vsub.s32 0, %v4265
          %v4267 = vrot.slane %v4262, %v4266
          %v4397 = vunpack.c.l.b16 %v4070
          %v4398 = vunpack.c.h.b16 %v4070
          %v4399 = vunpack.c.l.b16 %v4071
          %v4400 = vunpack.c.h.b16 %v4071
          %v4401 = vunpack.c.l.b16 %v4072
          %v4402 = vunpack.c.h.b16 %v4072
          %v4403 = vunpack.c.l.b16 %v4073
          %v4404 = vunpack.c.h.b16 %v4073
          %v4405 = vunpack.c.l.b16 %v4074
          %v4406 = vunpack.c.h.b16 %v4074
          %v4407 = vunpack.c.l.b16 %v4075
          %v4408 = vunpack.c.h.b16 %v4075
          %v4409 = vunpack.c.l.b16 %v4076
          %v4410 = vunpack.c.h.b16 %v4076
          %v4411 = vunpack.c.l.b16 %v4077
          %v4412 = vunpack.c.h.b16 %v4077
          %v4413 = vunpack.c.l.b16 %v4078
          %v4414 = vunpack.c.h.b16 %v4078
          %v4415 = vunpack.c.l.b16 %v4079
          %v4416 = vunpack.c.h.b16 %v4079
          %v4417 = vunpack.c.l.b16 %v4080
          %v4418 = vunpack.c.h.b16 %v4080
          %v4419 = vunpack.c.l.b16 %v4081
          %v4420 = vunpack.c.h.b16 %v4081
          %v4421 = vunpack.c.l.b16 %v4082
          %v4422 = vunpack.c.h.b16 %v4082
          %v4423 = vunpack.c.l.b16 %v4083
          %v4424 = vunpack.c.h.b16 %v4083
          %v4425 = vunpack.c.l.b16 %v4084
          %v4426 = vunpack.c.h.b16 %v4084
          %v4427 = vunpack.c.l.b16 %v4085
          %v4428 = vunpack.c.h.b16 %v4085
          %v4429 = vunpack.c.l.b16 %v4086
          %v4430 = vunpack.c.h.b16 %v4086
          %v4431 = vunpack.c.l.b16 %v4087
          %v4432 = vunpack.c.h.b16 %v4087
          %v4433 = vunpack.c.l.b16 %v4088
          %v4434 = vunpack.c.h.b16 %v4088
          %v4435 = vunpack.c.l.b16 %v4089
          %v4436 = vunpack.c.h.b16 %v4089
          %v4437 = vunpack.c.l.b16 %v4090
          %v4438 = vunpack.c.h.b16 %v4090
          %v4439 = vunpack.c.l.b16 %v4091
          %v4440 = vunpack.c.h.b16 %v4091
          %v4441 = vunpack.c.l.b16 %v4092
          %v4442 = vunpack.c.h.b16 %v4092
          %v4443 = vunpack.c.l.b16 %v4093
          %v4444 = vunpack.c.h.b16 %v4093
          %v4445 = vunpack.c.l.b16 %v4094
          %v4446 = vunpack.c.h.b16 %v4094
          %v4447 = vunpack.c.l.b16 %v4095
          %v4448 = vunpack.c.h.b16 %v4095
          %v4449 = vunpack.c.l.b16 %v4096
          %v4450 = vunpack.c.h.b16 %v4096
          %v4451 = vunpack.c.l.b16 %v4097
          %v4452 = vunpack.c.h.b16 %v4097
          %v4453 = vunpack.c.l.b16 %v4098
          %v4454 = vunpack.c.h.b16 %v4098
          %v4455 = vunpack.c.l.b16 %v4099
          %v4456 = vunpack.c.h.b16 %v4099
          %v4457 = vunpack.c.l.b16 %v4100
          %v4458 = vunpack.c.h.b16 %v4100
          %v4459 = vunpack.c.l.b16 %v4101
          %v4460 = vunpack.c.h.b16 %v4101
          %v4461 = vunpack.c.l.b16 %v4102
          %v4462 = vunpack.c.h.b16 %v4102
          %v4463 = vunpack.c.l.b16 %v4103
          %v4464 = vunpack.c.h.b16 %v4103
          %v4465 = vunpack.c.l.b16 %v4104
          %v4466 = vunpack.c.h.b16 %v4104
          %v4467 = vunpack.c.l.b16 %v4105
          %v4468 = vunpack.c.h.b16 %v4105
          %v4469 = vunpack.c.l.b16 %v4106
          %v4470 = vunpack.c.h.b16 %v4106
          %v4471 = vunpack.c.l.b16 %v4107
          %v4472 = vunpack.c.h.b16 %v4107
          %v4473 = vunpack.c.l.b16 %v4108
          %v4474 = vunpack.c.h.b16 %v4108
          %v4475 = vunpack.c.l.b16 %v4109
          %v4476 = vunpack.c.h.b16 %v4109
          %v4477 = vunpack.c.l.b16 %v4110
          %v4478 = vunpack.c.h.b16 %v4110
          %v4479 = vunpack.c.l.b16 %v4111
          %v4480 = vunpack.c.h.b16 %v4111
          %v4481 = vunpack.c.l.b16 %v4112
          %v4482 = vunpack.c.h.b16 %v4112
          %v4483 = vunpack.c.l.b16 %v4113
          %v4484 = vunpack.c.h.b16 %v4113
          %v4485 = vunpack.c.l.b16 %v4114
          %v4486 = vunpack.c.h.b16 %v4114
          %v4487 = vunpack.c.l.b16 %v4115
          %v4488 = vunpack.c.h.b16 %v4115
          %v4489 = vunpack.c.l.b16 %v4116
          %v4490 = vunpack.c.h.b16 %v4116
          %v4491 = vunpack.c.l.b16 %v4117
          %v4492 = vunpack.c.h.b16 %v4117
          %v4493 = vunpack.c.l.b16 %v4118
          %v4494 = vunpack.c.h.b16 %v4118
          %v4495 = vunpack.c.l.b16 %v4119
          %v4496 = vunpack.c.h.b16 %v4119
          %v4497 = vunpack.c.l.b16 %v4120
          %v4498 = vunpack.c.h.b16 %v4120
          %v4499 = vunpack.c.l.b16 %v4121
          %v4500 = vunpack.c.h.b16 %v4121
          %v4501 = vunpack.c.l.b16 %v4122
          %v4502 = vunpack.c.h.b16 %v4122
          %v4503 = vunpack.c.l.b16 %v4123
          %v4504 = vunpack.c.h.b16 %v4123
          %v4505 = vunpack.c.l.b16 %v4124
          %v4506 = vunpack.c.h.b16 %v4124
          %v4507 = vunpack.c.l.b16 %v4125
          %v4508 = vunpack.c.h.b16 %v4125
          %v4509 = vunpack.c.l.b16 %v4126
          %v4510 = vunpack.c.h.b16 %v4126
          %v4511 = vunpack.c.l.b16 %v4127
          %v4512 = vunpack.c.h.b16 %v4127
          %v4513 = vunpack.c.l.b16 %v4128
          %v4514 = vunpack.c.h.b16 %v4128
          %v4515 = vunpack.c.l.b16 %v4129
          %v4516 = vunpack.c.h.b16 %v4129
          %v4517 = vunpack.c.l.b16 %v4130
          %v4518 = vunpack.c.h.b16 %v4130
          %v4519 = vunpack.c.l.b16 %v4131
          %v4520 = vunpack.c.h.b16 %v4131
          %v4521 = vunpack.c.l.b16 %v4132
          %v4522 = vunpack.c.h.b16 %v4132
          %v4523 = vunpack.c.l.b16 %v4133
          %v4524 = vunpack.c.h.b16 %v4133
          %v4525 = vunpack.c.l.b16 %v4134
          %v4526 = vunpack.c.h.b16 %v4134
          %v4527 = vunpack.c.l.b16 %v4135
          %v4528 = vunpack.c.h.b16 %v4135
          %v4529 = vunpack.c.l.b16 %v4136
          %v4530 = vunpack.c.h.b16 %v4136
          %v4531 = vunpack.c.l.b16 %v4137
          %v4532 = vunpack.c.h.b16 %v4137
          %v4533 = vunpack.c.l.b16 %v4138
          %v4534 = vunpack.c.h.b16 %v4138
          %v4535 = vunpack.c.l.b16 %v4139
          %v4536 = vunpack.c.h.b16 %v4139
          %v4537 = vunpack.c.l.b16 %v4140
          %v4538 = vunpack.c.h.b16 %v4140
          %v4539 = vunpack.c.l.b16 %v4141
          %v4540 = vunpack.c.h.b16 %v4141
          %v4541 = vunpack.c.l.b16 %v4142
          %v4542 = vunpack.c.h.b16 %v4142
          %v4543 = vunpack.c.l.b16 %v4143
          %v4544 = vunpack.c.h.b16 %v4143
          %v4545 = vunpack.c.l.b16 %v4144
          %v4546 = vunpack.c.h.b16 %v4144
          %v4547 = vunpack.c.l.b16 %v4145
          %v4548 = vunpack.c.h.b16 %v4145
          %v4549 = vunpack.c.l.b16 %v4146
          %v4550 = vunpack.c.h.b16 %v4146
          %v4551 = vunpack.c.l.b16 %v4147
          %v4552 = vunpack.c.h.b16 %v4147
          %v4553 = vunpack.c.l.b16 %v4148
          %v4554 = vunpack.c.h.b16 %v4148
          %v4555 = vunpack.c.l.b16 %v4149
          %v4556 = vunpack.c.h.b16 %v4149
          %v4557 = vunpack.c.l.b16 %v4150
          %v4558 = vunpack.c.h.b16 %v4150
          %v4559 = vunpack.c.l.b16 %v4151
          %v4560 = vunpack.c.h.b16 %v4151
          %v4561 = vunpack.c.l.b16 %v4152
          %v4562 = vunpack.c.h.b16 %v4152
          %v4563 = vunpack.c.l.b16 %v4153
          %v4564 = vunpack.c.h.b16 %v4153
          %v4565 = vunpack.c.l.b16 %v4154
          %v4566 = vunpack.c.h.b16 %v4154
          %v4567 = vunpack.c.l.b16 %v4155
          %v4568 = vunpack.c.h.b16 %v4155
          %v4569 = vunpack.c.l.b16 %v4156
          %v4570 = vunpack.c.h.b16 %v4156
          %v4571 = vunpack.c.l.b16 %v4157
          %v4572 = vunpack.c.h.b16 %v4157
          %v4573 = vunpack.c.l.b16 %v4158
          %v4574 = vunpack.c.h.b16 %v4158
          %v4575 = vunpack.c.l.b16 %v4159
          %v4576 = vunpack.c.h.b16 %v4159
          %v4577 = vunpack.c.l.b16 %v4160
          %v4578 = vunpack.c.h.b16 %v4160
          %v4579 = vunpack.c.l.b16 %v4161
          %v4580 = vunpack.c.h.b16 %v4161
          %v4581 = vunpack.c.l.b16 %v4162
          %v4582 = vunpack.c.h.b16 %v4162
          %v4583 = vunpack.c.l.b16 %v4163
          %v4584 = vunpack.c.h.b16 %v4163
          %v4585 = vunpack.c.l.b16 %v4164
          %v4586 = vunpack.c.h.b16 %v4164
          %v4587 = vunpack.c.l.b16 %v4165
          %v4588 = vunpack.c.h.b16 %v4165
          %v4589 = vunpack.c.l.b16 %v4166
          %v4590 = vunpack.c.h.b16 %v4166
          %v4591 = vunpack.c.l.b16 %v4167
          %v4592 = vunpack.c.h.b16 %v4167
          %v4593 = vunpack.c.l.b16 %v4168
          %v4594 = vunpack.c.h.b16 %v4168
          %v4595 = vunpack.c.l.b16 %v4169
          %v4596 = vunpack.c.h.b16 %v4169
          %v4597 = vunpack.c.l.b16 %v4170
          %v4598 = vunpack.c.h.b16 %v4170
          %v4599 = vunpack.c.l.b16 %v4171
          %v4600 = vunpack.c.h.b16 %v4171
          %v4601 = vunpack.c.l.b16 %v4172
          %v4602 = vunpack.c.h.b16 %v4172
          %v4603 = vunpack.c.l.b16 %v4173
          %v4604 = vunpack.c.h.b16 %v4173
          %v4605 = vunpack.c.l.b16 %v4174
          %v4606 = vunpack.c.h.b16 %v4174
          %v4607 = vunpack.c.l.b16 %v4175
          %v4608 = vunpack.c.h.b16 %v4175
          %v4609 = vunpack.c.l.b16 %v4176
          %v4610 = vunpack.c.h.b16 %v4176
          %v4611 = vunpack.c.l.b16 %v4177
          %v4612 = vunpack.c.h.b16 %v4177
          %v4613 = vunpack.c.l.b16 %v4178
          %v4614 = vunpack.c.h.b16 %v4178
          %v4615 = vunpack.c.l.b16 %v4179
          %v4616 = vunpack.c.h.b16 %v4179
          %v4617 = vunpack.c.l.b16 %v4180
          %v4618 = vunpack.c.h.b16 %v4180
          %v4619 = vunpack.c.l.b16 %v4181
          %v4620 = vunpack.c.h.b16 %v4181
          %v4621 = vunpack.c.l.b16 %v4182
          %v4622 = vunpack.c.h.b16 %v4182
          %v4623 = vunpack.c.l.b16 %v4183
          %v4624 = vunpack.c.h.b16 %v4183
          %v4625 = vunpack.c.l.b16 %v4184
          %v4626 = vunpack.c.h.b16 %v4184
          %v4627 = vunpack.c.l.b16 %v4185
          %v4628 = vunpack.c.h.b16 %v4185
          %v4629 = vunpack.c.l.b16 %v4186
          %v4630 = vunpack.c.h.b16 %v4186
          %v4631 = vunpack.c.l.b16 %v4187
          %v4632 = vunpack.c.h.b16 %v4187
          %v4633 = vunpack.c.l.b16 %v4188
          %v4634 = vunpack.c.h.b16 %v4188
          %v4635 = vunpack.c.l.b16 %v4189
          %v4636 = vunpack.c.h.b16 %v4189
          %v4637 = vunpack.c.l.b16 %v4190
          %v4638 = vunpack.c.h.b16 %v4190
          %v4639 = vunpack.c.l.b16 %v4191
          %v4640 = vunpack.c.h.b16 %v4191
          %v4641 = vunpack.c.l.b16 %v4192
          %v4642 = vunpack.c.h.b16 %v4192
          %v4643 = vunpack.c.l.b16 %v4193
          %v4644 = vunpack.c.h.b16 %v4193
          %v4645 = vunpack.c.l.b16 %v4194
          %v4646 = vunpack.c.h.b16 %v4194
          %v4647 = vunpack.c.l.b16 %v4195
          %v4648 = vunpack.c.h.b16 %v4195
          %v4649 = vunpack.c.l.b16 %v4196
          %v4650 = vunpack.c.h.b16 %v4196
          %v4651 = vunpack.c.l.b16 %v4197
          %v4652 = vunpack.c.h.b16 %v4197
          %v4653 = vpack.c.b16 %v4405, %v4397
          %v4654 = vpack.c.b16 %v4406, %v4398
          %v4655 = vpack.c.b16 %v4407, %v4399
          %v4656 = vpack.c.b16 %v4408, %v4400
          %v4657 = vpack.c.b16 %v4409, %v4401
          %v4658 = vpack.c.b16 %v4410, %v4402
          %v4659 = vpack.c.b16 %v4411, %v4403
          %v4660 = vpack.c.b16 %v4412, %v4404
          %v4661 = vpack.c.b16 %v4421, %v4413
          %v4662 = vpack.c.b16 %v4422, %v4414
          %v4663 = vpack.c.b16 %v4423, %v4415
          %v4664 = vpack.c.b16 %v4424, %v4416
          %v4665 = vpack.c.b16 %v4425, %v4417
          %v4666 = vpack.c.b16 %v4426, %v4418
          %v4667 = vpack.c.b16 %v4427, %v4419
          %v4668 = vpack.c.b16 %v4428, %v4420
          %v4669 = vpack.c.b16 %v4437, %v4429
          %v4670 = vpack.c.b16 %v4438, %v4430
          %v4671 = vpack.c.b16 %v4439, %v4431
          %v4672 = vpack.c.b16 %v4440, %v4432
          %v4673 = vpack.c.b16 %v4441, %v4433
          %v4674 = vpack.c.b16 %v4442, %v4434
          %v4675 = vpack.c.b16 %v4443, %v4435
          %v4676 = vpack.c.b16 %v4444, %v4436
          %v4677 = vpack.c.b16 %v4453, %v4445
          %v4678 = vpack.c.b16 %v4454, %v4446
          %v4679 = vpack.c.b16 %v4455, %v4447
          %v4680 = vpack.c.b16 %v4456, %v4448
          %v4681 = vpack.c.b16 %v4457, %v4449
          %v4682 = vpack.c.b16 %v4458, %v4450
          %v4683 = vpack.c.b16 %v4459, %v4451
          %v4684 = vpack.c.b16 %v4460, %v4452
          %v4685 = vpack.c.b16 %v4469, %v4461
          %v4686 = vpack.c.b16 %v4470, %v4462
          %v4687 = vpack.c.b16 %v4471, %v4463
          %v4688 = vpack.c.b16 %v4472, %v4464
          %v4689 = vpack.c.b16 %v4473, %v4465
          %v4690 = vpack.c.b16 %v4474, %v4466
          %v4691 = vpack.c.b16 %v4475, %v4467
          %v4692 = vpack.c.b16 %v4476, %v4468
          %v4693 = vpack.c.b16 %v4485, %v4477
          %v4694 = vpack.c.b16 %v4486, %v4478
          %v4695 = vpack.c.b16 %v4487, %v4479
          %v4696 = vpack.c.b16 %v4488, %v4480
          %v4697 = vpack.c.b16 %v4489, %v4481
          %v4698 = vpack.c.b16 %v4490, %v4482
          %v4699 = vpack.c.b16 %v4491, %v4483
          %v4700 = vpack.c.b16 %v4492, %v4484
          %v4701 = vpack.c.b16 %v4501, %v4493
          %v4702 = vpack.c.b16 %v4502, %v4494
          %v4703 = vpack.c.b16 %v4503, %v4495
          %v4704 = vpack.c.b16 %v4504, %v4496
          %v4705 = vpack.c.b16 %v4505, %v4497
          %v4706 = vpack.c.b16 %v4506, %v4498
          %v4707 = vpack.c.b16 %v4507, %v4499
          %v4708 = vpack.c.b16 %v4508, %v4500
          %v4709 = vpack.c.b16 %v4517, %v4509
          %v4710 = vpack.c.b16 %v4518, %v4510
          %v4711 = vpack.c.b16 %v4519, %v4511
          %v4712 = vpack.c.b16 %v4520, %v4512
          %v4713 = vpack.c.b16 %v4521, %v4513
          %v4714 = vpack.c.b16 %v4522, %v4514
          %v4715 = vpack.c.b16 %v4523, %v4515
          %v4716 = vpack.c.b16 %v4524, %v4516
          %v4717 = vpack.c.b16 %v4533, %v4525
          %v4718 = vpack.c.b16 %v4534, %v4526
          %v4719 = vpack.c.b16 %v4535, %v4527
          %v4720 = vpack.c.b16 %v4536, %v4528
          %v4721 = vpack.c.b16 %v4537, %v4529
          %v4722 = vpack.c.b16 %v4538, %v4530
          %v4723 = vpack.c.b16 %v4539, %v4531
          %v4724 = vpack.c.b16 %v4540, %v4532
          %v4725 = vpack.c.b16 %v4549, %v4541
          %v4726 = vpack.c.b16 %v4550, %v4542
          %v4727 = vpack.c.b16 %v4551, %v4543
          %v4728 = vpack.c.b16 %v4552, %v4544
          %v4729 = vpack.c.b16 %v4553, %v4545
          %v4730 = vpack.c.b16 %v4554, %v4546
          %v4731 = vpack.c.b16 %v4555, %v4547
          %v4732 = vpack.c.b16 %v4556, %v4548
          %v4733 = vpack.c.b16 %v4565, %v4557
          %v4734 = vpack.c.b16 %v4566, %v4558
          %v4735 = vpack.c.b16 %v4567, %v4559
          %v4736 = vpack.c.b16 %v4568, %v4560
          %v4737 = vpack.c.b16 %v4569, %v4561
          %v4738 = vpack.c.b16 %v4570, %v4562
          %v4739 = vpack.c.b16 %v4571, %v4563
          %v4740 = vpack.c.b16 %v4572, %v4564
          %v4741 = vpack.c.b16 %v4581, %v4573
          %v4742 = vpack.c.b16 %v4582, %v4574
          %v4743 = vpack.c.b16 %v4583, %v4575
          %v4744 = vpack.c.b16 %v4584, %v4576
          %v4745 = vpack.c.b16 %v4585, %v4577
          %v4746 = vpack.c.b16 %v4586, %v4578
          %v4747 = vpack.c.b16 %v4587, %v4579
          %v4748 = vpack.c.b16 %v4588, %v4580
          %v4749 = vpack.c.b16 %v4597, %v4589
          %v4750 = vpack.c.b16 %v4598, %v4590
          %v4751 = vpack.c.b16 %v4599, %v4591
          %v4752 = vpack.c.b16 %v4600, %v4592
          %v4753 = vpack.c.b16 %v4601, %v4593
          %v4754 = vpack.c.b16 %v4602, %v4594
          %v4755 = vpack.c.b16 %v4603, %v4595
          %v4756 = vpack.c.b16 %v4604, %v4596
          %v4757 = vpack.c.b16 %v4613, %v4605
          %v4758 = vpack.c.b16 %v4614, %v4606
          %v4759 = vpack.c.b16 %v4615, %v4607
          %v4760 = vpack.c.b16 %v4616, %v4608
          %v4761 = vpack.c.b16 %v4617, %v4609
          %v4762 = vpack.c.b16 %v4618, %v4610
          %v4763 = vpack.c.b16 %v4619, %v4611
          %v4764 = vpack.c.b16 %v4620, %v4612
          %v4765 = vpack.c.b16 %v4629, %v4621
          %v4766 = vpack.c.b16 %v4630, %v4622
          %v4767 = vpack.c.b16 %v4631, %v4623
          %v4768 = vpack.c.b16 %v4632, %v4624
          %v4769 = vpack.c.b16 %v4633, %v4625
          %v4770 = vpack.c.b16 %v4634, %v4626
          %v4771 = vpack.c.b16 %v4635, %v4627
          %v4772 = vpack.c.b16 %v4636, %v4628
          %v4773 = vpack.c.b16 %v4645, %v4637
          %v4774 = vpack.c.b16 %v4646, %v4638
          %v4775 = vpack.c.b16 %v4647, %v4639
          %v4776 = vpack.c.b16 %v4648, %v4640
          %v4777 = vpack.c.b16 %v4649, %v4641
          %v4778 = vpack.c.b16 %v4650, %v4642
          %v4779 = vpack.c.b16 %v4651, %v4643
          %v4780 = vpack.c.b16 %v4652, %v4644
          %4909 = vmatprep.subr.bf16.mxu0 0
          %4910 = vmatpush1.bf16.msra.mxu0 %v4198
          %4911 = vmatprep.subr.bf16.mxu0 0
          %4912 = vmatpush1.bf16.msra.mxu0 %v4199
          %4913 = vmatprep.subr.bf16.mxu0 0
          %4914 = vmatpush1.bf16.msra.mxu0 %v4200
          %4915 = vmatprep.subr.bf16.mxu0 0
          %4916 = vmatpush1.bf16.msra.mxu0 %v4201
          %4917 = vmatprep.subr.bf16.mxu0 0
          %4918 = vmatpush1.bf16.msra.mxu0 %v4202
          %4919 = vmatprep.subr.bf16.mxu0 0
          %4920 = vmatpush1.bf16.msra.mxu0 %v4203
          %4921 = vmatprep.subr.bf16.mxu0 0
          %4922 = vmatpush1.bf16.msra.mxu0 %v4204
          %4923 = vmatprep.subr.bf16.mxu0 0
          %4924 = vmatpush1.bf16.msra.mxu0 %v4205
          %4925 = vmatprep.subr.bf16.mxu0 0
          %4926 = vmatpush1.bf16.msra.mxu0 %v4206
          %4927 = vmatprep.subr.bf16.mxu0 0
          %4928 = vmatpush1.bf16.msra.mxu0 %v4207
          %4929 = vmatprep.subr.bf16.mxu0 0
          %4930 = vmatpush1.bf16.msra.mxu0 %v4208
          %4931 = vmatprep.subr.bf16.mxu0 0
          %4932 = vmatpush1.bf16.msra.mxu0 %v4209
          %4933 = vmatprep.subr.bf16.mxu0 0
          %4934 = vmatpush1.bf16.msra.mxu0 %v4210
          %4935 = vmatprep.subr.bf16.mxu0 0
          %4936 = vmatpush1.bf16.msra.mxu0 %v4211
          %4937 = vmatprep.subr.bf16.mxu0 0
          %4938 = vmatpush1.bf16.msra.mxu0 %v4212
          %4939 = vmatprep.subr.bf16.mxu0 0
          %4940 = vmatpush1.bf16.msra.mxu0 %v4213
          %4941 = vmatprep.mubr.bf16.mxu0 %v4654
          %4942 = vmatmul.mubr.bf16.gmra.mrb[0].mxu0 %v4653
          %v4943 = vpop.f32.mrb[0].mxu0
          %v4944 = vadd.f32 %v4267, %v4943
          %v4945 = vpop.f32.mrb[0].mxu0
          %v4946 = vpop.f32.mrb[0].mxu0
          %v4947 = vadd.f32 %v4267, %v4946
          %v4948 = vpop.f32.mrb[0].mxu0
          %4949 = vmatprep.mubr.bf16.mxu0 %v4662
          %4950 = vmatmul.mubr.bf16.gmra.mrb[0].mxu0 %v4661
          %v4951 = vpop.f32.mrb[0].mxu0
          %v4952 = vadd.f32 %v4267, %v4951
          %v4953 = vpop.f32.mrb[0].mxu0
          %v4954 = vpop.f32.mrb[0].mxu0
          %v4955 = vadd.f32 %v4267, %v4954
          %v4956 = vpop.f32.mrb[0].mxu0
          %4957 = vmatprep.mubr.bf16.mxu0 %v4670
          %4958 = vmatmul.mubr.bf16.gmra.mrb[0].mxu0 %v4669
          %v4959 = vpop.f32.mrb[0].mxu0
          %v4960 = vadd.f32 %v4267, %v4959
          %v4961 = vpop.f32.mrb[0].mxu0
          %v4962 = vpop.f32.mrb[0].mxu0
          %v4963 = vadd.f32 %v4267, %v4962
          %v4964 = vpop.f32.mrb[0].mxu0
          %4965 = vmatprep.mubr.bf16.mxu0 %v4678
          %4966 = vmatmul.mubr.bf16.gmra.mrb[0].mxu0 %v4677
          %v4967 = vpop.f32.mrb[0].mxu0
          %v4968 = vadd.f32 %v4267, %v4967
          %v4969 = vpop.f32.mrb[0].mxu0
          %v4970 = vpop.f32.mrb[0].mxu0
          %v4971 = vadd.f32 %v4267, %v4970
          %v4972 = vpop.f32.mrb[0].mxu0
          %4973 = vmatprep.mubr.bf16.mxu0 %v4686
          %4974 = vmatmul.mubr.bf16.gmra.mrb[0].mxu0 %v4685
          %v4975 = vpop.f32.mrb[0].mxu0
          %v4976 = vadd.f32 %v4267, %v4975
          %v4977 = vpop.f32.mrb[0].mxu0
          %v4978 = vpop.f32.mrb[0].mxu0
          %v4979 = vadd.f32 %v4267, %v4978
          %v4980 = vpop.f32.mrb[0].mxu0
          %4981 = vmatprep.mubr.bf16.mxu0 %v4694
          %4982 = vmatmul.mubr.bf16.gmra.mrb[0].mxu0 %v4693
          %v4983 = vpop.f32.mrb[0].mxu0
          %v4984 = vadd.f32 %v4267, %v4983
          %v4985 = vpop.f32.mrb[0].mxu0
          %v4986 = vpop.f32.mrb[0].mxu0
          %v4987 = vadd.f32 %v4267, %v4986
          %v4988 = vpop.f32.mrb[0].mxu0
          %4989 = vmatprep.mubr.bf16.mxu0 %v4702
          %4990 = vmatmul.mubr.bf16.gmra.mrb[0].mxu0 %v4701
          %v4991 = vpop.f32.mrb[0].mxu0
          %v4992 = vadd.f32 %v4267, %v4991
          %v4993 = vpop.f32.mrb[0].mxu0
          %v4994 = vpop.f32.mrb[0].mxu0
          %v4995 = vadd.f32 %v4267, %v4994
          %v4996 = vpop.f32.mrb[0].mxu0
          %4997 = vmatprep.mubr.bf16.mxu0 %v4710
          %4998 = vmatmul.mubr.bf16.gmra.mrb[0].mxu0 %v4709
          %v4999 = vpop.f32.mrb[0].mxu0
          %v5000 = vadd.f32 %v4267, %v4999
          %v5001 = vpop.f32.mrb[0].mxu0
          %v5002 = vpop.f32.mrb[0].mxu0
          %v5003 = vadd.f32 %v4267, %v5002
          %v5004 = vpop.f32.mrb[0].mxu0
          %5005 = vmatprep.mubr.bf16.mxu0 %v4718
          %5006 = vmatmul.mubr.bf16.gmra.mrb[0].mxu0 %v4717
          %v5007 = vpop.f32.mrb[0].mxu0
          %v5008 = vadd.f32 %v4267, %v5007
          %v5009 = vpop.f32.mrb[0].mxu0
          %v5010 = vpop.f32.mrb[0].mxu0
          %v5011 = vadd.f32 %v4267, %v5010
          %v5012 = vpop.f32.mrb[0].mxu0
          %5013 = vmatprep.mubr.bf16.mxu0 %v4726
          %5014 = vmatmul.mubr.bf16.gmra.mrb[0].mxu0 %v4725
          %v5015 = vpop.f32.mrb[0].mxu0
          %v5016 = vadd.f32 %v4267, %v5015
          %v5017 = vpop.f32.mrb[0].mxu0
          %v5018 = vpop.f32.mrb[0].mxu0
          %v5019 = vadd.f32 %v4267, %v5018
          %v5020 = vpop.f32.mrb[0].mxu0
          %5021 = vmatprep.mubr.bf16.mxu0 %v4734
          %5022 = vmatmul.mubr.bf16.gmra.mrb[0].mxu0 %v4733
          %v5023 = vpop.f32.mrb[0].mxu0
          %v5024 = vadd.f32 %v4267, %v5023
          %v5025 = vpop.f32.mrb[0].mxu0
          %v5026 = vpop.f32.mrb[0].mxu0
          %v5027 = vadd.f32 %v4267, %v5026
          %v5028 = vpop.f32.mrb[0].mxu0
          %5029 = vmatprep.mubr.bf16.mxu0 %v4742
          %5030 = vmatmul.mubr.bf16.gmra.mrb[0].mxu0 %v4741
          %v5031 = vpop.f32.mrb[0].mxu0
          %v5032 = vadd.f32 %v4267, %v5031
          %v5033 = vpop.f32.mrb[0].mxu0
          %v5034 = vpop.f32.mrb[0].mxu0
          %v5035 = vadd.f32 %v4267, %v5034
          %v5036 = vpop.f32.mrb[0].mxu0
          %5037 = vmatprep.mubr.bf16.mxu0 %v4750
          %5038 = vmatmul.mubr.bf16.gmra.mrb[0].mxu0 %v4749
          %v5039 = vpop.f32.mrb[0].mxu0
          %v5040 = vadd.f32 %v4267, %v5039
          %v5041 = vpop.f32.mrb[0].mxu0
          %v5042 = vpop.f32.mrb[0].mxu0
          %v5043 = vadd.f32 %v4267, %v5042
          %v5044 = vpop.f32.mrb[0].mxu0
          %5045 = vmatprep.mubr.bf16.mxu0 %v4758
          %5046 = vmatmul.mubr.bf16.gmra.mrb[0].mxu0 %v4757
          %v5047 = vpop.f32.mrb[0].mxu0
          %v5048 = vadd.f32 %v4267, %v5047
          %v5049 = vpop.f32.mrb[0].mxu0
          %v5050 = vpop.f32.mrb[0].mxu0
          %v5051 = vadd.f32 %v4267, %v5050
          %v5052 = vpop.f32.mrb[0].mxu0
          %5053 = vmatprep.mubr.bf16.mxu0 %v4766
          %5054 = vmatmul.mubr.bf16.gmra.mrb[0].mxu0 %v4765
          %v5055 = vpop.f32.mrb[0].mxu0
          %v5056 = vadd.f32 %v4267, %v5055
          %v5057 = vpop.f32.mrb[0].mxu0
          %v5058 = vpop.f32.mrb[0].mxu0
          %v5059 = vadd.f32 %v4267, %v5058
          %v5060 = vpop.f32.mrb[0].mxu0
          %5061 = vmatprep.mubr.bf16.mxu0 %v4774
          %5062 = vmatmul.mubr.bf16.gmra.mrb[0].mxu0 %v4773
          %v5063 = vpop.f32.mrb[0].mxu0
          %v5064 = vadd.f32 %v4267, %v5063
          %v5065 = vpop.f32.mrb[0].mxu0
          %v5066 = vpop.f32.mrb[0].mxu0
          %v5067 = vadd.f32 %v4267, %v5066
          %v5068 = vpop.f32.mrb[0].mxu0
          %5069 = vdwg.mxu0
          %5070 = vmatprep.subr.bf16.mxu0 0
          %5071 = vmatpush1.bf16.msra.mxu0 %v4214
          %5072 = vmatprep.subr.bf16.mxu0 0
          %5073 = vmatpush1.bf16.msra.mxu0 %v4215
          %5074 = vmatprep.subr.bf16.mxu0 0
          %5075 = vmatpush1.bf16.msra.mxu0 %v4216
          %5076 = vmatprep.subr.bf16.mxu0 0
          %5077 = vmatpush1.bf16.msra.mxu0 %v4217
          %5078 = vmatprep.subr.bf16.mxu0 0
          %5079 = vmatpush1.bf16.msra.mxu0 %v4218
          %5080 = vmatprep.subr.bf16.mxu0 0
          %5081 = vmatpush1.bf16.msra.mxu0 %v4219
          %5082 = vmatprep.subr.bf16.mxu0 0
          %5083 = vmatpush1.bf16.msra.mxu0 %v4220
          %5084 = vmatprep.subr.bf16.mxu0 0
          %5085 = vmatpush1.bf16.msra.mxu0 %v4221
          %5086 = vmatprep.subr.bf16.mxu0 0
          %5087 = vmatpush1.bf16.msra.mxu0 %v4222
          %5088 = vmatprep.subr.bf16.mxu0 0
          %5089 = vmatpush1.bf16.msra.mxu0 %v4223
          %5090 = vmatprep.subr.bf16.mxu0 0
          %5091 = vmatpush1.bf16.msra.mxu0 %v4224
          %5092 = vmatprep.subr.bf16.mxu0 0
          %5093 = vmatpush1.bf16.msra.mxu0 %v4225
          %5094 = vmatprep.subr.bf16.mxu0 0
          %5095 = vmatpush1.bf16.msra.mxu0 %v4226
          %5096 = vmatprep.subr.bf16.mxu0 0
          %5097 = vmatpush1.bf16.msra.mxu0 %v4227
          %5098 = vmatprep.subr.bf16.mxu0 0
          %5099 = vmatpush1.bf16.msra.mxu0 %v4228
          %5100 = vmatprep.subr.bf16.mxu0 0
          %5101 = vmatpush1.bf16.msra.mxu0 %v4229
          %5102 = vmatprep.mubr.bf16.mxu0 %v4656
          %5103 = vmatmul.mubr.bf16.gmra.mrb[0].mxu0 %v4655
          %v5104 = vpop.f32.mrb[0].mxu0
          %v5105 = vadd.f32 %v4944, %v5104
          %v5106 = vpop.f32.mrb[0].mxu0
          %v5107 = vpop.f32.mrb[0].mxu0
          %v5108 = vadd.f32 %v4947, %v5107
          %v5109 = vpop.f32.mrb[0].mxu0
          %5110 = vmatprep.mubr.bf16.mxu0 %v4664
          %5111 = vmatmul.mubr.bf16.gmra.mrb[0].mxu0 %v4663
          %v5112 = vpop.f32.mrb[0].mxu0
          %v5113 = vadd.f32 %v4952, %v5112
          %v5114 = vpop.f32.mrb[0].mxu0
          %v5115 = vpop.f32.mrb[0].mxu0
          %v5116 = vadd.f32 %v4955, %v5115
          %v5117 = vpop.f32.mrb[0].mxu0
          %5118 = vmatprep.mubr.bf16.mxu0 %v4672
          %5119 = vmatmul.mubr.bf16.gmra.mrb[0].mxu0 %v4671
          %v5120 = vpop.f32.mrb[0].mxu0
          %v5121 = vadd.f32 %v4960, %v5120
          %v5122 = vpop.f32.mrb[0].mxu0
          %v5123 = vpop.f32.mrb[0].mxu0
          %v5124 = vadd.f32 %v4963, %v5123
          %v5125 = vpop.f32.mrb[0].mxu0
          %5126 = vmatprep.mubr.bf16.mxu0 %v4680
          %5127 = vmatmul.mubr.bf16.gmra.mrb[0].mxu0 %v4679
          %v5128 = vpop.f32.mrb[0].mxu0
          %v5129 = vadd.f32 %v4968, %v5128
          %v5130 = vpop.f32.mrb[0].mxu0
          %v5131 = vpop.f32.mrb[0].mxu0
          %v5132 = vadd.f32 %v4971, %v5131
          %v5133 = vpop.f32.mrb[0].mxu0
          %5134 = vmatprep.mubr.bf16.mxu0 %v4688
          %5135 = vmatmul.mubr.bf16.gmra.mrb[0].mxu0 %v4687
          %v5136 = vpop.f32.mrb[0].mxu0
          %v5137 = vadd.f32 %v4976, %v5136
          %v5138 = vpop.f32.mrb[0].mxu0
          %v5139 = vpop.f32.mrb[0].mxu0
          %v5140 = vadd.f32 %v4979, %v5139
          %v5141 = vpop.f32.mrb[0].mxu0
          %5142 = vmatprep.mubr.bf16.mxu0 %v4696
          %5143 = vmatmul.mubr.bf16.gmra.mrb[0].mxu0 %v4695
          %v5144 = vpop.f32.mrb[0].mxu0
          %v5145 = vadd.f32 %v4984, %v5144
          %v5146 = vpop.f32.mrb[0].mxu0
          %v5147 = vpop.f32.mrb[0].mxu0
          %v5148 = vadd.f32 %v4987, %v5147
          %v5149 = vpop.f32.mrb[0].mxu0
          %5150 = vmatprep.mubr.bf16.mxu0 %v4704
          %5151 = vmatmul.mubr.bf16.gmra.mrb[0].mxu0 %v4703
          %v5152 = vpop.f32.mrb[0].mxu0
          %v5153 = vadd.f32 %v4992, %v5152
          %v5154 = vpop.f32.mrb[0].mxu0
          %v5155 = vpop.f32.mrb[0].mxu0
          %v5156 = vadd.f32 %v4995, %v5155
          %v5157 = vpop.f32.mrb[0].mxu0
          %5158 = vmatprep.mubr.bf16.mxu0 %v4712
          %5159 = vmatmul.mubr.bf16.gmra.mrb[0].mxu0 %v4711
          %v5160 = vpop.f32.mrb[0].mxu0
          %v5161 = vadd.f32 %v5000, %v5160
          %v5162 = vpop.f32.mrb[0].mxu0
          %v5163 = vpop.f32.mrb[0].mxu0
          %v5164 = vadd.f32 %v5003, %v5163
          %v5165 = vpop.f32.mrb[0].mxu0
          %5166 = vmatprep.mubr.bf16.mxu0 %v4720
          %5167 = vmatmul.mubr.bf16.gmra.mrb[0].mxu0 %v4719
          %v5168 = vpop.f32.mrb[0].mxu0
          %v5169 = vadd.f32 %v5008, %v5168
          %v5170 = vpop.f32.mrb[0].mxu0
          %v5171 = vpop.f32.mrb[0].mxu0
          %v5172 = vadd.f32 %v5011, %v5171
          %v5173 = vpop.f32.mrb[0].mxu0
          %5174 = vmatprep.mubr.bf16.mxu0 %v4728
          %5175 = vmatmul.mubr.bf16.gmra.mrb[0].mxu0 %v4727
          %v5176 = vpop.f32.mrb[0].mxu0
          %v5177 = vadd.f32 %v5016, %v5176
          %v5178 = vpop.f32.mrb[0].mxu0
          %v5179 = vpop.f32.mrb[0].mxu0
          %v5180 = vadd.f32 %v5019, %v5179
          %v5181 = vpop.f32.mrb[0].mxu0
          %5182 = vmatprep.mubr.bf16.mxu0 %v4736
          %5183 = vmatmul.mubr.bf16.gmra.mrb[0].mxu0 %v4735
          %v5184 = vpop.f32.mrb[0].mxu0
          %v5185 = vadd.f32 %v5024, %v5184
          %v5186 = vpop.f32.mrb[0].mxu0
          %v5187 = vpop.f32.mrb[0].mxu0
          %v5188 = vadd.f32 %v5027, %v5187
          %v5189 = vpop.f32.mrb[0].mxu0
          %5190 = vmatprep.mubr.bf16.mxu0 %v4744
          %5191 = vmatmul.mubr.bf16.gmra.mrb[0].mxu0 %v4743
          %v5192 = vpop.f32.mrb[0].mxu0
          %v5193 = vadd.f32 %v5032, %v5192
          %v5194 = vpop.f32.mrb[0].mxu0
          %v5195 = vpop.f32.mrb[0].mxu0
          %v5196 = vadd.f32 %v5035, %v5195
          %v5197 = vpop.f32.mrb[0].mxu0
          %5198 = vmatprep.mubr.bf16.mxu0 %v4752
          %5199 = vmatmul.mubr.bf16.gmra.mrb[0].mxu0 %v4751
          %v5200 = vpop.f32.mrb[0].mxu0
          %v5201 = vadd.f32 %v5040, %v5200
          %v5202 = vpop.f32.mrb[0].mxu0
          %v5203 = vpop.f32.mrb[0].mxu0
          %v5204 = vadd.f32 %v5043, %v5203
          %v5205 = vpop.f32.mrb[0].mxu0
          %5206 = vmatprep.mubr.bf16.mxu0 %v4760
          %5207 = vmatmul.mubr.bf16.gmra.mrb[0].mxu0 %v4759
          %v5208 = vpop.f32.mrb[0].mxu0
          %v5209 = vadd.f32 %v5048, %v5208
          %v5210 = vpop.f32.mrb[0].mxu0
          %v5211 = vpop.f32.mrb[0].mxu0
          %v5212 = vadd.f32 %v5051, %v5211
          %v5213 = vpop.f32.mrb[0].mxu0
          %5214 = vmatprep.mubr.bf16.mxu0 %v4768
          %5215 = vmatmul.mubr.bf16.gmra.mrb[0].mxu0 %v4767
          %v5216 = vpop.f32.mrb[0].mxu0
          %v5217 = vadd.f32 %v5056, %v5216
          %v5218 = vpop.f32.mrb[0].mxu0
          %v5219 = vpop.f32.mrb[0].mxu0
          %v5220 = vadd.f32 %v5059, %v5219
          %v5221 = vpop.f32.mrb[0].mxu0
          %5222 = vmatprep.mubr.bf16.mxu0 %v4776
          %5223 = vmatmul.mubr.bf16.gmra.mrb[0].mxu0 %v4775
          %v5224 = vpop.f32.mrb[0].mxu0
          %v5225 = vadd.f32 %v5064, %v5224
          %v5226 = vpop.f32.mrb[0].mxu0
          %v5227 = vpop.f32.mrb[0].mxu0
          %v5228 = vadd.f32 %v5067, %v5227
          %v5229 = vpop.f32.mrb[0].mxu0
          %5230 = vdwg.mxu0
          %5231 = vmatprep.subr.bf16.mxu0 0
          %5232 = vmatpush1.bf16.msra.mxu0 %v4230
          %5233 = vmatprep.subr.bf16.mxu0 0
          %5234 = vmatpush1.bf16.msra.mxu0 %v4231
          %5235 = vmatprep.subr.bf16.mxu0 0
          %5236 = vmatpush1.bf16.msra.mxu0 %v4232
          %5237 = vmatprep.subr.bf16.mxu0 0
          %5238 = vmatpush1.bf16.msra.mxu0 %v4233
          %5239 = vmatprep.subr.bf16.mxu0 0
          %5240 = vmatpush1.bf16.msra.mxu0 %v4234
          %5241 = vmatprep.subr.bf16.mxu0 0
          %5242 = vmatpush1.bf16.msra.mxu0 %v4235
          %5243 = vmatprep.subr.bf16.mxu0 0
          %5244 = vmatpush1.bf16.msra.mxu0 %v4236
          %5245 = vmatprep.subr.bf16.mxu0 0
          %5246 = vmatpush1.bf16.msra.mxu0 %v4237
          %5247 = vmatprep.subr.bf16.mxu0 0
          %5248 = vmatpush1.bf16.msra.mxu0 %v4238
          %5249 = vmatprep.subr.bf16.mxu0 0
          %5250 = vmatpush1.bf16.msra.mxu0 %v4239
          %5251 = vmatprep.subr.bf16.mxu0 0
          %5252 = vmatpush1.bf16.msra.mxu0 %v4240
          %5253 = vmatprep.subr.bf16.mxu0 0
          %5254 = vmatpush1.bf16.msra.mxu0 %v4241
          %5255 = vmatprep.subr.bf16.mxu0 0
          %5256 = vmatpush1.bf16.msra.mxu0 %v4242
          %5257 = vmatprep.subr.bf16.mxu0 0
          %5258 = vmatpush1.bf16.msra.mxu0 %v4243
          %5259 = vmatprep.subr.bf16.mxu0 0
          %5260 = vmatpush1.bf16.msra.mxu0 %v4244
          %5261 = vmatprep.subr.bf16.mxu0 0
          %5262 = vmatpush1.bf16.msra.mxu0 %v4245
          %5263 = vmatprep.mubr.bf16.mxu0 %v4658
          %5264 = vmatmul.mubr.bf16.gmra.mrb[0].mxu0 %v4657
          %v5265 = vpop.f32.mrb[0].mxu0
          %v5266 = vadd.f32 %v5105, %v5265
          %v5267 = vpop.f32.mrb[0].mxu0
          %v5268 = vpop.f32.mrb[0].mxu0
          %v5269 = vadd.f32 %v5108, %v5268
          %v5270 = vpop.f32.mrb[0].mxu0
          %5271 = vmatprep.mubr.bf16.mxu0 %v4666
          %5272 = vmatmul.mubr.bf16.gmra.mrb[0].mxu0 %v4665
          %v5273 = vpop.f32.mrb[0].mxu0
          %v5274 = vadd.f32 %v5113, %v5273
          %v5275 = vpop.f32.mrb[0].mxu0
          %v5276 = vpop.f32.mrb[0].mxu0
          %v5277 = vadd.f32 %v5116, %v5276
          %v5278 = vpop.f32.mrb[0].mxu0
          %5279 = vmatprep.mubr.bf16.mxu0 %v4674
          %5280 = vmatmul.mubr.bf16.gmra.mrb[0].mxu0 %v4673
          %v5281 = vpop.f32.mrb[0].mxu0
          %v5282 = vadd.f32 %v5121, %v5281
          %v5283 = vpop.f32.mrb[0].mxu0
          %v5284 = vpop.f32.mrb[0].mxu0
          %v5285 = vadd.f32 %v5124, %v5284
          %v5286 = vpop.f32.mrb[0].mxu0
          %5287 = vmatprep.mubr.bf16.mxu0 %v4682
          %5288 = vmatmul.mubr.bf16.gmra.mrb[0].mxu0 %v4681
          %v5289 = vpop.f32.mrb[0].mxu0
          %v5290 = vadd.f32 %v5129, %v5289
          %v5291 = vpop.f32.mrb[0].mxu0
          %v5292 = vpop.f32.mrb[0].mxu0
          %v5293 = vadd.f32 %v5132, %v5292
          %v5294 = vpop.f32.mrb[0].mxu0
          %5295 = vmatprep.mubr.bf16.mxu0 %v4690
          %5296 = vmatmul.mubr.bf16.gmra.mrb[0].mxu0 %v4689
          %v5297 = vpop.f32.mrb[0].mxu0
          %v5298 = vadd.f32 %v5137, %v5297
          %v5299 = vpop.f32.mrb[0].mxu0
          %v5300 = vpop.f32.mrb[0].mxu0
          %v5301 = vadd.f32 %v5140, %v5300
          %v5302 = vpop.f32.mrb[0].mxu0
          %5303 = vmatprep.mubr.bf16.mxu0 %v4698
          %5304 = vmatmul.mubr.bf16.gmra.mrb[0].mxu0 %v4697
          %v5305 = vpop.f32.mrb[0].mxu0
          %v5306 = vadd.f32 %v5145, %v5305
          %v5307 = vpop.f32.mrb[0].mxu0
          %v5308 = vpop.f32.mrb[0].mxu0
          %v5309 = vadd.f32 %v5148, %v5308
          %v5310 = vpop.f32.mrb[0].mxu0
          %5311 = vmatprep.mubr.bf16.mxu0 %v4706
          %5312 = vmatmul.mubr.bf16.gmra.mrb[0].mxu0 %v4705
          %v5313 = vpop.f32.mrb[0].mxu0
          %v5314 = vadd.f32 %v5153, %v5313
          %v5315 = vpop.f32.mrb[0].mxu0
          %v5316 = vpop.f32.mrb[0].mxu0
          %v5317 = vadd.f32 %v5156, %v5316
          %v5318 = vpop.f32.mrb[0].mxu0
          %5319 = vmatprep.mubr.bf16.mxu0 %v4714
          %5320 = vmatmul.mubr.bf16.gmra.mrb[0].mxu0 %v4713
          %v5321 = vpop.f32.mrb[0].mxu0
          %v5322 = vadd.f32 %v5161, %v5321
          %v5323 = vpop.f32.mrb[0].mxu0
          %v5324 = vpop.f32.mrb[0].mxu0
          %v5325 = vadd.f32 %v5164, %v5324
          %v5326 = vpop.f32.mrb[0].mxu0
          %5327 = vmatprep.mubr.bf16.mxu0 %v4722
          %5328 = vmatmul.mubr.bf16.gmra.mrb[0].mxu0 %v4721
          %v5329 = vpop.f32.mrb[0].mxu0
          %v5330 = vadd.f32 %v5169, %v5329
          %v5331 = vpop.f32.mrb[0].mxu0
          %v5332 = vpop.f32.mrb[0].mxu0
          %v5333 = vadd.f32 %v5172, %v5332
          %v5334 = vpop.f32.mrb[0].mxu0
          %5335 = vmatprep.mubr.bf16.mxu0 %v4730
          %5336 = vmatmul.mubr.bf16.gmra.mrb[0].mxu0 %v4729
          %v5337 = vpop.f32.mrb[0].mxu0
          %v5338 = vadd.f32 %v5177, %v5337
          %v5339 = vpop.f32.mrb[0].mxu0
          %v5340 = vpop.f32.mrb[0].mxu0
          %v5341 = vadd.f32 %v5180, %v5340
          %v5342 = vpop.f32.mrb[0].mxu0
          %5343 = vmatprep.mubr.bf16.mxu0 %v4738
          %5344 = vmatmul.mubr.bf16.gmra.mrb[0].mxu0 %v4737
          %v5345 = vpop.f32.mrb[0].mxu0
          %v5346 = vadd.f32 %v5185, %v5345
          %v5347 = vpop.f32.mrb[0].mxu0
          %v5348 = vpop.f32.mrb[0].mxu0
          %v5349 = vadd.f32 %v5188, %v5348
          %v5350 = vpop.f32.mrb[0].mxu0
          %5351 = vmatprep.mubr.bf16.mxu0 %v4746
          %5352 = vmatmul.mubr.bf16.gmra.mrb[0].mxu0 %v4745
          %v5353 = vpop.f32.mrb[0].mxu0
          %v5354 = vadd.f32 %v5193, %v5353
          %v5355 = vpop.f32.mrb[0].mxu0
          %v5356 = vpop.f32.mrb[0].mxu0
          %v5357 = vadd.f32 %v5196, %v5356
          %v5358 = vpop.f32.mrb[0].mxu0
          %5359 = vmatprep.mubr.bf16.mxu0 %v4754
          %5360 = vmatmul.mubr.bf16.gmra.mrb[0].mxu0 %v4753
          %v5361 = vpop.f32.mrb[0].mxu0
          %v5362 = vadd.f32 %v5201, %v5361
          %v5363 = vpop.f32.mrb[0].mxu0
          %v5364 = vpop.f32.mrb[0].mxu0
          %v5365 = vadd.f32 %v5204, %v5364
          %v5366 = vpop.f32.mrb[0].mxu0
          %5367 = vmatprep.mubr.bf16.mxu0 %v4762
          %5368 = vmatmul.mubr.bf16.gmra.mrb[0].mxu0 %v4761
          %v5369 = vpop.f32.mrb[0].mxu0
          %v5370 = vadd.f32 %v5209, %v5369
          %v5371 = vpop.f32.mrb[0].mxu0
          %v5372 = vpop.f32.mrb[0].mxu0
          %v5373 = vadd.f32 %v5212, %v5372
          %v5374 = vpop.f32.mrb[0].mxu0
          %5375 = vmatprep.mubr.bf16.mxu0 %v4770
          %5376 = vmatmul.mubr.bf16.gmra.mrb[0].mxu0 %v4769
          %v5377 = vpop.f32.mrb[0].mxu0
          %v5378 = vadd.f32 %v5217, %v5377
          %v5379 = vpop.f32.mrb[0].mxu0
          %v5380 = vpop.f32.mrb[0].mxu0
          %v5381 = vadd.f32 %v5220, %v5380
          %v5382 = vpop.f32.mrb[0].mxu0
          %5383 = vmatprep.mubr.bf16.mxu0 %v4778
          %5384 = vmatmul.mubr.bf16.gmra.mrb[0].mxu0 %v4777
          %v5385 = vpop.f32.mrb[0].mxu0
          %v5386 = vadd.f32 %v5225, %v5385
          %v5387 = vpop.f32.mrb[0].mxu0
          %v5388 = vpop.f32.mrb[0].mxu0
          %v5389 = vadd.f32 %v5228, %v5388
          %v5390 = vpop.f32.mrb[0].mxu0
          %5391 = vdwg.mxu0
          %5392 = vmatprep.subr.bf16.mxu0 0
          %5393 = vmatpush1.bf16.msra.mxu0 %v4246
          %5394 = vmatprep.subr.bf16.mxu0 0
          %5395 = vmatpush1.bf16.msra.mxu0 %v4247
          %5396 = vmatprep.subr.bf16.mxu0 0
          %5397 = vmatpush1.bf16.msra.mxu0 %v4248
          %5398 = vmatprep.subr.bf16.mxu0 0
          %5399 = vmatpush1.bf16.msra.mxu0 %v4249
          %5400 = vmatprep.subr.bf16.mxu0 0
          %5401 = vmatpush1.bf16.msra.mxu0 %v4250
          %5402 = vmatprep.subr.bf16.mxu0 0
          %5403 = vmatpush1.bf16.msra.mxu0 %v4251
          %5404 = vmatprep.subr.bf16.mxu0 0
          %5405 = vmatpush1.bf16.msra.mxu0 %v4252
          %5406 = vmatprep.subr.bf16.mxu0 0
          %5407 = vmatpush1.bf16.msra.mxu0 %v4253
          %5408 = vmatprep.subr.bf16.mxu0 0
          %5409 = vmatpush1.bf16.msra.mxu0 %v4254
          %5410 = vmatprep.subr.bf16.mxu0 0
          %5411 = vmatpush1.bf16.msra.mxu0 %v4255
          %5412 = vmatprep.subr.bf16.mxu0 0
          %5413 = vmatpush1.bf16.msra.mxu0 %v4256
          %5414 = vmatprep.subr.bf16.mxu0 0
          %5415 = vmatpush1.bf16.msra.mxu0 %v4257
          %5416 = vmatprep.subr.bf16.mxu0 0
          %5417 = vmatpush1.bf16.msra.mxu0 %v4258
          %5418 = vmatprep.subr.bf16.mxu0 0
          %5419 = vmatpush1.bf16.msra.mxu0 %v4259
          %5420 = vmatprep.subr.bf16.mxu0 0
          %5421 = vmatpush1.bf16.msra.mxu0 %v4260
          %5422 = vmatprep.subr.bf16.mxu0 0
          %5423 = vmatpush1.bf16.msra.mxu0 %v4261
          %5424 = vmatprep.mubr.bf16.mxu0 %v4660
          %5425 = vmatmul.mubr.bf16.gmra.mrb[0].mxu0 %v4659
          %v5426 = vpop.f32.mrb[0].mxu0
          %v5427 = vadd.f32 %v5266, %v5426
          %v5428 = vpop.f32.mrb[0].mxu0
          %v5429 = vpop.f32.mrb[0].mxu0
          %v5430 = vadd.f32 %v5269, %v5429
          %v5431 = vpop.f32.mrb[0].mxu0
          %5432 = vmatprep.mubr.bf16.mxu0 %v4668
          %5433 = vmatmul.mubr.bf16.gmra.mrb[0].mxu0 %v4667
          %v5434 = vpop.f32.mrb[0].mxu0
          %v5435 = vadd.f32 %v5274, %v5434
          %v5436 = vpop.f32.mrb[0].mxu0
          %v5437 = vpop.f32.mrb[0].mxu0
          %v5438 = vadd.f32 %v5277, %v5437
          %v5439 = vpop.f32.mrb[0].mxu0
          %5440 = vmatprep.mubr.bf16.mxu0 %v4676
          %5441 = vmatmul.mubr.bf16.gmra.mrb[0].mxu0 %v4675
          %v5442 = vpop.f32.mrb[0].mxu0
          %v5443 = vadd.f32 %v5282, %v5442
          %v5444 = vpop.f32.mrb[0].mxu0
          %v5445 = vpop.f32.mrb[0].mxu0
          %v5446 = vadd.f32 %v5285, %v5445
          %v5447 = vpop.f32.mrb[0].mxu0
          %5448 = vmatprep.mubr.bf16.mxu0 %v4684
          %5449 = vmatmul.mubr.bf16.gmra.mrb[0].mxu0 %v4683
          %v5450 = vpop.f32.mrb[0].mxu0
          %v5451 = vadd.f32 %v5290, %v5450
          %v5452 = vpop.f32.mrb[0].mxu0
          %v5453 = vpop.f32.mrb[0].mxu0
          %v5454 = vadd.f32 %v5293, %v5453
          %v5455 = vpop.f32.mrb[0].mxu0
          %5456 = vmatprep.mubr.bf16.mxu0 %v4692
          %5457 = vmatmul.mubr.bf16.gmra.mrb[0].mxu0 %v4691
          %v5458 = vpop.f32.mrb[0].mxu0
          %v5459 = vadd.f32 %v5298, %v5458
          %v5460 = vpop.f32.mrb[0].mxu0
          %v5461 = vpop.f32.mrb[0].mxu0
          %v5462 = vadd.f32 %v5301, %v5461
          %v5463 = vpop.f32.mrb[0].mxu0
          %5464 = vmatprep.mubr.bf16.mxu0 %v4700
          %5465 = vmatmul.mubr.bf16.gmra.mrb[0].mxu0 %v4699
          %v5466 = vpop.f32.mrb[0].mxu0
          %v5467 = vadd.f32 %v5306, %v5466
          %v5468 = vpop.f32.mrb[0].mxu0
          %v5469 = vpop.f32.mrb[0].mxu0
          %v5470 = vadd.f32 %v5309, %v5469
          %v5471 = vpop.f32.mrb[0].mxu0
          %5472 = vmatprep.mubr.bf16.mxu0 %v4708
          %5473 = vmatmul.mubr.bf16.gmra.mrb[0].mxu0 %v4707
          %v5474 = vpop.f32.mrb[0].mxu0
          %v5475 = vadd.f32 %v5314, %v5474
          %v5476 = vpop.f32.mrb[0].mxu0
          %v5477 = vpop.f32.mrb[0].mxu0
          %v5478 = vadd.f32 %v5317, %v5477
          %v5479 = vpop.f32.mrb[0].mxu0
          %5480 = vmatprep.mubr.bf16.mxu0 %v4716
          %5481 = vmatmul.mubr.bf16.gmra.mrb[0].mxu0 %v4715
          %v5482 = vpop.f32.mrb[0].mxu0
          %v5483 = vadd.f32 %v5322, %v5482
          %v5484 = vpop.f32.mrb[0].mxu0
          %v5485 = vpop.f32.mrb[0].mxu0
          %v5486 = vadd.f32 %v5325, %v5485
          %v5487 = vpop.f32.mrb[0].mxu0
          %5488 = vmatprep.mubr.bf16.mxu0 %v4724
          %5489 = vmatmul.mubr.bf16.gmra.mrb[0].mxu0 %v4723
          %v5490 = vpop.f32.mrb[0].mxu0
          %v5491 = vadd.f32 %v5330, %v5490
          %v5492 = vpop.f32.mrb[0].mxu0
          %v5493 = vpop.f32.mrb[0].mxu0
          %v5494 = vadd.f32 %v5333, %v5493
          %v5495 = vpop.f32.mrb[0].mxu0
          %5496 = vmatprep.mubr.bf16.mxu0 %v4732
          %5497 = vmatmul.mubr.bf16.gmra.mrb[0].mxu0 %v4731
          %v5498 = vpop.f32.mrb[0].mxu0
          %v5499 = vadd.f32 %v5338, %v5498
          %v5500 = vpop.f32.mrb[0].mxu0
          %v5501 = vpop.f32.mrb[0].mxu0
          %v5502 = vadd.f32 %v5341, %v5501
          %v5503 = vpop.f32.mrb[0].mxu0
          %5504 = vmatprep.mubr.bf16.mxu0 %v4740
          %5505 = vmatmul.mubr.bf16.gmra.mrb[0].mxu0 %v4739
          %v5506 = vpop.f32.mrb[0].mxu0
          %v5507 = vadd.f32 %v5346, %v5506
          %v5508 = vpop.f32.mrb[0].mxu0
          %v5509 = vpop.f32.mrb[0].mxu0
          %v5510 = vadd.f32 %v5349, %v5509
          %v5511 = vpop.f32.mrb[0].mxu0
          %5512 = vmatprep.mubr.bf16.mxu0 %v4748
          %5513 = vmatmul.mubr.bf16.gmra.mrb[0].mxu0 %v4747
          %v5514 = vpop.f32.mrb[0].mxu0
          %v5515 = vadd.f32 %v5354, %v5514
          %v5516 = vpop.f32.mrb[0].mxu0
          %v5517 = vpop.f32.mrb[0].mxu0
          %v5518 = vadd.f32 %v5357, %v5517
          %v5519 = vpop.f32.mrb[0].mxu0
          %5520 = vmatprep.mubr.bf16.mxu0 %v4756
          %5521 = vmatmul.mubr.bf16.gmra.mrb[0].mxu0 %v4755
          %v5522 = vpop.f32.mrb[0].mxu0
          %v5523 = vadd.f32 %v5362, %v5522
          %v5524 = vpop.f32.mrb[0].mxu0
          %v5525 = vpop.f32.mrb[0].mxu0
          %v5526 = vadd.f32 %v5365, %v5525
          %v5527 = vpop.f32.mrb[0].mxu0
          %5528 = vmatprep.mubr.bf16.mxu0 %v4764
          %5529 = vmatmul.mubr.bf16.gmra.mrb[0].mxu0 %v4763
          %v5530 = vpop.f32.mrb[0].mxu0
          %v5531 = vadd.f32 %v5370, %v5530
          %v5532 = vpop.f32.mrb[0].mxu0
          %v5533 = vpop.f32.mrb[0].mxu0
          %v5534 = vadd.f32 %v5373, %v5533
          %v5535 = vpop.f32.mrb[0].mxu0
          %5536 = vmatprep.mubr.bf16.mxu0 %v4772
          %5537 = vmatmul.mubr.bf16.gmra.mrb[0].mxu0 %v4771
          %v5538 = vpop.f32.mrb[0].mxu0
          %v5539 = vadd.f32 %v5378, %v5538
          %v5540 = vpop.f32.mrb[0].mxu0
          %v5541 = vpop.f32.mrb[0].mxu0
          %v5542 = vadd.f32 %v5381, %v5541
          %v5543 = vpop.f32.mrb[0].mxu0
          %5544 = vmatprep.mubr.bf16.mxu0 %v4780
          %5545 = vmatmul.mubr.bf16.gmra.mrb[0].mxu0 %v4779
          %v5546 = vpop.f32.mrb[0].mxu0
          %v5547 = vadd.f32 %v5386, %v5546
          %v5548 = vpop.f32.mrb[0].mxu0
          %v5549 = vpop.f32.mrb[0].mxu0
          %v5550 = vadd.f32 %v5389, %v5549
          %v5551 = vpop.f32.mrb[0].mxu0
          %5552 = vdwg.mxu0
          %vm5553 = vcmp.gt.f32.partialorder %v5427, 0.0
          %vm5554 = vcmp.gt.f32.partialorder %v5430, 0.0
          %vm5555 = vcmp.gt.f32.partialorder %v5435, 0.0
          %vm5556 = vcmp.gt.f32.partialorder %v5438, 0.0
          %vm5557 = vcmp.gt.f32.partialorder %v5443, 0.0
          %vm5558 = vcmp.gt.f32.partialorder %v5446, 0.0
          %vm5559 = vcmp.gt.f32.partialorder %v5451, 0.0
          %vm5560 = vcmp.gt.f32.partialorder %v5454, 0.0
          %vm5561 = vcmp.gt.f32.partialorder %v5459, 0.0
          %vm5562 = vcmp.gt.f32.partialorder %v5462, 0.0
          %vm5563 = vcmp.gt.f32.partialorder %v5467, 0.0
          %vm5564 = vcmp.gt.f32.partialorder %v5470, 0.0
          %vm5565 = vcmp.gt.f32.partialorder %v5475, 0.0
          %vm5566 = vcmp.gt.f32.partialorder %v5478, 0.0
          %vm5567 = vcmp.gt.f32.partialorder %v5483, 0.0
          %vm5568 = vcmp.gt.f32.partialorder %v5486, 0.0
          %vm5569 = vcmp.gt.f32.partialorder %v5491, 0.0
          %vm5570 = vcmp.gt.f32.partialorder %v5494, 0.0
          %vm5571 = vcmp.gt.f32.partialorder %v5499, 0.0
          %vm5572 = vcmp.gt.f32.partialorder %v5502, 0.0
          %vm5573 = vcmp.gt.f32.partialorder %v5507, 0.0
          %vm5574 = vcmp.gt.f32.partialorder %v5510, 0.0
          %vm5575 = vcmp.gt.f32.partialorder %v5515, 0.0
          %vm5576 = vcmp.gt.f32.partialorder %v5518, 0.0
          %vm5577 = vcmp.gt.f32.partialorder %v5523, 0.0
          %vm5578 = vcmp.gt.f32.partialorder %v5526, 0.0
          %vm5579 = vcmp.gt.f32.partialorder %v5531, 0.0
          %vm5580 = vcmp.gt.f32.partialorder %v5534, 0.0
          %vm5581 = vcmp.gt.f32.partialorder %v5539, 0.0
          %vm5582 = vcmp.gt.f32.partialorder %v5542, 0.0
          %vm5583 = vcmp.gt.f32.partialorder %v5547, 0.0
          %vm5584 = vcmp.gt.f32.partialorder %v5550, 0.0
          %v5585 = vmul.f32 %v5427, 0.01
          %v5586 = vmul.f32 %v5430, 0.01
          %v5587 = vmul.f32 %v5435, 0.01
          %v5588 = vmul.f32 %v5438, 0.01
          %v5589 = vmul.f32 %v5443, 0.01
          %v5590 = vmul.f32 %v5446, 0.01
          %v5591 = vmul.f32 %v5451, 0.01
          %v5592 = vmul.f32 %v5454, 0.01
          %v5593 = vmul.f32 %v5459, 0.01
          %v5594 = vmul.f32 %v5462, 0.01
          %v5595 = vmul.f32 %v5467, 0.01
          %v5596 = vmul.f32 %v5470, 0.01
          %v5597 = vmul.f32 %v5475, 0.01
          %v5598 = vmul.f32 %v5478, 0.01
          %v5599 = vmul.f32 %v5483, 0.01
          %v5600 = vmul.f32 %v5486, 0.01
          %v5601 = vmul.f32 %v5491, 0.01
          %v5602 = vmul.f32 %v5494, 0.01
          %v5603 = vmul.f32 %v5499, 0.01
          %v5604 = vmul.f32 %v5502, 0.01
          %v5605 = vmul.f32 %v5507, 0.01
          %v5606 = vmul.f32 %v5510, 0.01
          %v5607 = vmul.f32 %v5515, 0.01
          %v5608 = vmul.f32 %v5518, 0.01
          %v5609 = vmul.f32 %v5523, 0.01
          %v5610 = vmul.f32 %v5526, 0.01
          %v5611 = vmul.f32 %v5531, 0.01
          %v5612 = vmul.f32 %v5534, 0.01
          %v5613 = vmul.f32 %v5539, 0.01
          %v5614 = vmul.f32 %v5542, 0.01
          %v5615 = vmul.f32 %v5547, 0.01
          %v5616 = vmul.f32 %v5550, 0.01
          %v5617 = vsel %vm5553, %v5427, %v5585
          %v5618 = vsel %vm5554, %v5430, %v5586
          %v5619 = vsel %vm5555, %v5435, %v5587
          %v5620 = vsel %vm5556, %v5438, %v5588
          %v5621 = vsel %vm5557, %v5443, %v5589
          %v5622 = vsel %vm5558, %v5446, %v5590
          %v5623 = vsel %vm5559, %v5451, %v5591
          %v5624 = vsel %vm5560, %v5454, %v5592
          %v5625 = vsel %vm5561, %v5459, %v5593
          %v5626 = vsel %vm5562, %v5462, %v5594
          %v5627 = vsel %vm5563, %v5467, %v5595
          %v5628 = vsel %vm5564, %v5470, %v5596
          %v5629 = vsel %vm5565, %v5475, %v5597
          %v5630 = vsel %vm5566, %v5478, %v5598
          %v5631 = vsel %vm5567, %v5483, %v5599
          %v5632 = vsel %vm5568, %v5486, %v5600
          %v5633 = vsel %vm5569, %v5491, %v5601
          %v5634 = vsel %vm5570, %v5494, %v5602
          %v5635 = vsel %vm5571, %v5499, %v5603
          %v5636 = vsel %vm5572, %v5502, %v5604
          %v5637 = vsel %vm5573, %v5507, %v5605
          %v5638 = vsel %vm5574, %v5510, %v5606
          %v5639 = vsel %vm5575, %v5515, %v5607
          %v5640 = vsel %vm5576, %v5518, %v5608
          %v5641 = vsel %vm5577, %v5523, %v5609
          %v5642 = vsel %vm5578, %v5526, %v5610
          %v5643 = vsel %vm5579, %v5531, %v5611
          %v5644 = vsel %vm5580, %v5534, %v5612
          %v5645 = vsel %vm5581, %v5539, %v5613
          %v5646 = vsel %vm5582, %v5542, %v5614
          %v5647 = vsel %vm5583, %v5547, %v5615
          %v5648 = vsel %vm5584, %v5550, %v5616
          %v5649 = vld [vmem:[#allocation5] sm:$0xff]
          %v5650 = vld [vmem:[%s439] sm:$0xff]
          %v5651 = vld [vmem:[%s439 + $0x8] sm:$0xff]
          %5652 = vmatprep.subr.mxu0 0.0
          %5653 = vmatpush1.msra.mxu0 %v5617
          %5654 = vmatprep.subr.mxu0 0.0
          %5655 = vmatpush1.msra.mxu0 %v5618
          %5656 = vmatprep.subr.mxu0 0.0
          %5657 = vmatpush1.msra.mxu0 %v5619
          %5658 = vmatprep.subr.mxu0 0.0
          %5659 = vmatpush1.msra.mxu0 %v5620
          %5660 = vmatprep.subr.mxu0 0.0
          %5661 = vmatpush1.msra.mxu0 %v5621
          %5662 = vmatprep.subr.mxu0 0.0
          %5663 = vmatpush1.msra.mxu0 %v5622
          %5664 = vmatprep.subr.mxu0 0.0
          %5665 = vmatpush1.msra.mxu0 %v5623
          %5666 = vmatprep.subr.mxu0 0.0
          %5667 = vmatpush1.msra.mxu0 %v5624
          %5668 = vmatprep.subr.mxu0 0.0
          %5669 = vmatpush1.msra.mxu0 %v5625
          %5670 = vmatprep.subr.mxu0 0.0
          %5671 = vmatpush1.msra.mxu0 %v5626
          %5672 = vmatprep.subr.mxu0 0.0
          %5673 = vmatpush1.msra.mxu0 %v5627
          %5674 = vmatprep.subr.mxu0 0.0
          %5675 = vmatpush1.msra.mxu0 %v5628
          %5676 = vmatprep.subr.mxu0 0.0
          %5677 = vmatpush1.msra.mxu0 %v5629
          %5678 = vmatprep.subr.mxu0 0.0
          %5679 = vmatpush1.msra.mxu0 %v5630
          %5680 = vmatprep.subr.mxu0 0.0
          %5681 = vmatpush1.msra.mxu0 %v5631
          %5682 = vmatprep.subr.mxu0 0.0
          %5683 = vmatpush1.msra.mxu0 %v5632
          %5684 = vmatprep.subr.mxu0 0.0
          %5685 = vmatpush1.msra.mxu0 %v5633
          %5686 = vmatprep.subr.mxu0 0.0
          %5687 = vmatpush1.msra.mxu0 %v5634
          %5688 = vmatprep.subr.mxu0 0.0
          %5689 = vmatpush1.msra.mxu0 %v5635
          %5690 = vmatprep.subr.mxu0 0.0
          %5691 = vmatpush1.msra.mxu0 %v5636
          %5692 = vmatprep.subr.mxu0 0.0
          %5693 = vmatpush1.msra.mxu0 %v5637
          %5694 = vmatprep.subr.mxu0 0.0
          %5695 = vmatpush1.msra.mxu0 %v5638
          %5696 = vmatprep.subr.mxu0 0.0
          %5697 = vmatpush1.msra.mxu0 %v5639
          %5698 = vmatprep.subr.mxu0 0.0
          %5699 = vmatpush1.msra.mxu0 %v5640
          %5700 = vmatprep.subr.mxu0 0.0
          %5701 = vmatpush1.msra.mxu0 %v5641
          %5702 = vmatprep.subr.mxu0 0.0
          %5703 = vmatpush1.msra.mxu0 %v5642
          %5704 = vmatprep.subr.mxu0 0.0
          %5705 = vmatpush1.msra.mxu0 %v5643
          %5706 = vmatprep.subr.mxu0 0.0
          %5707 = vmatpush1.msra.mxu0 %v5644
          %5708 = vmatprep.subr.mxu0 0.0
          %5709 = vmatpush1.msra.mxu0 %v5645
          %5710 = vmatprep.subr.mxu0 0.0
          %5711 = vmatpush1.msra.mxu0 %v5646
          %5712 = vmatprep.subr.mxu0 0.0
          %5713 = vmatpush1.msra.mxu0 %v5647
          %5714 = vmatprep.subr.mxu0 0.0
          %5715 = vmatpush1.msra.mxu0 %v5648
          %5716 = vmatprep.mubr.f32.mxu0 %v5651
          %5717 = vmatmul.mubr.f32.gmra.mrb[0].mxu0 %v5650
          %v5718 = vpop.f32.mrb[0].mxu0
          %v5719 = vadd.f32 0.0, %v5718
          %v5720 = vpop.f32.mrb[0].mxu0
          %5721 = vdwg.mxu0
          %v5722 = vadd.f32 %v5649, %v5719
          %5723 = vst [vmem:[#allocation5] sm:$0xff] %v5722
        $region108: #{tpu_custom_call.1} parent=55 // pred_fallthru
          _
        %p5724 = scmp.eq.s32.totalorder %s32, 3
        %p5725 = pnand %p3085, %p5724
        %p5726 = pneg %p5725
        // Predicated region
        $region109: #{tpu_custom_call.1} parent=55 // pred_check
          _
        $region110: #{tpu_custom_call.1} parent=55 // pred_check_branch
          %5728 = sbr.rel (%p5725) target = $region112
        $region111: #{tpu_custom_call.1} parent=55 // pred_region
          %v5729 = vld [vmem:[#allocation5] sm:$0xff]
          %v5730 = vld [vmem:[#allocation18] sm:$0xff]
          %v5731 = vld [vmem:[#allocation18 + $0x8] sm:$0xff]
          %v5732 = vld [vmem:[#allocation18 + $0x10] sm:$0xff]
          %v5733 = vld [vmem:[#allocation18 + $0x18] sm:$0xff]
          %v5734 = vld [vmem:[#allocation18 + $0x20] sm:$0xff]
          %v5735 = vld [vmem:[#allocation18 + $0x28] sm:$0xff]
          %v5736 = vld [vmem:[#allocation18 + $0x30] sm:$0xff]
          %v5737 = vld [vmem:[#allocation18 + $0x38] sm:$0xff]
          %v5738 = vld [vmem:[#allocation18 + $0x40] sm:$0xff]
          %v5739 = vld [vmem:[#allocation18 + $0x48] sm:$0xff]
          %v5740 = vld [vmem:[#allocation18 + $0x50] sm:$0xff]
          %v5741 = vld [vmem:[#allocation18 + $0x58] sm:$0xff]
          %v5742 = vld [vmem:[#allocation18 + $0x60] sm:$0xff]
          %v5743 = vld [vmem:[#allocation18 + $0x68] sm:$0xff]
          %v5744 = vld [vmem:[#allocation18 + $0x70] sm:$0xff]
          %v5745 = vld [vmem:[#allocation18 + $0x78] sm:$0xff]
          %v5746 = vld [vmem:[#allocation19] sm:$0x1]
          %v5748 = vlaneseq
          %v5749 = vshrl.u32 %v5748, 7
          %v5750 = vsub.s32 0, %v5749
          %v5751 = vrot.slane %v5746, %v5750
          %5753 = vmatprep.subr.mxu0 0.0
          %5754 = vmatpush1.msra.mxu0 %v5730
          %5755 = vmatprep.subr.mxu0 0.0
          %5756 = vmatpush1.msra.mxu0 %v5731
          %5757 = vmatprep.subr.mxu0 0.0
          %5758 = vmatpush1.msra.mxu0 %v5732
          %5759 = vmatprep.subr.mxu0 0.0
          %5760 = vmatpush1.msra.mxu0 %v5733
          %5761 = vmatprep.subr.mxu0 0.0
          %5762 = vmatpush1.msra.mxu0 %v5734
          %5763 = vmatprep.subr.mxu0 0.0
          %5764 = vmatpush1.msra.mxu0 %v5735
          %5765 = vmatprep.subr.mxu0 0.0
          %5766 = vmatpush1.msra.mxu0 %v5736
          %5767 = vmatprep.subr.mxu0 0.0
          %5768 = vmatpush1.msra.mxu0 %v5737
          %5769 = vmatprep.subr.mxu0 0.0
          %5770 = vmatpush1.msra.mxu0 %v5738
          %5771 = vmatprep.subr.mxu0 0.0
          %5772 = vmatpush1.msra.mxu0 %v5739
          %5773 = vmatprep.subr.mxu0 0.0
          %5774 = vmatpush1.msra.mxu0 %v5740
          %5775 = vmatprep.subr.mxu0 0.0
          %5776 = vmatpush1.msra.mxu0 %v5741
          %5777 = vmatprep.subr.mxu0 0.0
          %5778 = vmatpush1.msra.mxu0 %v5742
          %5779 = vmatprep.subr.mxu0 0.0
          %5780 = vmatpush1.msra.mxu0 %v5743
          %5781 = vmatprep.subr.mxu0 0.0
          %5782 = vmatpush1.msra.mxu0 %v5744
          %5783 = vmatprep.subr.mxu0 0.0
          %5784 = vmatpush1.msra.mxu0 %v5745
          %5785 = vmatprep.subr.mxu0 0.0
          %5786 = vmatpush1.msra.mxu0 0.0
          %5787 = vmatprep.subr.mxu0 0.0
          %5788 = vmatpush1.msra.mxu0 0.0
          %5789 = vmatprep.subr.mxu0 0.0
          %5790 = vmatpush1.msra.mxu0 0.0
          %5791 = vmatprep.subr.mxu0 0.0
          %5792 = vmatpush1.msra.mxu0 0.0
          %5793 = vmatprep.subr.mxu0 0.0
          %5794 = vmatpush1.msra.mxu0 0.0
          %5795 = vmatprep.subr.mxu0 0.0
          %5796 = vmatpush1.msra.mxu0 0.0
          %5797 = vmatprep.subr.mxu0 0.0
          %5798 = vmatpush1.msra.mxu0 0.0
          %5799 = vmatprep.subr.mxu0 0.0
          %5800 = vmatpush1.msra.mxu0 0.0
          %5801 = vmatprep.subr.mxu0 0.0
          %5802 = vmatpush1.msra.mxu0 0.0
          %5803 = vmatprep.subr.mxu0 0.0
          %5804 = vmatpush1.msra.mxu0 0.0
          %5805 = vmatprep.subr.mxu0 0.0
          %5806 = vmatpush1.msra.mxu0 0.0
          %5807 = vmatprep.subr.mxu0 0.0
          %5808 = vmatpush1.msra.mxu0 0.0
          %5809 = vmatprep.subr.mxu0 0.0
          %5810 = vmatpush1.msra.mxu0 0.0
          %5811 = vmatprep.subr.mxu0 0.0
          %5812 = vmatpush1.msra.mxu0 0.0
          %5813 = vmatprep.subr.mxu0 0.0
          %5814 = vmatpush1.msra.mxu0 0.0
          %5815 = vmatprep.subr.mxu0 0.0
          %5816 = vmatpush1.msra.mxu0 0.0
          %5817 = vmatprep.mubr.f32.mxu0 0.0
          %5818 = vmatmul.mubr.f32.gmra.mrb[0].mxu0 %v5729
          %v5819 = vpop.f32.mrb[0].mxu0
          %v5820 = vadd.f32 %v5751, %v5819
          %v5821 = vpop.f32.mrb[0].mxu0
          %5822 = vdwg.mxu0
          %5823 = vst [vmem:[#allocation20] sm:$0xff] %v5820
        $region112: #{tpu_custom_call.1} parent=55 // pred_fallthru
          _
        // Predicated region
        $region113: #{tpu_custom_call.1} parent=55 // pred_check
          %p5824 = pneg %p251
        $region114: #{tpu_custom_call.1} parent=55 // pred_check_branch
          %5826 = sbr.rel (%p5824) target = $region116
        $region115: #{tpu_custom_call.1} parent=55 // pred_region
          %s5828 = ssub.s32 128, 128
          %5829 = vsyncadd [#allocation8], %s5828
          %s5831 = sshll.u32 [#allocation20], 4
          %s5832 = int_to_ptr.vmem [resolvable:$true] %s5831
          %5834 = dma.vmem_to_hbm [thread:$0]  %s5832, 128, %s9, [#allocation8]
        $region116: #{tpu_custom_call.1} parent=55 // pred_fallthru
          _
        // Predicated region
        $region117: #{tpu_custom_call.1} parent=55 // pred_check
          %p5835 = pneg %p251
        $region118: #{tpu_custom_call.1} parent=55 // pred_check_branch
          %5837 = sbr.rel (%p5835) target = $region120
        $region119: #{tpu_custom_call.1} parent=55 // pred_region
          %5838 = dma.done [#allocation8], 128
        $region120: #{tpu_custom_call.1} parent=55 // pred_fallthru
          _
      $region56: #{tpu_custom_call.1} parent=5 // pred_fallthru
        _
      %p5839 = scmp.le.s32.totalorder 2, %s22
      // Predicated region
      $region121: #{tpu_custom_call.1} parent=5 // pred_check
        %p5840 = pneg %p5839
      $region122: #{tpu_custom_call.1} parent=5 // pred_check_branch
        %5842 = sbr.rel (%p5840) target = $region124
      $region123: #{tpu_custom_call.1} parent=5 // pred_region
        %s5843 = ssub.s32 %s22, 2
      $region124: #{tpu_custom_call.1} parent=5 // pred_fallthru
        _
    $region6: #{tpu_custom_call.1} parent=1 // loop_footer
      %s26 = sadd.s32 1, %s22
    $region7: #{tpu_custom_call.1} parent=1 // loop_footer_branch
      %21 = sbr.rel target = $region3
    $region8: #{tpu_custom_call.1} parent=1 // loop_exit
      _
    %5844 = vsyncpa [#allocation7], 1
    %s5845 = scalar_lea.sflag [#allocation7], 1
    %5846 = vsyncpa %s5845, 1
    %5847 = vsyncpa [#allocation10], 1
    %5848 = vsyncpa [#allocation13], 1
    %5849 = vsyncpa [#allocation16], 1
    %5850 = vsyncpa [#allocation8], 1
    %s5851 = scalar_lea.sflag [#allocation8], 1
    %5852 = vsyncpa %s5851, 1

</llo_original>
